<compile_context>
chip_gen: v5e
topology: v5e:2x2
jax: 0.10.0
libtpu: 0.0.40
codegen_flags: <defaults>
</compile_context>

<pallas_src>
import functools
import math

import jax
import jax.numpy as jnp
from jax.experimental import pallas as pl
from jax.experimental.pallas import tpu as pltpu

DEFAULT_TILE_M = 512          # row tile (multiple of 8); clamped to M for tiny inputs
COMPUTE_DTYPE = jnp.bfloat16  # MXU operand dtype (f32 accumulation)
LN_EPS = 1e-12


def _round_up(x, m):
    return ((x + m - 1) // m) * m


def _layernorm_f32(x, gamma, beta, eps):
    """Biased-variance LayerNorm in f32 (matches torch var(unbiased=False))."""
    mean = jnp.mean(x, axis=-1, keepdims=True)
    xc = x - mean
    var = jnp.mean(xc * xc, axis=-1, keepdims=True)
    return xc * jax.lax.rsqrt(var + eps) * gamma + beta


# ---------------------------------------------------------------------------
# Kernels
# ---------------------------------------------------------------------------
def _attn_block_kernel(x_ref, g_ref, b_ref, wq_ref, wk_ref, wv_ref, wo_ref,
                       o_ref, *, num_heads, eps, compute_dtype):
    """out = x + MultiHeadAttention(LayerNorm(x)) for one batch element."""
    x = x_ref[0].astype(jnp.float32)                       # (S, D)
    S, D = x.shape
    dk = D // num_heads
    scale = 1.0 / math.sqrt(dk)

    xn = _layernorm_f32(x, g_ref[...].astype(jnp.float32),
                        b_ref[...].astype(jnp.float32), eps)
    xn_c = xn.astype(compute_dtype)

    q = jnp.dot(xn_c, wq_ref[...].astype(compute_dtype),
                preferred_element_type=jnp.float32)         # (S, D) f32
    k = jnp.dot(xn_c, wk_ref[...].astype(compute_dtype),
                preferred_element_type=jnp.float32)
    v = jnp.dot(xn_c, wv_ref[...].astype(compute_dtype),
                preferred_element_type=jnp.float32)

    row = jax.lax.broadcasted_iota(jnp.int32, (S, S), 0)
    col = jax.lax.broadcasted_iota(jnp.int32, (S, S), 1)
    allowed = col <= row                                    # causal mask

    wo = wo_ref[...].astype(compute_dtype)                  # (D, D)
    out = jnp.zeros((S, D), jnp.float32)
    for h in range(num_heads):                              # unrolled, static slices
        lo, hi = h * dk, (h + 1) * dk
        qh = q[:, lo:hi].astype(compute_dtype)              # (S, dk)
        kh = k[:, lo:hi].astype(compute_dtype)
        vh = v[:, lo:hi].astype(compute_dtype)
        scores = jax.lax.dot_general(
            qh, kh, (((1,), (1,)), ((), ())),
            preferred_element_type=jnp.float32) * scale     # (S, S)
        scores = jnp.where(allowed, scores, -jnp.inf)
        m = jnp.max(scores, axis=-1, keepdims=True)
        p = jnp.exp(scores - m)
        denom = jnp.sum(p, axis=-1, keepdims=True)
        p = p * pl.reciprocal(denom, approx=True)           # EUP slot, ~free
        ctx = jnp.dot(p.astype(compute_dtype), vh,
                      preferred_element_type=jnp.float32)   # (S, dk)
        # per-head ctx @ W_o[lo:hi, :] accumulated == concat(ctx) @ W_o
        out = out + jnp.dot(ctx.astype(compute_dtype), wo[lo:hi, :],
                            preferred_element_type=jnp.float32)
    o_ref[0] = (x + out).astype(o_ref.dtype)                # fused residual add


def _ffn_block_kernel(x_ref, g_ref, b_ref, w1_ref, b1_ref, w2_ref, b2_ref,
                      o_ref, *, eps, compute_dtype):
    """out = x + linear2(GELU(linear1(LayerNorm(x)))), row tile (tile_m, D)."""
    x = x_ref[...].astype(jnp.float32)                      # (tile_m, D)
    xn = _layernorm_f32(x, g_ref[...].astype(jnp.float32),
                        b_ref[...].astype(jnp.float32), eps)
    h = jnp.dot(xn.astype(compute_dtype), w1_ref[...].astype(compute_dtype),
                preferred_element_type=jnp.float32)
    h = h + b1_ref[...].astype(jnp.float32)                 # (tile_m, d_ff)
    # exact GELU (torch.nn.GELU default), f32 on VPU/EUP
    h = 0.5 * h * (1.0 + jax.lax.erf(h * (1.0 / math.sqrt(2.0))))
    y = jnp.dot(h.astype(compute_dtype), w2_ref[...].astype(compute_dtype),
                preferred_element_type=jnp.float32)
    y = y + b2_ref[...].astype(jnp.float32)
    o_ref[...] = (x + y).astype(o_ref.dtype)                # fused residual add


def _final_kernel(x_ref, g_ref, b_ref, w_ref, bias_ref, o_ref, *,
                  eps, compute_dtype):
    """logits = LayerNorm(x) @ W_lm + b_lm, row tile (tile_m, D) -> (tile_m, V)."""
    x = x_ref[...].astype(jnp.float32)
    xn = _layernorm_f32(x, g_ref[...].astype(jnp.float32),
                        b_ref[...].astype(jnp.float32), eps)
    y = jnp.dot(xn.astype(compute_dtype), w_ref[...].astype(compute_dtype),
                preferred_element_type=jnp.float32)
    y = y + bias_ref[...].astype(jnp.float32)
    o_ref[...] = y.astype(o_ref.dtype)


# ---------------------------------------------------------------------------
# Pallas wrappers
# ---------------------------------------------------------------------------
def _row_tiled_pallas(kernel, x2d, extras, out_cols, *, tile_m, out_dtype=None):
    """Run `kernel` over row tiles of x2d; `extras` (weights/biases, full arrays)
    use a constant block index so they stay VMEM-resident across grid steps."""
    M, D = x2d.shape
    out_dtype = out_dtype or x2d.dtype
    tile_m = min(tile_m, _round_up(M, 8))
    Mp = _round_up(M, tile_m)
    if Mp != M:
        # pad M so every MXU issue / output store is full width (no masked tail)
        x2d = jnp.pad(x2d, ((0, Mp - M), (0, 0)))
    grid = (Mp // tile_m,)

    in_specs = [pl.BlockSpec((tile_m, D), lambda i: (i, 0))]
    for e in extras:
        in_specs.append(pl.BlockSpec(e.shape, lambda i, _n=e.ndim: (0,) * _n))

    out = pl.pallas_call(
        kernel,
        out_shape=jax.ShapeDtypeStruct((Mp, out_cols), out_dtype),
        grid=grid,
        in_specs=in_specs,
        out_specs=pl.BlockSpec((tile_m, out_cols), lambda i: (i, 0)),
        compiler_params=pltpu.CompilerParams(
            dimension_semantics=("parallel",),   # independent row tiles
        ),
    )(x2d, *extras)
    return out[:M]


def attention_block(x, blk, num_heads, *, compute_dtype=COMPUTE_DTYPE):
    """x + MHA(LN1(x)); one grid step per batch element."""
    B, S, D = x.shape
    assert D % num_heads == 0
    kern = functools.partial(_attn_block_kernel, num_heads=num_heads,
                             eps=LN_EPS, compute_dtype=compute_dtype)
    gamma = blk["ln1_g"].reshape(1, D)
    beta = blk["ln1_b"].reshape(1, D)
    return pl.pallas_call(
        kern,
        out_shape=jax.ShapeDtypeStruct((B, S, D), x.dtype),
        grid=(B,),
        in_specs=[
            pl.BlockSpec((1, S, D), lambda b: (b, 0, 0)),
            pl.BlockSpec((1, D), lambda b: (0, 0)),
            pl.BlockSpec((1, D), lambda b: (0, 0)),
            pl.BlockSpec((D, D), lambda b: (0, 0)),
            pl.BlockSpec((D, D), lambda b: (0, 0)),
            pl.BlockSpec((D, D), lambda b: (0, 0)),
            pl.BlockSpec((D, D), lambda b: (0, 0)),
        ],
        out_specs=pl.BlockSpec((1, S, D), lambda b: (b, 0, 0)),
        compiler_params=pltpu.CompilerParams(
            dimension_semantics=("parallel",),
        ),
    )(x, gamma, beta, blk["wq"], blk["wk"], blk["wv"], blk["wo"])


def ffn_block(x, blk, *, compute_dtype=COMPUTE_DTYPE, tile_m=DEFAULT_TILE_M):
    """x + FFN(LN2(x)); row-tiled over M = B*S."""
    B, S, D = x.shape
    d_ff = blk["w1"].shape[1]
    x2d = x.reshape(B * S, D)
    kern = functools.partial(_ffn_block_kernel, eps=LN_EPS,
                             compute_dtype=compute_dtype)
    extras = [blk["ln2_g"].reshape(1, D), blk["ln2_b"].reshape(1, D),
              blk["w1"], blk["b1"].reshape(1, d_ff),
              blk["w2"], blk["b2"].reshape(1, D)]
    out = _row_tiled_pallas(kern, x2d, extras, D, tile_m=tile_m)
    return out.reshape(B, S, D)


def final_projection(x, params, *, compute_dtype=COMPUTE_DTYPE,
                     tile_m=DEFAULT_TILE_M):
    """lm_head(LN_f(x)); row-tiled over M = B*S."""
    B, S, D = x.shape
    V = params["lm_w"].shape[1]
    x2d = x.reshape(B * S, D)
    kern = functools.partial(_final_kernel, eps=LN_EPS,
                             compute_dtype=compute_dtype)
    extras = [params["lnf_g"].reshape(1, D), params["lnf_b"].reshape(1, D),
              params["lm_w"], params["lm_b"].reshape(1, V)]
    out = _row_tiled_pallas(kern, x2d, extras, V, tile_m=tile_m)
    return out.reshape(B, S, V)


# ---------------------------------------------------------------------------
# Full model (inference forward, matching ShakespeareTransformer._base_forward)
# ---------------------------------------------------------------------------
def make_positional_encoding(d_model, max_seq_length):
    position = jnp.arange(max_seq_length, dtype=jnp.float32)[:, None]
    div_term = jnp.exp(jnp.arange(0, d_model, 2, dtype=jnp.float32)
                       * (-math.log(10000.0) / d_model))
    pe = jnp.zeros((max_seq_length, d_model), jnp.float32)
    pe = pe.at[:, 0::2].set(jnp.sin(position * div_term))
    pe = pe.at[:, 1::2].set(jnp.cos(position * div_term))
    return pe


def init_params(key, vocab_size, d_model, num_heads, num_layers, d_ff,
                max_seq_length, *, matmul_dtype=COMPUTE_DTYPE):
    def uniform(k, shape, bound):
        return jax.random.uniform(k, shape, jnp.float32, -bound, bound)

    keys = iter(jax.random.split(key, 3 + 8 * num_layers))
    params = {
        "tok_emb": jax.random.normal(next(keys), (vocab_size, d_model), jnp.float32),
        "pe": make_positional_encoding(d_model, max_seq_length),
        "blocks": [],
        "lnf_g": jnp.ones((d_model,), jnp.float32),
        "lnf_b": jnp.zeros((d_model,), jnp.float32),
    }
    xav = math.sqrt(6.0 / (d_model + d_ff))
    for _ in range(num_layers):
        blk = {
            "ln1_g": jnp.ones((d_model,), jnp.float32),
            "ln1_b": jnp.zeros((d_model,), jnp.float32),
            "wq": (jax.random.normal(next(keys), (d_model, d_model), jnp.float32)
                   / math.sqrt(d_model)).astype(matmul_dtype),
            "wk": (jax.random.normal(next(keys), (d_model, d_model), jnp.float32)
                   / math.sqrt(d_model)).astype(matmul_dtype),
            "wv": (jax.random.normal(next(keys), (d_model, d_model), jnp.float32)
                   / math.sqrt(d_model)).astype(matmul_dtype),
            "wo": (jax.random.normal(next(keys), (d_model, d_model), jnp.float32)
                   / math.sqrt(d_model)).astype(matmul_dtype),
            "ln2_g": jnp.ones((d_model,), jnp.float32),
            "ln2_b": jnp.zeros((d_model,), jnp.float32),
            # linear1/linear2 weights: xavier-uniform, stored pre-transposed (in, out)
            "w1": uniform(next(keys), (d_model, d_ff), xav).astype(matmul_dtype),
            "b1": uniform(next(keys), (d_ff,), 1.0 / math.sqrt(d_model)),
            "w2": uniform(next(keys), (d_ff, d_model), xav).astype(matmul_dtype),
            "b2": uniform(next(keys), (d_model,), 1.0 / math.sqrt(d_ff)),
        }
        params["blocks"].append(blk)
    params["lm_w"] = uniform(next(keys), (d_model, vocab_size),
                             1.0 / math.sqrt(d_model)).astype(matmul_dtype)
    params["lm_b"] = uniform(next(keys), (vocab_size,), 1.0 / math.sqrt(d_model))
    return params


def pallas_forward(params, tokens, *, num_heads, tile_m=DEFAULT_TILE_M):
    # token embedding + positional encoding (plain JAX gather/add)
    x = jnp.take(params["tok_emb"], tokens, axis=0)          # (B, S, D) f32
    S = tokens.shape[1]
    x = x + params["pe"][None, :S, :]
    for blk in params["blocks"]:
        x = attention_block(x, blk, num_heads)                # x + MHA(LN1(x)); dropout1 = id
        x = ffn_block(x, blk, tile_m=tile_m)                  # x + FFN(LN2(x)); dropout2 = id
    return final_projection(x, params, tile_m=tile_m)         # lm_head(LN_f(x))


# ---------------------------------------------------------------------------
# Pure-JAX f32 reference (no Pallas) for correctness checking
# ---------------------------------------------------------------------------
def reference_forward(params, tokens, num_heads, eps=LN_EPS):
    f = lambda a: a.astype(jnp.float32)

    def ln(x, g, b):
        mean = x.mean(-1, keepdims=True)
        var = ((x - mean) ** 2).mean(-1, keepdims=True)
        return g * (x - mean) / jnp.sqrt(var + eps) + b

    B, S = tokens.shape
    x = jnp.take(f(params["tok_emb"]), tokens, axis=0)
    x = x + params["pe"][None, :S, :]
    D = x.shape[-1]
    dk = D // num_heads
    mask = jnp.triu(jnp.ones((S, S), dtype=bool), k=1)
    for blk in params["blocks"]:
        xn = ln(x, blk["ln1_g"], blk["ln1_b"])
        q = xn @ f(blk["wq"])
        k = xn @ f(blk["wk"])
        v = xn @ f(blk["wv"])
        q = q.reshape(B, S, num_heads, dk).transpose(0, 2, 1, 3)
        k = k.reshape(B, S, num_heads, dk).transpose(0, 2, 1, 3)
        v = v.reshape(B, S, num_heads, dk).transpose(0, 2, 1, 3)
        scores = jnp.einsum("bhqd,bhkd->bhqk", q, k) / math.sqrt(dk)
        scores = jnp.where(mask[None, None], -jnp.inf, scores)
        attn = jax.nn.softmax(scores, axis=-1)
        ctx = jnp.einsum("bhqk,bhkd->bhqd", attn, v)
        ctx = ctx.transpose(0, 2, 1, 3).reshape(B, S, D)
        x = x + ctx @ f(blk["wo"])
        xn = ln(x, blk["ln2_g"], blk["ln2_b"])
        h = xn @ f(blk["w1"]) + blk["b1"]
        h = 0.5 * h * (1.0 + jax.lax.erf(h / math.sqrt(2.0)))
        x = x + (h @ f(blk["w2"]) + blk["b2"])
    x = ln(x, params["lnf_g"], params["lnf_b"])
    return x @ f(params["lm_w"]) + params["lm_b"]


# ---------------------------------------------------------------------------
if __name__ == "__main__":
    key = jax.random.PRNGKey(0)
    k_tok, k_par = jax.random.split(key)

    # Small but lane-dense config (feature dims multiples of 128);
    # real module defaults: d_model=256, d_ff=1024, heads=8, layers=6.
    vocab_size = 128      # char vocab (~65) padded to lane-dense 128
    d_model = 128
    num_heads = 4
    num_layers = 2
    d_ff = 256
    max_seq_length = 64
    batch, seq = 2, 16

    params = init_params(k_par, vocab_size, d_model, num_heads, num_layers,
                         d_ff, max_seq_length)
    tokens = jax.random.randint(k_tok, (batch, seq), 0, vocab_size, dtype=jnp.int32)

    fwd = jax.jit(functools.partial(pallas_forward, num_heads=num_heads))
    logits = fwd(params, tokens)
    jax.block_until_ready(logits)
    assert logits.shape == (batch, seq, vocab_size)

    ref = reference_forward(params, tokens, num_heads)
    # bf16 matmul operands (f32 accumulation) + approx reciprocal => looser tolerance
    rel_err = jnp.linalg.norm(logits - ref) / jnp.linalg.norm(ref)
    max_err = jnp.max(jnp.abs(logits - ref))
    assert rel_err < 5e-2, f"relative error too large: {rel_err}"
    assert max_err < 0.25, f"max abs error too large: {max_err}"

    print("KERNEL_OK")
</pallas_src>

<mosaic_0001>
module attributes {stable_mosaic.version = 11 : i64} {
  func.func @_attn_block_kernel(%arg0: i32, %arg1: memref<1x16x128xf32, #tpu.memory_space<vmem>>, %arg2: memref<1x128xf32, #tpu.memory_space<vmem>>, %arg3: memref<1x128xf32, #tpu.memory_space<vmem>>, %arg4: memref<128x128xbf16, #tpu.memory_space<vmem>>, %arg5: memref<128x128xbf16, #tpu.memory_space<vmem>>, %arg6: memref<128x128xbf16, #tpu.memory_space<vmem>>, %arg7: memref<128x128xbf16, #tpu.memory_space<vmem>>, %arg8: memref<1x16x128xf32, #tpu.memory_space<vmem>>) attributes {dimension_semantics = [#tpu.dimension_semantics<parallel>], iteration_bounds = array<i64: 2>, scalar_prefetch = 0 : i64, scratch_operands = 0 : i64, tpu.core_type = #tpu.core_type<tc>, window_params = [{transform_indices = @transform_0, window_bounds = array<i64: 1, 16, 128>}, {pipeline_mode = #tpu.pipeline_mode<synchronous>, transform_indices = @transform_1, window_bounds = array<i64: 1, 128>}, {pipeline_mode = #tpu.pipeline_mode<synchronous>, transform_indices = @transform_2, window_bounds = array<i64: 1, 128>}, {pipeline_mode = #tpu.pipeline_mode<synchronous>, transform_indices = @transform_3, window_bounds = array<i64: 128, 128>}, {pipeline_mode = #tpu.pipeline_mode<synchronous>, transform_indices = @transform_4, window_bounds = array<i64: 128, 128>}, {pipeline_mode = #tpu.pipeline_mode<synchronous>, transform_indices = @transform_5, window_bounds = array<i64: 128, 128>}, {pipeline_mode = #tpu.pipeline_mode<synchronous>, transform_indices = @transform_6, window_bounds = array<i64: 128, 128>}, {transform_indices = @transform_7, window_bounds = array<i64: 1, 16, 128>}]} {
    %c0 = arith.constant 0 : index
    %c0_0 = arith.constant 0 : index
    %c0_1 = arith.constant 0 : index
    %0 = vector.load %arg1[%c0, %c0_0, %c0_1] : memref<1x16x128xf32, #tpu.memory_space<vmem>>, vector<1x16x128xf32>
    %1 = vector.shape_cast %0 : vector<1x16x128xf32> to vector<16x128xf32>
    %c0_2 = arith.constant 0 : index
    %c0_3 = arith.constant 0 : index
    %2 = vector.load %arg2[%c0_2, %c0_3] : memref<1x128xf32, #tpu.memory_space<vmem>>, vector<1x128xf32>
    %c0_4 = arith.constant 0 : index
    %c0_5 = arith.constant 0 : index
    %3 = vector.load %arg3[%c0_4, %c0_5] : memref<1x128xf32, #tpu.memory_space<vmem>>, vector<1x128xf32>
    %cst = arith.constant dense<0.000000e+00> : vector<16xf32>
    %4 = vector.multi_reduction <add>, %1, %cst [1] : vector<16x128xf32> to vector<16xf32>
    %5 = vector.shape_cast %4 : vector<16xf32> to vector<16x1xf32>
    %cst_6 = arith.constant 1.280000e+02 : f32
    %6 = vector.broadcast %cst_6 : f32 to vector<16x1xf32>
    %7 = arith.divf %5, %6 : vector<16x1xf32>
    %8 = vector.broadcast %7 : vector<16x1xf32> to vector<16x128xf32>
    %9 = arith.subf %1, %8 : vector<16x128xf32>
    %10 = arith.mulf %9, %9 : vector<16x128xf32>
    %cst_7 = arith.constant dense<0.000000e+00> : vector<16xf32>
    %11 = vector.multi_reduction <add>, %10, %cst_7 [1] : vector<16x128xf32> to vector<16xf32>
    %12 = vector.shape_cast %11 : vector<16xf32> to vector<16x1xf32>
    %cst_8 = arith.constant 1.280000e+02 : f32
    %13 = vector.broadcast %cst_8 : f32 to vector<16x1xf32>
    %14 = arith.divf %12, %13 : vector<16x1xf32>
    %cst_9 = arith.constant 9.99999996E-13 : f32
    %15 = vector.broadcast %cst_9 : f32 to vector<16x1xf32>
    %16 = arith.addf %14, %15 : vector<16x1xf32>
    %17 = math.rsqrt %16 : vector<16x1xf32>
    %18 = vector.broadcast %17 : vector<16x1xf32> to vector<16x128xf32>
    %19 = arith.mulf %9, %18 : vector<16x128xf32>
    %20 = vector.broadcast %2 : vector<1x128xf32> to vector<16x128xf32>
    %21 = arith.mulf %19, %20 : vector<16x128xf32>
    %22 = vector.broadcast %3 : vector<1x128xf32> to vector<16x128xf32>
    %23 = arith.addf %21, %22 : vector<16x128xf32>
    %24 = arith.truncf %23 : vector<16x128xf32> to vector<16x128xbf16>
    %c0_10 = arith.constant 0 : index
    %c0_11 = arith.constant 0 : index
    %25 = vector.load %arg4[%c0_10, %c0_11] : memref<128x128xbf16, #tpu.memory_space<vmem>>, vector<128x128xbf16>
    %cst_12 = arith.constant dense<0.000000e+00> : vector<16x128xf32>
    %26 = tpu.matmul %24, %25, %cst_12 {dimension_numbers = #tpu.dot_dimension_numbers<[1], [0], [0], [1], [0, 0, 1, 1], [], []>} : vector<16x128xbf16>, vector<128x128xbf16>, vector<16x128xf32> -> vector<16x128xf32>
    %c0_13 = arith.constant 0 : index
    %c0_14 = arith.constant 0 : index
    %27 = vector.load %arg5[%c0_13, %c0_14] : memref<128x128xbf16, #tpu.memory_space<vmem>>, vector<128x128xbf16>
    %cst_15 = arith.constant dense<0.000000e+00> : vector<16x128xf32>
    %28 = tpu.matmul %24, %27, %cst_15 {dimension_numbers = #tpu.dot_dimension_numbers<[1], [0], [0], [1], [0, 0, 1, 1], [], []>} : vector<16x128xbf16>, vector<128x128xbf16>, vector<16x128xf32> -> vector<16x128xf32>
    %c0_16 = arith.constant 0 : index
    %c0_17 = arith.constant 0 : index
    %29 = vector.load %arg6[%c0_16, %c0_17] : memref<128x128xbf16, #tpu.memory_space<vmem>>, vector<128x128xbf16>
    %cst_18 = arith.constant dense<0.000000e+00> : vector<16x128xf32>
    %30 = tpu.matmul %24, %29, %cst_18 {dimension_numbers = #tpu.dot_dimension_numbers<[1], [0], [0], [1], [0, 0, 1, 1], [], []>} : vector<16x128xbf16>, vector<128x128xbf16>, vector<16x128xf32> -> vector<16x128xf32>
    %31 = tpu.iota {dimensions = array<i32: 0>} : vector<16x16xi32>
    %32 = tpu.iota {dimensions = array<i32: 1>} : vector<16x16xi32>
    %33 = arith.cmpi sle, %32, %31 : vector<16x16xi32>
    %c0_19 = arith.constant 0 : index
    %c0_20 = arith.constant 0 : index
    %34 = vector.load %arg7[%c0_19, %c0_20] : memref<128x128xbf16, #tpu.memory_space<vmem>>, vector<128x128xbf16>
    %cst_21 = arith.constant 0.000000e+00 : f32
    %35 = vector.broadcast %cst_21 : f32 to vector<16x128xf32>
    %36 = vector.extract_strided_slice %26 {offsets = [0, 0], sizes = [16, 32], strides = [1, 1]} : vector<16x128xf32> to vector<16x32xf32>
    %37 = arith.truncf %36 : vector<16x32xf32> to vector<16x32xbf16>
    %38 = vector.extract_strided_slice %28 {offsets = [0, 0], sizes = [16, 32], strides = [1, 1]} : vector<16x128xf32> to vector<16x32xf32>
    %39 = arith.truncf %38 : vector<16x32xf32> to vector<16x32xbf16>
    %40 = vector.extract_strided_slice %30 {offsets = [0, 0], sizes = [16, 32], strides = [1, 1]} : vector<16x128xf32> to vector<16x32xf32>
    %41 = arith.truncf %40 : vector<16x32xf32> to vector<16x32xbf16>
    %cst_22 = arith.constant dense<0.000000e+00> : vector<16x16xf32>
    %42 = tpu.matmul %37, %39, %cst_22 {dimension_numbers = #tpu.dot_dimension_numbers<[1], [1], [0], [0], [0, 0, 1, 0], [], []>} : vector<16x32xbf16>, vector<16x32xbf16>, vector<16x16xf32> -> vector<16x16xf32>
    %cst_23 = arith.constant 0.176776692 : f32
    %43 = vector.broadcast %cst_23 : f32 to vector<16x16xf32>
    %44 = arith.mulf %42, %43 : vector<16x16xf32>
    %cst_24 = arith.constant 0xFF800000 : f32
    %45 = vector.broadcast %cst_24 : f32 to vector<16x16xf32>
    %46 = arith.select %33, %44, %45 : vector<16x16xi1>, vector<16x16xf32>
    %cst_25 = arith.constant dense<0xFF800000> : vector<16xf32>
    %47 = vector.multi_reduction <maximumf>, %46, %cst_25 [1] : vector<16x16xf32> to vector<16xf32>
    %48 = vector.shape_cast %47 : vector<16xf32> to vector<16x1xf32>
    %49 = vector.broadcast %48 : vector<16x1xf32> to vector<16x16xf32>
    %50 = arith.subf %46, %49 : vector<16x16xf32>
    %51 = math.exp %50 : vector<16x16xf32>
    %cst_26 = arith.constant dense<0.000000e+00> : vector<16xf32>
    %52 = vector.multi_reduction <add>, %51, %cst_26 [1] : vector<16x16xf32> to vector<16xf32>
    %53 = vector.shape_cast %52 : vector<16xf32> to vector<16x1xf32>
    %54 = tpu.reciprocal %53 {approx = true} : vector<16x1xf32> -> vector<16x1xf32>
    %55 = vector.broadcast %54 : vector<16x1xf32> to vector<16x16xf32>
    %56 = arith.mulf %51, %55 : vector<16x16xf32>
    %57 = arith.truncf %56 : vector<16x16xf32> to vector<16x16xbf16>
    %cst_27 = arith.constant dense<0.000000e+00> : vector<16x32xf32>
    %58 = tpu.matmul %57, %41, %cst_27 {dimension_numbers = #tpu.dot_dimension_numbers<[1], [0], [0], [1], [0, 0, 1, 1], [], []>} : vector<16x16xbf16>, vector<16x32xbf16>, vector<16x32xf32> -> vector<16x32xf32>
    %59 = arith.truncf %58 : vector<16x32xf32> to vector<16x32xbf16>
    %60 = vector.extract_strided_slice %34 {offsets = [0, 0], sizes = [32, 128], strides = [1, 1]} : vector<128x128xbf16> to vector<32x128xbf16>
    %cst_28 = arith.constant dense<0.000000e+00> : vector<16x128xf32>
    %61 = tpu.matmul %59, %60, %cst_28 {dimension_numbers = #tpu.dot_dimension_numbers<[1], [0], [0], [1], [0, 0, 1, 1], [], []>} : vector<16x32xbf16>, vector<32x128xbf16>, vector<16x128xf32> -> vector<16x128xf32>
    %62 = arith.addf %35, %61 : vector<16x128xf32>
    %63 = vector.extract_strided_slice %26 {offsets = [0, 32], sizes = [16, 32], strides = [1, 1]} : vector<16x128xf32> to vector<16x32xf32>
    %64 = arith.truncf %63 : vector<16x32xf32> to vector<16x32xbf16>
    %65 = vector.extract_strided_slice %28 {offsets = [0, 32], sizes = [16, 32], strides = [1, 1]} : vector<16x128xf32> to vector<16x32xf32>
    %66 = arith.truncf %65 : vector<16x32xf32> to vector<16x32xbf16>
    %67 = vector.extract_strided_slice %30 {offsets = [0, 32], sizes = [16, 32], strides = [1, 1]} : vector<16x128xf32> to vector<16x32xf32>
    %68 = arith.truncf %67 : vector<16x32xf32> to vector<16x32xbf16>
    %cst_29 = arith.constant dense<0.000000e+00> : vector<16x16xf32>
    %69 = tpu.matmul %64, %66, %cst_29 {dimension_numbers = #tpu.dot_dimension_numbers<[1], [1], [0], [0], [0, 0, 1, 0], [], []>} : vector<16x32xbf16>, vector<16x32xbf16>, vector<16x16xf32> -> vector<16x16xf32>
    %cst_30 = arith.constant 0.176776692 : f32
    %70 = vector.broadcast %cst_30 : f32 to vector<16x16xf32>
    %71 = arith.mulf %69, %70 : vector<16x16xf32>
    %cst_31 = arith.constant 0xFF800000 : f32
    %72 = vector.broadcast %cst_31 : f32 to vector<16x16xf32>
    %73 = arith.select %33, %71, %72 : vector<16x16xi1>, vector<16x16xf32>
    %cst_32 = arith.constant dense<0xFF800000> : vector<16xf32>
    %74 = vector.multi_reduction <maximumf>, %73, %cst_32 [1] : vector<16x16xf32> to vector<16xf32>
    %75 = vector.shape_cast %74 : vector<16xf32> to vector<16x1xf32>
    %76 = vector.broadcast %75 : vector<16x1xf32> to vector<16x16xf32>
    %77 = arith.subf %73, %76 : vector<16x16xf32>
    %78 = math.exp %77 : vector<16x16xf32>
    %cst_33 = arith.constant dense<0.000000e+00> : vector<16xf32>
    %79 = vector.multi_reduction <add>, %78, %cst_33 [1] : vector<16x16xf32> to vector<16xf32>
    %80 = vector.shape_cast %79 : vector<16xf32> to vector<16x1xf32>
    %81 = tpu.reciprocal %80 {approx = true} : vector<16x1xf32> -> vector<16x1xf32>
    %82 = vector.broadcast %81 : vector<16x1xf32> to vector<16x16xf32>
    %83 = arith.mulf %78, %82 : vector<16x16xf32>
    %84 = arith.truncf %83 : vector<16x16xf32> to vector<16x16xbf16>
    %cst_34 = arith.constant dense<0.000000e+00> : vector<16x32xf32>
    %85 = tpu.matmul %84, %68, %cst_34 {dimension_numbers = #tpu.dot_dimension_numbers<[1], [0], [0], [1], [0, 0, 1, 1], [], []>} : vector<16x16xbf16>, vector<16x32xbf16>, vector<16x32xf32> -> vector<16x32xf32>
    %86 = arith.truncf %85 : vector<16x32xf32> to vector<16x32xbf16>
    %87 = vector.extract_strided_slice %34 {offsets = [32, 0], sizes = [32, 128], strides = [1, 1]} : vector<128x128xbf16> to vector<32x128xbf16>
    %cst_35 = arith.constant dense<0.000000e+00> : vector<16x128xf32>
    %88 = tpu.matmul %86, %87, %cst_35 {dimension_numbers = #tpu.dot_dimension_numbers<[1], [0], [0], [1], [0, 0, 1, 1], [], []>} : vector<16x32xbf16>, vector<32x128xbf16>, vector<16x128xf32> -> vector<16x128xf32>
    %89 = arith.addf %62, %88 : vector<16x128xf32>
    %90 = vector.extract_strided_slice %26 {offsets = [0, 64], sizes = [16, 32], strides = [1, 1]} : vector<16x128xf32> to vector<16x32xf32>
    %91 = arith.truncf %90 : vector<16x32xf32> to vector<16x32xbf16>
    %92 = vector.extract_strided_slice %28 {offsets = [0, 64], sizes = [16, 32], strides = [1, 1]} : vector<16x128xf32> to vector<16x32xf32>
    %93 = arith.truncf %92 : vector<16x32xf32> to vector<16x32xbf16>
    %94 = vector.extract_strided_slice %30 {offsets = [0, 64], sizes = [16, 32], strides = [1, 1]} : vector<16x128xf32> to vector<16x32xf32>
    %95 = arith.truncf %94 : vector<16x32xf32> to vector<16x32xbf16>
    %cst_36 = arith.constant dense<0.000000e+00> : vector<16x16xf32>
    %96 = tpu.matmul %91, %93, %cst_36 {dimension_numbers = #tpu.dot_dimension_numbers<[1], [1], [0], [0], [0, 0, 1, 0], [], []>} : vector<16x32xbf16>, vector<16x32xbf16>, vector<16x16xf32> -> vector<16x16xf32>
    %cst_37 = arith.constant 0.176776692 : f32
    %97 = vector.broadcast %cst_37 : f32 to vector<16x16xf32>
    %98 = arith.mulf %96, %97 : vector<16x16xf32>
    %cst_38 = arith.constant 0xFF800000 : f32
    %99 = vector.broadcast %cst_38 : f32 to vector<16x16xf32>
    %100 = arith.select %33, %98, %99 : vector<16x16xi1>, vector<16x16xf32>
    %cst_39 = arith.constant dense<0xFF800000> : vector<16xf32>
    %101 = vector.multi_reduction <maximumf>, %100, %cst_39 [1] : vector<16x16xf32> to vector<16xf32>
    %102 = vector.shape_cast %101 : vector<16xf32> to vector<16x1xf32>
    %103 = vector.broadcast %102 : vector<16x1xf32> to vector<16x16xf32>
    %104 = arith.subf %100, %103 : vector<16x16xf32>
    %105 = math.exp %104 : vector<16x16xf32>
    %cst_40 = arith.constant dense<0.000000e+00> : vector<16xf32>
    %106 = vector.multi_reduction <add>, %105, %cst_40 [1] : vector<16x16xf32> to vector<16xf32>
    %107 = vector.shape_cast %106 : vector<16xf32> to vector<16x1xf32>
    %108 = tpu.reciprocal %107 {approx = true} : vector<16x1xf32> -> vector<16x1xf32>
    %109 = vector.broadcast %108 : vector<16x1xf32> to vector<16x16xf32>
    %110 = arith.mulf %105, %109 : vector<16x16xf32>
    %111 = arith.truncf %110 : vector<16x16xf32> to vector<16x16xbf16>
    %cst_41 = arith.constant dense<0.000000e+00> : vector<16x32xf32>
    %112 = tpu.matmul %111, %95, %cst_41 {dimension_numbers = #tpu.dot_dimension_numbers<[1], [0], [0], [1], [0, 0, 1, 1], [], []>} : vector<16x16xbf16>, vector<16x32xbf16>, vector<16x32xf32> -> vector<16x32xf32>
    %113 = arith.truncf %112 : vector<16x32xf32> to vector<16x32xbf16>
    %114 = vector.extract_strided_slice %34 {offsets = [64, 0], sizes = [32, 128], strides = [1, 1]} : vector<128x128xbf16> to vector<32x128xbf16>
    %cst_42 = arith.constant dense<0.000000e+00> : vector<16x128xf32>
    %115 = tpu.matmul %113, %114, %cst_42 {dimension_numbers = #tpu.dot_dimension_numbers<[1], [0], [0], [1], [0, 0, 1, 1], [], []>} : vector<16x32xbf16>, vector<32x128xbf16>, vector<16x128xf32> -> vector<16x128xf32>
    %116 = arith.addf %89, %115 : vector<16x128xf32>
    %117 = vector.extract_strided_slice %26 {offsets = [0, 96], sizes = [16, 32], strides = [1, 1]} : vector<16x128xf32> to vector<16x32xf32>
    %118 = arith.truncf %117 : vector<16x32xf32> to vector<16x32xbf16>
    %119 = vector.extract_strided_slice %28 {offsets = [0, 96], sizes = [16, 32], strides = [1, 1]} : vector<16x128xf32> to vector<16x32xf32>
    %120 = arith.truncf %119 : vector<16x32xf32> to vector<16x32xbf16>
    %121 = vector.extract_strided_slice %30 {offsets = [0, 96], sizes = [16, 32], strides = [1, 1]} : vector<16x128xf32> to vector<16x32xf32>
    %122 = arith.truncf %121 : vector<16x32xf32> to vector<16x32xbf16>
    %cst_43 = arith.constant dense<0.000000e+00> : vector<16x16xf32>
    %123 = tpu.matmul %118, %120, %cst_43 {dimension_numbers = #tpu.dot_dimension_numbers<[1], [1], [0], [0], [0, 0, 1, 0], [], []>} : vector<16x32xbf16>, vector<16x32xbf16>, vector<16x16xf32> -> vector<16x16xf32>
    %cst_44 = arith.constant 0.176776692 : f32
    %124 = vector.broadcast %cst_44 : f32 to vector<16x16xf32>
    %125 = arith.mulf %123, %124 : vector<16x16xf32>
    %cst_45 = arith.constant 0xFF800000 : f32
    %126 = vector.broadcast %cst_45 : f32 to vector<16x16xf32>
    %127 = arith.select %33, %125, %126 : vector<16x16xi1>, vector<16x16xf32>
    %cst_46 = arith.constant dense<0xFF800000> : vector<16xf32>
    %128 = vector.multi_reduction <maximumf>, %127, %cst_46 [1] : vector<16x16xf32> to vector<16xf32>
    %129 = vector.shape_cast %128 : vector<16xf32> to vector<16x1xf32>
    %130 = vector.broadcast %129 : vector<16x1xf32> to vector<16x16xf32>
    %131 = arith.subf %127, %130 : vector<16x16xf32>
    %132 = math.exp %131 : vector<16x16xf32>
    %cst_47 = arith.constant dense<0.000000e+00> : vector<16xf32>
    %133 = vector.multi_reduction <add>, %132, %cst_47 [1] : vector<16x16xf32> to vector<16xf32>
    %134 = vector.shape_cast %133 : vector<16xf32> to vector<16x1xf32>
    %135 = tpu.reciprocal %134 {approx = true} : vector<16x1xf32> -> vector<16x1xf32>
    %136 = vector.broadcast %135 : vector<16x1xf32> to vector<16x16xf32>
    %137 = arith.mulf %132, %136 : vector<16x16xf32>
    %138 = arith.truncf %137 : vector<16x16xf32> to vector<16x16xbf16>
    %cst_48 = arith.constant dense<0.000000e+00> : vector<16x32xf32>
    %139 = tpu.matmul %138, %122, %cst_48 {dimension_numbers = #tpu.dot_dimension_numbers<[1], [0], [0], [1], [0, 0, 1, 1], [], []>} : vector<16x16xbf16>, vector<16x32xbf16>, vector<16x32xf32> -> vector<16x32xf32>
    %140 = arith.truncf %139 : vector<16x32xf32> to vector<16x32xbf16>
    %141 = vector.extract_strided_slice %34 {offsets = [96, 0], sizes = [32, 128], strides = [1, 1]} : vector<128x128xbf16> to vector<32x128xbf16>
    %cst_49 = arith.constant dense<0.000000e+00> : vector<16x128xf32>
    %142 = tpu.matmul %140, %141, %cst_49 {dimension_numbers = #tpu.dot_dimension_numbers<[1], [0], [0], [1], [0, 0, 1, 1], [], []>} : vector<16x32xbf16>, vector<32x128xbf16>, vector<16x128xf32> -> vector<16x128xf32>
    %143 = arith.addf %116, %142 : vector<16x128xf32>
    %144 = arith.addf %1, %143 : vector<16x128xf32>
    %c0_50 = arith.constant 0 : index
    %c0_51 = arith.constant 0 : index
    %c0_52 = arith.constant 0 : index
    %145 = vector.load %arg8[%c0_50, %c0_51, %c0_52] : memref<1x16x128xf32, #tpu.memory_space<vmem>>, vector<1x16x128xf32>
    %146 = vector.shape_cast %145 : vector<1x16x128xf32> to vector<16x128xf32>
    %147 = vector.shape_cast %144 : vector<16x128xf32> to vector<1x16x128xf32>
    tpu.vector_store %arg8[%c0_50, %c0_51, %c0_52], %147 {strides = array<i32>} : memref<1x16x128xf32, #tpu.memory_space<vmem>>, vector<1x16x128xf32>,
    return
  }
  func.func @transform_0(%arg0: i32) -> (i32, i32, i32) {
    %c0_i32 = arith.constant 0 : i32
    %c0_i32_0 = arith.constant 0 : i32
    %c0_i32_1 = arith.constant 0 : i32
    return %arg0, %c0_i32, %c0_i32_0 : i32, i32, i32
  }
  func.func @transform_1(%arg0: i32) -> (i32, i32) {
    %c0_i32 = arith.constant 0 : i32
    %c0_i32_0 = arith.constant 0 : i32
    %c0_i32_1 = arith.constant 0 : i32
    return %c0_i32, %c0_i32_0 : i32, i32
  }
  func.func @transform_2(%arg0: i32) -> (i32, i32) {
    %c0_i32 = arith.constant 0 : i32
    %c0_i32_0 = arith.constant 0 : i32
    %c0_i32_1 = arith.constant 0 : i32
    return %c0_i32, %c0_i32_0 : i32, i32
  }
  func.func @transform_3(%arg0: i32) -> (i32, i32) {
    %c0_i32 = arith.constant 0 : i32
    %c0_i32_0 = arith.constant 0 : i32
    %c0_i32_1 = arith.constant 0 : i32
    return %c0_i32, %c0_i32_0 : i32, i32
  }
  func.func @transform_4(%arg0: i32) -> (i32, i32) {
    %c0_i32 = arith.constant 0 : i32
    %c0_i32_0 = arith.constant 0 : i32
    %c0_i32_1 = arith.constant 0 : i32
    return %c0_i32, %c0_i32_0 : i32, i32
  }
  func.func @transform_5(%arg0: i32) -> (i32, i32) {
    %c0_i32 = arith.constant 0 : i32
    %c0_i32_0 = arith.constant 0 : i32
    %c0_i32_1 = arith.constant 0 : i32
    return %c0_i32, %c0_i32_0 : i32, i32
  }
  func.func @transform_6(%arg0: i32) -> (i32, i32) {
    %c0_i32 = arith.constant 0 : i32
    %c0_i32_0 = arith.constant 0 : i32
    %c0_i32_1 = arith.constant 0 : i32
    return %c0_i32, %c0_i32_0 : i32, i32
  }
  func.func @transform_7(%arg0: i32) -> (i32, i32, i32) {
    %c0_i32 = arith.constant 0 : i32
    %c0_i32_0 = arith.constant 0 : i32
    %c0_i32_1 = arith.constant 0 : i32
    return %arg0, %c0_i32, %c0_i32_0 : i32, i32, i32
  }
}

module attributes {stable_mosaic.version = 11 : i64} {
  func.func @_ffn_block_kernel(%arg0: i32, %arg1: memref<32x128xf32, #tpu.memory_space<vmem>>, %arg2: memref<1x128xf32, #tpu.memory_space<vmem>>, %arg3: memref<1x128xf32, #tpu.memory_space<vmem>>, %arg4: memref<128x256xbf16, #tpu.memory_space<vmem>>, %arg5: memref<1x256xf32, #tpu.memory_space<vmem>>, %arg6: memref<256x128xbf16, #tpu.memory_space<vmem>>, %arg7: memref<1x128xf32, #tpu.memory_space<vmem>>, %arg8: memref<32x128xf32, #tpu.memory_space<vmem>>) attributes {dimension_semantics = [#tpu.dimension_semantics<parallel>], iteration_bounds = array<i64: 1>, scalar_prefetch = 0 : i64, scratch_operands = 0 : i64, tpu.core_type = #tpu.core_type<tc>, window_params = [{transform_indices = @transform_0, window_bounds = array<i64: 32, 128>}, {pipeline_mode = #tpu.pipeline_mode<synchronous>, transform_indices = @transform_1, window_bounds = array<i64: 1, 128>}, {pipeline_mode = #tpu.pipeline_mode<synchronous>, transform_indices = @transform_2, window_bounds = array<i64: 1, 128>}, {pipeline_mode = #tpu.pipeline_mode<synchronous>, transform_indices = @transform_3, window_bounds = array<i64: 128, 256>}, {pipeline_mode = #tpu.pipeline_mode<synchronous>, transform_indices = @transform_4, window_bounds = array<i64: 1, 256>}, {pipeline_mode = #tpu.pipeline_mode<synchronous>, transform_indices = @transform_5, window_bounds = array<i64: 256, 128>}, {pipeline_mode = #tpu.pipeline_mode<synchronous>, transform_indices = @transform_6, window_bounds = array<i64: 1, 128>}, {transform_indices = @transform_7, window_bounds = array<i64: 32, 128>}]} {
    %c0 = arith.constant 0 : index
    %c0_0 = arith.constant 0 : index
    %0 = vector.load %arg1[%c0, %c0_0] : memref<32x128xf32, #tpu.memory_space<vmem>>, vector<32x128xf32>
    %c0_1 = arith.constant 0 : index
    %c0_2 = arith.constant 0 : index
    %1 = vector.load %arg2[%c0_1, %c0_2] : memref<1x128xf32, #tpu.memory_space<vmem>>, vector<1x128xf32>
    %c0_3 = arith.constant 0 : index
    %c0_4 = arith.constant 0 : index
    %2 = vector.load %arg3[%c0_3, %c0_4] : memref<1x128xf32, #tpu.memory_space<vmem>>, vector<1x128xf32>
    %cst = arith.constant dense<0.000000e+00> : vector<32xf32>
    %3 = vector.multi_reduction <add>, %0, %cst [1] : vector<32x128xf32> to vector<32xf32>
    %4 = vector.shape_cast %3 : vector<32xf32> to vector<32x1xf32>
    %cst_5 = arith.constant 1.280000e+02 : f32
    %5 = vector.broadcast %cst_5 : f32 to vector<32x1xf32>
    %6 = arith.divf %4, %5 : vector<32x1xf32>
    %7 = vector.broadcast %6 : vector<32x1xf32> to vector<32x128xf32>
    %8 = arith.subf %0, %7 : vector<32x128xf32>
    %9 = arith.mulf %8, %8 : vector<32x128xf32>
    %cst_6 = arith.constant dense<0.000000e+00> : vector<32xf32>
    %10 = vector.multi_reduction <add>, %9, %cst_6 [1] : vector<32x128xf32> to vector<32xf32>
    %11 = vector.shape_cast %10 : vector<32xf32> to vector<32x1xf32>
    %cst_7 = arith.constant 1.280000e+02 : f32
    %12 = vector.broadcast %cst_7 : f32 to vector<32x1xf32>
    %13 = arith.divf %11, %12 : vector<32x1xf32>
    %cst_8 = arith.constant 9.99999996E-13 : f32
    %14 = vector.broadcast %cst_8 : f32 to vector<32x1xf32>
    %15 = arith.addf %13, %14 : vector<32x1xf32>
    %16 = math.rsqrt %15 : vector<32x1xf32>
    %17 = vector.broadcast %16 : vector<32x1xf32> to vector<32x128xf32>
    %18 = arith.mulf %8, %17 : vector<32x128xf32>
    %19 = vector.broadcast %1 : vector<1x128xf32> to vector<32x128xf32>
    %20 = arith.mulf %18, %19 : vector<32x128xf32>
    %21 = vector.broadcast %2 : vector<1x128xf32> to vector<32x128xf32>
    %22 = arith.addf %20, %21 : vector<32x128xf32>
    %23 = arith.truncf %22 : vector<32x128xf32> to vector<32x128xbf16>
    %c0_9 = arith.constant 0 : index
    %c0_10 = arith.constant 0 : index
    %24 = vector.load %arg4[%c0_9, %c0_10] : memref<128x256xbf16, #tpu.memory_space<vmem>>, vector<128x256xbf16>
    %cst_11 = arith.constant dense<0.000000e+00> : vector<32x256xf32>
    %25 = tpu.matmul %23, %24, %cst_11 {dimension_numbers = #tpu.dot_dimension_numbers<[1], [0], [0], [1], [0, 0, 1, 1], [], []>} : vector<32x128xbf16>, vector<128x256xbf16>, vector<32x256xf32> -> vector<32x256xf32>
    %c0_12 = arith.constant 0 : index
    %c0_13 = arith.constant 0 : index
    %26 = vector.load %arg5[%c0_12, %c0_13] : memref<1x256xf32, #tpu.memory_space<vmem>>, vector<1x256xf32>
    %27 = vector.broadcast %26 : vector<1x256xf32> to vector<32x256xf32>
    %28 = arith.addf %25, %27 : vector<32x256xf32>
    %cst_14 = arith.constant 5.000000e-01 : f32
    %29 = vector.broadcast %cst_14 : f32 to vector<32x256xf32>
    %30 = arith.mulf %29, %28 : vector<32x256xf32>
    %cst_15 = arith.constant 0.707106769 : f32
    %31 = vector.broadcast %cst_15 : f32 to vector<32x256xf32>
    %32 = arith.mulf %28, %31 : vector<32x256xf32>
    %33 = math.erf %32 : vector<32x256xf32>
    %cst_16 = arith.constant 1.000000e+00 : f32
    %34 = vector.broadcast %cst_16 : f32 to vector<32x256xf32>
    %35 = arith.addf %34, %33 : vector<32x256xf32>
    %36 = arith.mulf %30, %35 : vector<32x256xf32>
    %37 = arith.truncf %36 : vector<32x256xf32> to vector<32x256xbf16>
    %c0_17 = arith.constant 0 : index
    %c0_18 = arith.constant 0 : index
    %38 = vector.load %arg6[%c0_17, %c0_18] : memref<256x128xbf16, #tpu.memory_space<vmem>>, vector<256x128xbf16>
    %cst_19 = arith.constant dense<0.000000e+00> : vector<32x128xf32>
    %39 = tpu.matmul %37, %38, %cst_19 {dimension_numbers = #tpu.dot_dimension_numbers<[1], [0], [0], [1], [0, 0, 1, 1], [], []>} : vector<32x256xbf16>, vector<256x128xbf16>, vector<32x128xf32> -> vector<32x128xf32>
    %c0_20 = arith.constant 0 : index
    %c0_21 = arith.constant 0 : index
    %40 = vector.load %arg7[%c0_20, %c0_21] : memref<1x128xf32, #tpu.memory_space<vmem>>, vector<1x128xf32>
    %41 = vector.broadcast %40 : vector<1x128xf32> to vector<32x128xf32>
    %42 = arith.addf %39, %41 : vector<32x128xf32>
    %43 = arith.addf %0, %42 : vector<32x128xf32>
    %c0_22 = arith.constant 0 : index
    %c0_23 = arith.constant 0 : index
    %44 = vector.load %arg8[%c0_22, %c0_23] : memref<32x128xf32, #tpu.memory_space<vmem>>, vector<32x128xf32>
    tpu.vector_store %arg8[%c0_22, %c0_23], %43 {strides = array<i32>} : memref<32x128xf32, #tpu.memory_space<vmem>>, vector<32x128xf32>,
    return
  }
  func.func @transform_0(%arg0: i32) -> (i32, i32) {
    %c0_i32 = arith.constant 0 : i32
    %c0_i32_0 = arith.constant 0 : i32
    return %arg0, %c0_i32 : i32, i32
  }
  func.func @transform_1(%arg0: i32) -> (i32, i32) {
    %c0_i32 = arith.constant 0 : i32
    %c0_i32_0 = arith.constant 0 : i32
    %c0_i32_1 = arith.constant 0 : i32
    return %c0_i32, %c0_i32_0 : i32, i32
  }
  func.func @transform_2(%arg0: i32) -> (i32, i32) {
    %c0_i32 = arith.constant 0 : i32
    %c0_i32_0 = arith.constant 0 : i32
    %c0_i32_1 = arith.constant 0 : i32
    return %c0_i32, %c0_i32_0 : i32, i32
  }
  func.func @transform_3(%arg0: i32) -> (i32, i32) {
    %c0_i32 = arith.constant 0 : i32
    %c0_i32_0 = arith.constant 0 : i32
    %c0_i32_1 = arith.constant 0 : i32
    return %c0_i32, %c0_i32_0 : i32, i32
  }
  func.func @transform_4(%arg0: i32) -> (i32, i32) {
    %c0_i32 = arith.constant 0 : i32
    %c0_i32_0 = arith.constant 0 : i32
    %c0_i32_1 = arith.constant 0 : i32
    return %c0_i32, %c0_i32_0 : i32, i32
  }
  func.func @transform_5(%arg0: i32) -> (i32, i32) {
    %c0_i32 = arith.constant 0 : i32
    %c0_i32_0 = arith.constant 0 : i32
    %c0_i32_1 = arith.constant 0 : i32
    return %c0_i32, %c0_i32_0 : i32, i32
  }
  func.func @transform_6(%arg0: i32) -> (i32, i32) {
    %c0_i32 = arith.constant 0 : i32
    %c0_i32_0 = arith.constant 0 : i32
    %c0_i32_1 = arith.constant 0 : i32
    return %c0_i32, %c0_i32_0 : i32, i32
  }
  func.func @transform_7(%arg0: i32) -> (i32, i32) {
    %c0_i32 = arith.constant 0 : i32
    %c0_i32_0 = arith.constant 0 : i32
    return %arg0, %c0_i32 : i32, i32
  }
}

module attributes {stable_mosaic.version = 11 : i64} {
  func.func @_ffn_block_kernel(%arg0: i32, %arg1: memref<32x128xf32, #tpu.memory_space<vmem>>, %arg2: memref<1x128xf32, #tpu.memory_space<vmem>>, %arg3: memref<1x128xf32, #tpu.memory_space<vmem>>, %arg4: memref<128x256xbf16, #tpu.memory_space<vmem>>, %arg5: memref<1x256xf32, #tpu.memory_space<vmem>>, %arg6: memref<256x128xbf16, #tpu.memory_space<vmem>>, %arg7: memref<1x128xf32, #tpu.memory_space<vmem>>, %arg8: memref<32x128xf32, #tpu.memory_space<vmem>>) attributes {dimension_semantics = [#tpu.dimension_semantics<parallel>], iteration_bounds = array<i64: 1>, scalar_prefetch = 0 : i64, scratch_operands = 0 : i64, tpu.core_type = #tpu.core_type<tc>, window_params = [{transform_indices = @transform_0, window_bounds = array<i64: 32, 128>}, {pipeline_mode = #tpu.pipeline_mode<synchronous>, transform_indices = @transform_1, window_bounds = array<i64: 1, 128>}, {pipeline_mode = #tpu.pipeline_mode<synchronous>, transform_indices = @transform_2, window_bounds = array<i64: 1, 128>}, {pipeline_mode = #tpu.pipeline_mode<synchronous>, transform_indices = @transform_3, window_bounds = array<i64: 128, 256>}, {pipeline_mode = #tpu.pipeline_mode<synchronous>, transform_indices = @transform_4, window_bounds = array<i64: 1, 256>}, {pipeline_mode = #tpu.pipeline_mode<synchronous>, transform_indices = @transform_5, window_bounds = array<i64: 256, 128>}, {pipeline_mode = #tpu.pipeline_mode<synchronous>, transform_indices = @transform_6, window_bounds = array<i64: 1, 128>}, {transform_indices = @transform_7, window_bounds = array<i64: 32, 128>}]} {
    %c0 = arith.constant 0 : index
    %c0_0 = arith.constant 0 : index
    %0 = vector.load %arg1[%c0, %c0_0] : memref<32x128xf32, #tpu.memory_space<vmem>>, vector<32x128xf32>
    %c0_1 = arith.constant 0 : index
    %c0_2 = arith.constant 0 : index
    %1 = vector.load %arg2[%c0_1, %c0_2] : memref<1x128xf32, #tpu.memory_space<vmem>>, vector<1x128xf32>
    %c0_3 = arith.constant 0 : index
    %c0_4 = arith.constant 0 : index
    %2 = vector.load %arg3[%c0_3, %c0_4] : memref<1x128xf32, #tpu.memory_space<vmem>>, vector<1x128xf32>
    %cst = arith.constant dense<0.000000e+00> : vector<32xf32>
    %3 = vector.multi_reduction <add>, %0, %cst [1] : vector<32x128xf32> to vector<32xf32>
    %4 = vector.shape_cast %3 : vector<32xf32> to vector<32x1xf32>
    %cst_5 = arith.constant 1.280000e+02 : f32
    %5 = vector.broadcast %cst_5 : f32 to vector<32x1xf32>
    %6 = arith.divf %4, %5 : vector<32x1xf32>
    %7 = vector.broadcast %6 : vector<32x1xf32> to vector<32x128xf32>
    %8 = arith.subf %0, %7 : vector<32x128xf32>
    %9 = arith.mulf %8, %8 : vector<32x128xf32>
    %cst_6 = arith.constant dense<0.000000e+00> : vector<32xf32>
    %10 = vector.multi_reduction <add>, %9, %cst_6 [1] : vector<32x128xf32> to vector<32xf32>
    %11 = vector.shape_cast %10 : vector<32xf32> to vector<32x1xf32>
    %cst_7 = arith.constant 1.280000e+02 : f32
    %12 = vector.broadcast %cst_7 : f32 to vector<32x1xf32>
    %13 = arith.divf %11, %12 : vector<32x1xf32>
    %cst_8 = arith.constant 9.99999996E-13 : f32
    %14 = vector.broadcast %cst_8 : f32 to vector<32x1xf32>
    %15 = arith.addf %13, %14 : vector<32x1xf32>
    %16 = math.rsqrt %15 : vector<32x1xf32>
    %17 = vector.broadcast %16 : vector<32x1xf32> to vector<32x128xf32>
    %18 = arith.mulf %8, %17 : vector<32x128xf32>
    %19 = vector.broadcast %1 : vector<1x128xf32> to vector<32x128xf32>
    %20 = arith.mulf %18, %19 : vector<32x128xf32>
    %21 = vector.broadcast %2 : vector<1x128xf32> to vector<32x128xf32>
    %22 = arith.addf %20, %21 : vector<32x128xf32>
    %23 = arith.truncf %22 : vector<32x128xf32> to vector<32x128xbf16>
    %c0_9 = arith.constant 0 : index
    %c0_10 = arith.constant 0 : index
    %24 = vector.load %arg4[%c0_9, %c0_10] : memref<128x256xbf16, #tpu.memory_space<vmem>>, vector<128x256xbf16>
    %cst_11 = arith.constant dense<0.000000e+00> : vector<32x256xf32>
    %25 = tpu.matmul %23, %24, %cst_11 {dimension_numbers = #tpu.dot_dimension_numbers<[1], [0], [0], [1], [0, 0, 1, 1], [], []>} : vector<32x128xbf16>, vector<128x256xbf16>, vector<32x256xf32> -> vector<32x256xf32>
    %c0_12 = arith.constant 0 : index
    %c0_13 = arith.constant 0 : index
    %26 = vector.load %arg5[%c0_12, %c0_13] : memref<1x256xf32, #tpu.memory_space<vmem>>, vector<1x256xf32>
    %27 = vector.broadcast %26 : vector<1x256xf32> to vector<32x256xf32>
    %28 = arith.addf %25, %27 : vector<32x256xf32>
    %cst_14 = arith.constant 5.000000e-01 : f32
    %29 = vector.broadcast %cst_14 : f32 to vector<32x256xf32>
    %30 = arith.mulf %29, %28 : vector<32x256xf32>
    %cst_15 = arith.constant 0.707106769 : f32
    %31 = vector.broadcast %cst_15 : f32 to vector<32x256xf32>
    %32 = arith.mulf %28, %31 : vector<32x256xf32>
    %33 = math.erf %32 : vector<32x256xf32>
    %cst_16 = arith.constant 1.000000e+00 : f32
    %34 = vector.broadcast %cst_16 : f32 to vector<32x256xf32>
    %35 = arith.addf %34, %33 : vector<32x256xf32>
    %36 = arith.mulf %30, %35 : vector<32x256xf32>
    %37 = arith.truncf %36 : vector<32x256xf32> to vector<32x256xbf16>
    %c0_17 = arith.constant 0 : index
    %c0_18 = arith.constant 0 : index
    %38 = vector.load %arg6[%c0_17, %c0_18] : memref<256x128xbf16, #tpu.memory_space<vmem>>, vector<256x128xbf16>
    %cst_19 = arith.constant dense<0.000000e+00> : vector<32x128xf32>
    %39 = tpu.matmul %37, %38, %cst_19 {dimension_numbers = #tpu.dot_dimension_numbers<[1], [0], [0], [1], [0, 0, 1, 1], [], []>} : vector<32x256xbf16>, vector<256x128xbf16>, vector<32x128xf32> -> vector<32x128xf32>
    %c0_20 = arith.constant 0 : index
    %c0_21 = arith.constant 0 : index
    %40 = vector.load %arg7[%c0_20, %c0_21] : memref<1x128xf32, #tpu.memory_space<vmem>>, vector<1x128xf32>
    %41 = vector.broadcast %40 : vector<1x128xf32> to vector<32x128xf32>
    %42 = arith.addf %39, %41 : vector<32x128xf32>
    %43 = arith.addf %0, %42 : vector<32x128xf32>
    %c0_22 = arith.constant 0 : index
    %c0_23 = arith.constant 0 : index
    %44 = vector.load %arg8[%c0_22, %c0_23] : memref<32x128xf32, #tpu.memory_space<vmem>>, vector<32x128xf32>
    tpu.vector_store %arg8[%c0_22, %c0_23], %43 {strides = array<i32>} : memref<32x128xf32, #tpu.memory_space<vmem>>, vector<32x128xf32>,
    return
  }
  func.func @transform_0(%arg0: i32) -> (i32, i32) {
    %c0_i32 = arith.constant 0 : i32
    %c0_i32_0 = arith.constant 0 : i32
    return %arg0, %c0_i32 : i32, i32
  }
  func.func @transform_1(%arg0: i32) -> (i32, i32) {
    %c0_i32 = arith.constant 0 : i32
    %c0_i32_0 = arith.constant 0 : i32
    %c0_i32_1 = arith.constant 0 : i32
    return %c0_i32, %c0_i32_0 : i32, i32
  }
  func.func @transform_2(%arg0: i32) -> (i32, i32) {
    %c0_i32 = arith.constant 0 : i32
    %c0_i32_0 = arith.constant 0 : i32
    %c0_i32_1 = arith.constant 0 : i32
    return %c0_i32, %c0_i32_0 : i32, i32
  }
  func.func @transform_3(%arg0: i32) -> (i32, i32) {
    %c0_i32 = arith.constant 0 : i32
    %c0_i32_0 = arith.constant 0 : i32
    %c0_i32_1 = arith.constant 0 : i32
    return %c0_i32, %c0_i32_0 : i32, i32
  }
  func.func @transform_4(%arg0: i32) -> (i32, i32) {
    %c0_i32 = arith.constant 0 : i32
    %c0_i32_0 = arith.constant 0 : i32
    %c0_i32_1 = arith.constant 0 : i32
    return %c0_i32, %c0_i32_0 : i32, i32
  }
  func.func @transform_5(%arg0: i32) -> (i32, i32) {
    %c0_i32 = arith.constant 0 : i32
    %c0_i32_0 = arith.constant 0 : i32
    %c0_i32_1 = arith.constant 0 : i32
    return %c0_i32, %c0_i32_0 : i32, i32
  }
  func.func @transform_6(%arg0: i32) -> (i32, i32) {
    %c0_i32 = arith.constant 0 : i32
    %c0_i32_0 = arith.constant 0 : i32
    %c0_i32_1 = arith.constant 0 : i32
    return %c0_i32, %c0_i32_0 : i32, i32
  }
  func.func @transform_7(%arg0: i32) -> (i32, i32) {
    %c0_i32 = arith.constant 0 : i32
    %c0_i32_0 = arith.constant 0 : i32
    return %arg0, %c0_i32 : i32, i32
  }
}

module attributes {stable_mosaic.version = 11 : i64} {
  func.func @_final_kernel(%arg0: i32, %arg1: memref<32x128xf32, #tpu.memory_space<vmem>>, %arg2: memref<1x128xf32, #tpu.memory_space<vmem>>, %arg3: memref<1x128xf32, #tpu.memory_space<vmem>>, %arg4: memref<128x128xbf16, #tpu.memory_space<vmem>>, %arg5: memref<1x128xf32, #tpu.memory_space<vmem>>, %arg6: memref<32x128xf32, #tpu.memory_space<vmem>>) attributes {dimension_semantics = [#tpu.dimension_semantics<parallel>], iteration_bounds = array<i64: 1>, scalar_prefetch = 0 : i64, scratch_operands = 0 : i64, tpu.core_type = #tpu.core_type<tc>, window_params = [{transform_indices = @transform_0, window_bounds = array<i64: 32, 128>}, {pipeline_mode = #tpu.pipeline_mode<synchronous>, transform_indices = @transform_1, window_bounds = array<i64: 1, 128>}, {pipeline_mode = #tpu.pipeline_mode<synchronous>, transform_indices = @transform_2, window_bounds = array<i64: 1, 128>}, {pipeline_mode = #tpu.pipeline_mode<synchronous>, transform_indices = @transform_3, window_bounds = array<i64: 128, 128>}, {pipeline_mode = #tpu.pipeline_mode<synchronous>, transform_indices = @transform_4, window_bounds = array<i64: 1, 128>}, {transform_indices = @transform_5, window_bounds = array<i64: 32, 128>}]} {
    %c0 = arith.constant 0 : index
    %c0_0 = arith.constant 0 : index
    %0 = vector.load %arg1[%c0, %c0_0] : memref<32x128xf32, #tpu.memory_space<vmem>>, vector<32x128xf32>
    %c0_1 = arith.constant 0 : index
    %c0_2 = arith.constant 0 : index
    %1 = vector.load %arg2[%c0_1, %c0_2] : memref<1x128xf32, #tpu.memory_space<vmem>>, vector<1x128xf32>
    %c0_3 = arith.constant 0 : index
    %c0_4 = arith.constant 0 : index
    %2 = vector.load %arg3[%c0_3, %c0_4] : memref<1x128xf32, #tpu.memory_space<vmem>>, vector<1x128xf32>
    %cst = arith.constant dense<0.000000e+00> : vector<32xf32>
    %3 = vector.multi_reduction <add>, %0, %cst [1] : vector<32x128xf32> to vector<32xf32>
    %4 = vector.shape_cast %3 : vector<32xf32> to vector<32x1xf32>
    %cst_5 = arith.constant 1.280000e+02 : f32
    %5 = vector.broadcast %cst_5 : f32 to vector<32x1xf32>
    %6 = arith.divf %4, %5 : vector<32x1xf32>
    %7 = vector.broadcast %6 : vector<32x1xf32> to vector<32x128xf32>
    %8 = arith.subf %0, %7 : vector<32x128xf32>
    %9 = arith.mulf %8, %8 : vector<32x128xf32>
    %cst_6 = arith.constant dense<0.000000e+00> : vector<32xf32>
    %10 = vector.multi_reduction <add>, %9, %cst_6 [1] : vector<32x128xf32> to vector<32xf32>
    %11 = vector.shape_cast %10 : vector<32xf32> to vector<32x1xf32>
    %cst_7 = arith.constant 1.280000e+02 : f32
    %12 = vector.broadcast %cst_7 : f32 to vector<32x1xf32>
    %13 = arith.divf %11, %12 : vector<32x1xf32>
    %cst_8 = arith.constant 9.99999996E-13 : f32
    %14 = vector.broadcast %cst_8 : f32 to vector<32x1xf32>
    %15 = arith.addf %13, %14 : vector<32x1xf32>
    %16 = math.rsqrt %15 : vector<32x1xf32>
    %17 = vector.broadcast %16 : vector<32x1xf32> to vector<32x128xf32>
    %18 = arith.mulf %8, %17 : vector<32x128xf32>
    %19 = vector.broadcast %1 : vector<1x128xf32> to vector<32x128xf32>
    %20 = arith.mulf %18, %19 : vector<32x128xf32>
    %21 = vector.broadcast %2 : vector<1x128xf32> to vector<32x128xf32>
    %22 = arith.addf %20, %21 : vector<32x128xf32>
    %23 = arith.truncf %22 : vector<32x128xf32> to vector<32x128xbf16>
    %c0_9 = arith.constant 0 : index
    %c0_10 = arith.constant 0 : index
    %24 = vector.load %arg4[%c0_9, %c0_10] : memref<128x128xbf16, #tpu.memory_space<vmem>>, vector<128x128xbf16>
    %cst_11 = arith.constant dense<0.000000e+00> : vector<32x128xf32>
    %25 = tpu.matmul %23, %24, %cst_11 {dimension_numbers = #tpu.dot_dimension_numbers<[1], [0], [0], [1], [0, 0, 1, 1], [], []>} : vector<32x128xbf16>, vector<128x128xbf16>, vector<32x128xf32> -> vector<32x128xf32>
    %c0_12 = arith.constant 0 : index
    %c0_13 = arith.constant 0 : index
    %26 = vector.load %arg5[%c0_12, %c0_13] : memref<1x128xf32, #tpu.memory_space<vmem>>, vector<1x128xf32>
    %27 = vector.broadcast %26 : vector<1x128xf32> to vector<32x128xf32>
    %28 = arith.addf %25, %27 : vector<32x128xf32>
    %c0_14 = arith.constant 0 : index
    %c0_15 = arith.constant 0 : index
    %29 = vector.load %arg6[%c0_14, %c0_15] : memref<32x128xf32, #tpu.memory_space<vmem>>, vector<32x128xf32>
    tpu.vector_store %arg6[%c0_14, %c0_15], %28 {strides = array<i32>} : memref<32x128xf32, #tpu.memory_space<vmem>>, vector<32x128xf32>,
    return
  }
  func.func @transform_0(%arg0: i32) -> (i32, i32) {
    %c0_i32 = arith.constant 0 : i32
    %c0_i32_0 = arith.constant 0 : i32
    return %arg0, %c0_i32 : i32, i32
  }
  func.func @transform_1(%arg0: i32) -> (i32, i32) {
    %c0_i32 = arith.constant 0 : i32
    %c0_i32_0 = arith.constant 0 : i32
    %c0_i32_1 = arith.constant 0 : i32
    return %c0_i32, %c0_i32_0 : i32, i32
  }
  func.func @transform_2(%arg0: i32) -> (i32, i32) {
    %c0_i32 = arith.constant 0 : i32
    %c0_i32_0 = arith.constant 0 : i32
    %c0_i32_1 = arith.constant 0 : i32
    return %c0_i32, %c0_i32_0 : i32, i32
  }
  func.func @transform_3(%arg0: i32) -> (i32, i32) {
    %c0_i32 = arith.constant 0 : i32
    %c0_i32_0 = arith.constant 0 : i32
    %c0_i32_1 = arith.constant 0 : i32
    return %c0_i32, %c0_i32_0 : i32, i32
  }
  func.func @transform_4(%arg0: i32) -> (i32, i32) {
    %c0_i32 = arith.constant 0 : i32
    %c0_i32_0 = arith.constant 0 : i32
    %c0_i32_1 = arith.constant 0 : i32
    return %c0_i32, %c0_i32_0 : i32, i32
  }
  func.func @transform_5(%arg0: i32) -> (i32, i32) {
    %c0_i32 = arith.constant 0 : i32
    %c0_i32_0 = arith.constant 0 : i32
    return %arg0, %c0_i32 : i32, i32
  }
}

</mosaic_0001>

<llo_original>
// kernel: pallas_forward.6
$region0: #{pallas_forward.6}
  #allocation0 [shape = 'u32[]', space=smem, size = 0x4, offset = 0x4, fixed_abs, tag = 'smem constant byte address 0x4 - core index']
  #allocation1 [shape = 'u32[72,128]{1,0:T(1,128)}', space=vmem, size = 0x9000, scoped, tag = 'internal scratch']
  %s0 = inlined_call_operand.vmem [shape: f32[32,128], index: 0, kind: input, shape index: {}]
  %s1 = inlined_call_operand.vmem [shape: f32[1,128], index: 1, kind: input, shape index: {}]
  %s2 = inlined_call_operand.vmem [shape: f32[1,128], index: 2, kind: input, shape index: {}]
  %s3 = inlined_call_operand.vmem [shape: bf16[128,256], index: 3, kind: input, shape index: {}]
  %s4 = inlined_call_operand.vmem [shape: f32[1,256], index: 4, kind: input, shape index: {}]
  %s5 = inlined_call_operand.vmem [shape: bf16[256,128], index: 5, kind: input, shape index: {}]
  %s6 = inlined_call_operand.vmem [shape: f32[1,128], index: 6, kind: input, shape index: {}]
  %s7 = inlined_call_operand.vmem [shape: f32[32,128], index: 7, kind: output, shape index: {}]
  %s8 = sld [smem:[#allocation0]]
  $region38: #{pallas_forward.6} parent=0
    _
  %s10 = ssub.s32 1, %s8
  %s11 = scalar_select 0, %s10, %s8
  // Predicated region
  $region2: #{pallas_forward.6} parent=0 // pred_check
    _
  $region3: #{pallas_forward.6} parent=0 // pred_check_branch
    %13 = sbr.rel (0) target = $region5
  $region4: #{pallas_forward.6} parent=0 // pred_region
    _
  $region5: #{pallas_forward.6} parent=0 // pred_fallthru
    _
  // Predicated region
  $region6: #{pallas_forward.6} parent=0 // pred_check
    _
  $region7: #{pallas_forward.6} parent=0 // pred_check_branch
    %15 = sbr.rel (0) target = $region9
  $region8: #{pallas_forward.6} parent=0 // pred_region
    _
  $region9: #{pallas_forward.6} parent=0 // pred_fallthru
    _
  // Predicated region
  $region10: #{pallas_forward.6} parent=0 // pred_check
    _
  $region11: #{pallas_forward.6} parent=0 // pred_check_branch
    %17 = sbr.rel (0) target = $region13
  $region12: #{pallas_forward.6} parent=0 // pred_region
    _
  $region13: #{pallas_forward.6} parent=0 // pred_fallthru
    _
  // Predicated region
  $region14: #{pallas_forward.6} parent=0 // pred_check
    _
  $region15: #{pallas_forward.6} parent=0 // pred_check_branch
    %19 = sbr.rel (0) target = $region17
  $region16: #{pallas_forward.6} parent=0 // pred_region
    _
  $region17: #{pallas_forward.6} parent=0 // pred_fallthru
    _
  // Predicated region
  $region18: #{pallas_forward.6} parent=0 // pred_check
    _
  $region19: #{pallas_forward.6} parent=0 // pred_check_branch
    %21 = sbr.rel (0) target = $region21
  $region20: #{pallas_forward.6} parent=0 // pred_region
    _
  $region21: #{pallas_forward.6} parent=0 // pred_fallthru
    _
  // Predicated region
  $region22: #{pallas_forward.6} parent=0 // pred_check
    _
  $region23: #{pallas_forward.6} parent=0 // pred_check_branch
    %23 = sbr.rel (0) target = $region25
  $region24: #{pallas_forward.6} parent=0 // pred_region
    _
  $region25: #{pallas_forward.6} parent=0 // pred_fallthru
    _
  // Predicated region
  $region26: #{pallas_forward.6} parent=0 // pred_check
    _
  $region27: #{pallas_forward.6} parent=0 // pred_check_branch
    %25 = sbr.rel (0) target = $region29
  $region28: #{pallas_forward.6} parent=0 // pred_region
    _
  $region29: #{pallas_forward.6} parent=0 // pred_fallthru
    _
  %v26 = vld [vmem:[%s0] sm:$0xff]
  %v27 = vld [vmem:[%s0 + $0x8] sm:$0xff]
  %v28 = vld [vmem:[%s0 + $0x10] sm:$0xff]
  %v29 = vld [vmem:[%s0 + $0x18] sm:$0xff]
  %v30 = vld [vmem:[%s1] sm:$0x1]
  %v31 = vld [vmem:[%s2] sm:$0x1]
  %32 = vadd.xlane.f32.xlu0 %v26
  %v33 = vpop.xlane.xlu0 %32
  %34 = vadd.xlane.f32.xlu0 %v27
  %v35 = vpop.xlane.xlu0 %34
  %36 = vadd.xlane.f32.xlu0 %v28
  %v37 = vpop.xlane.xlu0 %36
  %38 = vadd.xlane.f32.xlu0 %v29
  %v39 = vpop.xlane.xlu0 %38
  %v40 = vrcp.pop 128.0
  %v41 = vmul.f32 128.0, %v40
  %v42 = vsub.f32 1.0, %v41
  %v43 = vmul.f32 %v40, %v42
  %v44 = vadd.f32 %v40, %v43
  %vm45 = vweird.f32 %v40
  %v46 = vsel %vm45, %v40, %v44
  %v47 = vmul.f32 %v33, %v46
  %v48 = vmul.f32 %v35, %v46
  %v49 = vmul.f32 %v37, %v46
  %v50 = vmul.f32 %v39, %v46
  %v51 = vsub.f32 %v26, %v47
  %v52 = vsub.f32 %v27, %v48
  %v53 = vsub.f32 %v28, %v49
  %v54 = vsub.f32 %v29, %v50
  %v55 = vmul.f32 %v51, %v51
  %v56 = vmul.f32 %v52, %v52
  %v57 = vmul.f32 %v53, %v53
  %v58 = vmul.f32 %v54, %v54
  %59 = vadd.xlane.f32.xlu0 %v55
  %v60 = vpop.xlane.xlu0 %59
  %61 = vadd.xlane.f32.xlu0 %v56
  %v62 = vpop.xlane.xlu0 %61
  %63 = vadd.xlane.f32.xlu0 %v57
  %v64 = vpop.xlane.xlu0 %63
  %65 = vadd.xlane.f32.xlu0 %v58
  %v66 = vpop.xlane.xlu0 %65
  %v67 = vmul.f32 %v60, %v46
  %v68 = vmul.f32 %v62, %v46
  %v69 = vmul.f32 %v64, %v46
  %v70 = vmul.f32 %v66, %v46
  %v71 = vadd.f32 %v67, 1e-12
  %v72 = vadd.f32 %v68, 1e-12
  %v73 = vadd.f32 %v69, 1e-12
  %v74 = vadd.f32 %v70, 1e-12
  %v75 = vrsqrt.pop %v71
  %v76 = vmul.f32 %v75, %v71
  %v77 = vmul.f32 %v76, %v75
  %v78 = vmul.f32 0.5, %v77
  %v79 = vsub.f32 1.5, %v78
  %v80 = vmul.f32 %v75, %v79
  %vm81 = vweird.f32 %v71
  %vm82 = vweird.f32 %v75
  %vm83 = vmor %vm81, %vm82
  %v84 = vsel %vm83, %v75, %v80
  %v85 = vrsqrt.pop %v72
  %v86 = vmul.f32 %v85, %v72
  %v87 = vmul.f32 %v86, %v85
  %v88 = vmul.f32 0.5, %v87
  %v89 = vsub.f32 1.5, %v88
  %v90 = vmul.f32 %v85, %v89
  %vm91 = vweird.f32 %v72
  %vm92 = vweird.f32 %v85
  %vm93 = vmor %vm91, %vm92
  %v94 = vsel %vm93, %v85, %v90
  %v95 = vrsqrt.pop %v73
  %v96 = vmul.f32 %v95, %v73
  %v97 = vmul.f32 %v96, %v95
  %v98 = vmul.f32 0.5, %v97
  %v99 = vsub.f32 1.5, %v98
  %v100 = vmul.f32 %v95, %v99
  %vm101 = vweird.f32 %v73
  %vm102 = vweird.f32 %v95
  %vm103 = vmor %vm101, %vm102
  %v104 = vsel %vm103, %v95, %v100
  %v105 = vrsqrt.pop %v74
  %v106 = vmul.f32 %v105, %v74
  %v107 = vmul.f32 %v106, %v105
  %v108 = vmul.f32 0.5, %v107
  %v109 = vsub.f32 1.5, %v108
  %v110 = vmul.f32 %v105, %v109
  %vm111 = vweird.f32 %v74
  %vm112 = vweird.f32 %v105
  %vm113 = vmor %vm111, %vm112
  %v114 = vsel %vm113, %v105, %v110
  %v115 = vmul.f32 %v51, %v84
  %v116 = vmul.f32 %v52, %v94
  %v117 = vmul.f32 %v53, %v104
  %v118 = vmul.f32 %v54, %v114
  %v120 = vperm.slane %v30, 0
  %v122 = vmul.f32 %v115, %v120
  %v123 = vmul.f32 %v116, %v120
  %v124 = vmul.f32 %v117, %v120
  %v125 = vmul.f32 %v118, %v120
  %v127 = vperm.slane %v31, 0
  %v129 = vadd.f32 %v122, %v127
  %v130 = vadd.f32 %v123, %v127
  %v131 = vadd.f32 %v124, %v127
  %v132 = vadd.f32 %v125, %v127
  %v133 = vpack.c.bf16 %v130, %v129
  %v134 = vpack.c.bf16 %v132, %v131
  %v135 = vld [vmem:[%s3] sm:$0xff]
  %v136 = vld [vmem:[%s3 + $0x8] sm:$0xff]
  %v137 = vld [vmem:[%s3 + $0x10] sm:$0xff]
  %v138 = vld [vmem:[%s3 + $0x18] sm:$0xff]
  %v139 = vld [vmem:[%s3 + $0x20] sm:$0xff]
  %v140 = vld [vmem:[%s3 + $0x28] sm:$0xff]
  %v141 = vld [vmem:[%s3 + $0x30] sm:$0xff]
  %v142 = vld [vmem:[%s3 + $0x38] sm:$0xff]
  %v143 = vld [vmem:[%s3 + $0x40] sm:$0xff]
  %v144 = vld [vmem:[%s3 + $0x48] sm:$0xff]
  %v145 = vld [vmem:[%s3 + $0x50] sm:$0xff]
  %v146 = vld [vmem:[%s3 + $0x58] sm:$0xff]
  %v147 = vld [vmem:[%s3 + $0x60] sm:$0xff]
  %v148 = vld [vmem:[%s3 + $0x68] sm:$0xff]
  %v149 = vld [vmem:[%s3 + $0x70] sm:$0xff]
  %v150 = vld [vmem:[%s3 + $0x78] sm:$0xff]
  %v151 = vld [vmem:[%s4] sm:$0x3]
  %v153 = vperm.slane %v151, 0
  %v154 = vperm.slane %v151, 1
  %v173 = vunpack.c.l.b16 %v135
  %v174 = vunpack.c.h.b16 %v135
  %v175 = vunpack.c.l.b16 %v136
  %v176 = vunpack.c.h.b16 %v136
  %v177 = vunpack.c.l.b16 %v137
  %v178 = vunpack.c.h.b16 %v137
  %v179 = vunpack.c.l.b16 %v138
  %v180 = vunpack.c.h.b16 %v138
  %v181 = vunpack.c.l.b16 %v139
  %v182 = vunpack.c.h.b16 %v139
  %v183 = vunpack.c.l.b16 %v140
  %v184 = vunpack.c.h.b16 %v140
  %v185 = vunpack.c.l.b16 %v141
  %v186 = vunpack.c.h.b16 %v141
  %v187 = vunpack.c.l.b16 %v142
  %v188 = vunpack.c.h.b16 %v142
  %v189 = vunpack.c.l.b16 %v143
  %v190 = vunpack.c.h.b16 %v143
  %v191 = vunpack.c.l.b16 %v144
  %v192 = vunpack.c.h.b16 %v144
  %v193 = vunpack.c.l.b16 %v145
  %v194 = vunpack.c.h.b16 %v145
  %v195 = vunpack.c.l.b16 %v146
  %v196 = vunpack.c.h.b16 %v146
  %v197 = vunpack.c.l.b16 %v147
  %v198 = vunpack.c.h.b16 %v147
  %v199 = vunpack.c.l.b16 %v148
  %v200 = vunpack.c.h.b16 %v148
  %v201 = vunpack.c.l.b16 %v149
  %v202 = vunpack.c.h.b16 %v149
  %v203 = vunpack.c.l.b16 %v150
  %v204 = vunpack.c.h.b16 %v150
  %v205 = vpack.c.b16 %v175, %v173
  %v206 = vpack.c.b16 %v176, %v174
  %v207 = vpack.c.b16 %v179, %v177
  %v208 = vpack.c.b16 %v180, %v178
  %v209 = vpack.c.b16 %v183, %v181
  %v210 = vpack.c.b16 %v184, %v182
  %v211 = vpack.c.b16 %v187, %v185
  %v212 = vpack.c.b16 %v188, %v186
  %v213 = vpack.c.b16 %v191, %v189
  %v214 = vpack.c.b16 %v192, %v190
  %v215 = vpack.c.b16 %v195, %v193
  %v216 = vpack.c.b16 %v196, %v194
  %v217 = vpack.c.b16 %v199, %v197
  %v218 = vpack.c.b16 %v200, %v198
  %v219 = vpack.c.b16 %v203, %v201
  %v220 = vpack.c.b16 %v204, %v202
  %237 = vmatpush.bf16.msra.mxu0 %v219
  %238 = vmatpush.bf16.msra.mxu0 %v217
  %239 = vmatpush.bf16.msra.mxu0 %v215
  %240 = vmatpush.bf16.msra.mxu0 %v213
  %241 = vmatpush.bf16.msra.mxu0 %v211
  %242 = vmatpush.bf16.msra.mxu0 %v209
  %243 = vmatpush.bf16.msra.mxu0 %v207
  %244 = vmatpush.bf16.msra.mxu0 %v205
  %245 = vmatmul.bf16.gmra.mxu0 %v133
  %v246 = vpop.f32.mrf.mxu0
  %v247 = vadd.f32 %v153, %v246
  %v248 = vpop.f32.mrf.mxu0
  %v249 = vadd.f32 %v153, %v248
  %250 = vmatmul.bf16.gmra.mxu0 %v134
  %v251 = vpop.f32.mrf.mxu0
  %v252 = vadd.f32 %v153, %v251
  %v253 = vpop.f32.mrf.mxu0
  %v254 = vadd.f32 %v153, %v253
  %255 = vdwg.mxu0
  %256 = vmatpush.bf16.msra.mxu0 %v220
  %257 = vmatpush.bf16.msra.mxu0 %v218
  %258 = vmatpush.bf16.msra.mxu0 %v216
  %259 = vmatpush.bf16.msra.mxu0 %v214
  %260 = vmatpush.bf16.msra.mxu0 %v212
  %261 = vmatpush.bf16.msra.mxu0 %v210
  %262 = vmatpush.bf16.msra.mxu0 %v208
  %263 = vmatpush.bf16.msra.mxu0 %v206
  %264 = vmatmul.bf16.gmra.mxu0 %v133
  %v265 = vpop.f32.mrf.mxu0
  %v266 = vadd.f32 %v154, %v265
  %v267 = vpop.f32.mrf.mxu0
  %v268 = vadd.f32 %v154, %v267
  %269 = vmatmul.bf16.gmra.mxu0 %v134
  %v270 = vpop.f32.mrf.mxu0
  %v271 = vadd.f32 %v154, %v270
  %v272 = vpop.f32.mrf.mxu0
  %v273 = vadd.f32 %v154, %v272
  %274 = vdwg.mxu0
  %v275 = vmul.f32 %v247, 0.5
  %v276 = vmul.f32 %v266, 0.5
  %v277 = vmul.f32 %v249, 0.5
  %v278 = vmul.f32 %v268, 0.5
  %v279 = vmul.f32 %v252, 0.5
  %v280 = vmul.f32 %v271, 0.5
  %v281 = vmul.f32 %v254, 0.5
  %v282 = vmul.f32 %v273, 0.5
  %v283 = vmul.f32 %v247, 0.70710677
  %v284 = vmul.f32 %v266, 0.70710677
  %v285 = vmul.f32 %v249, 0.70710677
  %v286 = vmul.f32 %v268, 0.70710677
  %v287 = vmul.f32 %v252, 0.70710677
  %v288 = vmul.f32 %v271, 0.70710677
  %v289 = vmul.f32 %v254, 0.70710677
  %v290 = vmul.f32 %v273, 0.70710677
  %v291 = vmul.f32 %v283, %v283
  %v292 = vmin.f32 16.0, %v291
  %v293 = vmul.f32 %v292, 2.1237322e-06
  %v294 = vadd.f32 %v293, 0.00028619796
  %v295 = vmul.f32 %v292, %v294
  %v296 = vadd.f32 %v295, 0.0036580483
  %v297 = vmul.f32 %v292, %v296
  %v298 = vadd.f32 %v297, 0.05243302
  %v299 = vmul.f32 %v292, %v298
  %v300 = vadd.f32 %v299, 0.18741608
  %v301 = vmul.f32 %v292, %v300
  %v302 = vadd.f32 %v301, 1.1283791
  %v303 = vmul.f32 %v283, %v302
  %v304 = vmul.f32 %v292, 3.8918573e-05
  %v305 = vadd.f32 %v304, 0.001143296
  %v306 = vmul.f32 %v292, %v305
  %v307 = vadd.f32 %v306, 0.014752088
  %v308 = vmul.f32 %v292, %v307
  %v309 = vadd.f32 %v308, 0.112945676
  %v310 = vmul.f32 %v292, %v309
  %v311 = vadd.f32 %v310, 0.4994258
  %v312 = vmul.f32 %v292, %v311
  %v313 = vadd.f32 %v312, 1.0
  %v314 = vrcp.pop %v313
  %v315 = vmul.f32 %v313, %v314
  %v316 = vsub.f32 1.0, %v315
  %v317 = vmul.f32 %v314, %v316
  %v318 = vadd.f32 %v314, %v317
  %vm319 = vweird.f32 %v313
  %vm320 = vweird.f32 %v314
  %vm321 = vmor %vm319, %vm320
  %v322 = vsel %vm321, %v314, %v318
  %v323 = vand.u32 2147483647, %v313
  %vm324 = vcmp.eq.f32.partialorder %v323, 8.507059e+37
  %v325 = vand.u32 %v313, 2147483648
  %v326 = vor.u32 1.1754944e-38, %v325
  %v327 = vsel %vm324, %v326, %v322
  %v328 = vmul.f32 %v303, %v327
  %v329 = vmin.f32 %v328, 1.0
  %v330 = vmax.f32 %v329, -1.0
  %v331 = vmul.f32 %v284, %v284
  %v332 = vmin.f32 16.0, %v331
  %v333 = vmul.f32 %v332, 2.1237322e-06
  %v334 = vadd.f32 %v333, 0.00028619796
  %v335 = vmul.f32 %v332, %v334
  %v336 = vadd.f32 %v335, 0.0036580483
  %v337 = vmul.f32 %v332, %v336
  %v338 = vadd.f32 %v337, 0.05243302
  %v339 = vmul.f32 %v332, %v338
  %v340 = vadd.f32 %v339, 0.18741608
  %v341 = vmul.f32 %v332, %v340
  %v342 = vadd.f32 %v341, 1.1283791
  %v343 = vmul.f32 %v284, %v342
  %v344 = vmul.f32 %v332, 3.8918573e-05
  %v345 = vadd.f32 %v344, 0.001143296
  %v346 = vmul.f32 %v332, %v345
  %v347 = vadd.f32 %v346, 0.014752088
  %v348 = vmul.f32 %v332, %v347
  %v349 = vadd.f32 %v348, 0.112945676
  %v350 = vmul.f32 %v332, %v349
  %v351 = vadd.f32 %v350, 0.4994258
  %v352 = vmul.f32 %v332, %v351
  %v353 = vadd.f32 %v352, 1.0
  %v354 = vrcp.pop %v353
  %v355 = vmul.f32 %v353, %v354
  %v356 = vsub.f32 1.0, %v355
  %v357 = vmul.f32 %v354, %v356
  %v358 = vadd.f32 %v354, %v357
  %vm359 = vweird.f32 %v353
  %vm360 = vweird.f32 %v354
  %vm361 = vmor %vm359, %vm360
  %v362 = vsel %vm361, %v354, %v358
  %v363 = vand.u32 2147483647, %v353
  %vm364 = vcmp.eq.f32.partialorder %v363, 8.507059e+37
  %v365 = vand.u32 %v353, 2147483648
  %v366 = vor.u32 1.1754944e-38, %v365
  %v367 = vsel %vm364, %v366, %v362
  %v368 = vmul.f32 %v343, %v367
  %v369 = vmin.f32 %v368, 1.0
  %v370 = vmax.f32 %v369, -1.0
  %v371 = vmul.f32 %v285, %v285
  %v372 = vmin.f32 16.0, %v371
  %v373 = vmul.f32 %v372, 2.1237322e-06
  %v374 = vadd.f32 %v373, 0.00028619796
  %v375 = vmul.f32 %v372, %v374
  %v376 = vadd.f32 %v375, 0.0036580483
  %v377 = vmul.f32 %v372, %v376
  %v378 = vadd.f32 %v377, 0.05243302
  %v379 = vmul.f32 %v372, %v378
  %v380 = vadd.f32 %v379, 0.18741608
  %v381 = vmul.f32 %v372, %v380
  %v382 = vadd.f32 %v381, 1.1283791
  %v383 = vmul.f32 %v285, %v382
  %v384 = vmul.f32 %v372, 3.8918573e-05
  %v385 = vadd.f32 %v384, 0.001143296
  %v386 = vmul.f32 %v372, %v385
  %v387 = vadd.f32 %v386, 0.014752088
  %v388 = vmul.f32 %v372, %v387
  %v389 = vadd.f32 %v388, 0.112945676
  %v390 = vmul.f32 %v372, %v389
  %v391 = vadd.f32 %v390, 0.4994258
  %v392 = vmul.f32 %v372, %v391
  %v393 = vadd.f32 %v392, 1.0
  %v394 = vrcp.pop %v393
  %v395 = vmul.f32 %v393, %v394
  %v396 = vsub.f32 1.0, %v395
  %v397 = vmul.f32 %v394, %v396
  %v398 = vadd.f32 %v394, %v397
  %vm399 = vweird.f32 %v393
  %vm400 = vweird.f32 %v394
  %vm401 = vmor %vm399, %vm400
  %v402 = vsel %vm401, %v394, %v398
  %v403 = vand.u32 2147483647, %v393
  %vm404 = vcmp.eq.f32.partialorder %v403, 8.507059e+37
  %v405 = vand.u32 %v393, 2147483648
  %v406 = vor.u32 1.1754944e-38, %v405
  %v407 = vsel %vm404, %v406, %v402
  %v408 = vmul.f32 %v383, %v407
  %v409 = vmin.f32 %v408, 1.0
  %v410 = vmax.f32 %v409, -1.0
  %v411 = vmul.f32 %v286, %v286
  %v412 = vmin.f32 16.0, %v411
  %v413 = vmul.f32 %v412, 2.1237322e-06
  %v414 = vadd.f32 %v413, 0.00028619796
  %v415 = vmul.f32 %v412, %v414
  %v416 = vadd.f32 %v415, 0.0036580483
  %v417 = vmul.f32 %v412, %v416
  %v418 = vadd.f32 %v417, 0.05243302
  %v419 = vmul.f32 %v412, %v418
  %v420 = vadd.f32 %v419, 0.18741608
  %v421 = vmul.f32 %v412, %v420
  %v422 = vadd.f32 %v421, 1.1283791
  %v423 = vmul.f32 %v286, %v422
  %v424 = vmul.f32 %v412, 3.8918573e-05
  %v425 = vadd.f32 %v424, 0.001143296
  %v426 = vmul.f32 %v412, %v425
  %v427 = vadd.f32 %v426, 0.014752088
  %v428 = vmul.f32 %v412, %v427
  %v429 = vadd.f32 %v428, 0.112945676
  %v430 = vmul.f32 %v412, %v429
  %v431 = vadd.f32 %v430, 0.4994258
  %v432 = vmul.f32 %v412, %v431
  %v433 = vadd.f32 %v432, 1.0
  %v434 = vrcp.pop %v433
  %v435 = vmul.f32 %v433, %v434
  %v436 = vsub.f32 1.0, %v435
  %v437 = vmul.f32 %v434, %v436
  %v438 = vadd.f32 %v434, %v437
  %vm439 = vweird.f32 %v433
  %vm440 = vweird.f32 %v434
  %vm441 = vmor %vm439, %vm440
  %v442 = vsel %vm441, %v434, %v438
  %v443 = vand.u32 2147483647, %v433
  %vm444 = vcmp.eq.f32.partialorder %v443, 8.507059e+37
  %v445 = vand.u32 %v433, 2147483648
  %v446 = vor.u32 1.1754944e-38, %v445
  %v447 = vsel %vm444, %v446, %v442
  %v448 = vmul.f32 %v423, %v447
  %v449 = vmin.f32 %v448, 1.0
  %v450 = vmax.f32 %v449, -1.0
  %v451 = vmul.f32 %v287, %v287
  %v452 = vmin.f32 16.0, %v451
  %v453 = vmul.f32 %v452, 2.1237322e-06
  %v454 = vadd.f32 %v453, 0.00028619796
  %v455 = vmul.f32 %v452, %v454
  %v456 = vadd.f32 %v455, 0.0036580483
  %v457 = vmul.f32 %v452, %v456
  %v458 = vadd.f32 %v457, 0.05243302
  %v459 = vmul.f32 %v452, %v458
  %v460 = vadd.f32 %v459, 0.18741608
  %v461 = vmul.f32 %v452, %v460
  %v462 = vadd.f32 %v461, 1.1283791
  %v463 = vmul.f32 %v287, %v462
  %v464 = vmul.f32 %v452, 3.8918573e-05
  %v465 = vadd.f32 %v464, 0.001143296
  %v466 = vmul.f32 %v452, %v465
  %v467 = vadd.f32 %v466, 0.014752088
  %v468 = vmul.f32 %v452, %v467
  %v469 = vadd.f32 %v468, 0.112945676
  %v470 = vmul.f32 %v452, %v469
  %v471 = vadd.f32 %v470, 0.4994258
  %v472 = vmul.f32 %v452, %v471
  %v473 = vadd.f32 %v472, 1.0
  %v474 = vrcp.pop %v473
  %v475 = vmul.f32 %v473, %v474
  %v476 = vsub.f32 1.0, %v475
  %v477 = vmul.f32 %v474, %v476
  %v478 = vadd.f32 %v474, %v477
  %vm479 = vweird.f32 %v473
  %vm480 = vweird.f32 %v474
  %vm481 = vmor %vm479, %vm480
  %v482 = vsel %vm481, %v474, %v478
  %v483 = vand.u32 2147483647, %v473
  %vm484 = vcmp.eq.f32.partialorder %v483, 8.507059e+37
  %v485 = vand.u32 %v473, 2147483648
  %v486 = vor.u32 1.1754944e-38, %v485
  %v487 = vsel %vm484, %v486, %v482
  %v488 = vmul.f32 %v463, %v487
  %v489 = vmin.f32 %v488, 1.0
  %v490 = vmax.f32 %v489, -1.0
  %v491 = vmul.f32 %v288, %v288
  %v492 = vmin.f32 16.0, %v491
  %v493 = vmul.f32 %v492, 2.1237322e-06
  %v494 = vadd.f32 %v493, 0.00028619796
  %v495 = vmul.f32 %v492, %v494
  %v496 = vadd.f32 %v495, 0.0036580483
  %v497 = vmul.f32 %v492, %v496
  %v498 = vadd.f32 %v497, 0.05243302
  %v499 = vmul.f32 %v492, %v498
  %v500 = vadd.f32 %v499, 0.18741608
  %v501 = vmul.f32 %v492, %v500
  %v502 = vadd.f32 %v501, 1.1283791
  %v503 = vmul.f32 %v288, %v502
  %v504 = vmul.f32 %v492, 3.8918573e-05
  %v505 = vadd.f32 %v504, 0.001143296
  %v506 = vmul.f32 %v492, %v505
  %v507 = vadd.f32 %v506, 0.014752088
  %v508 = vmul.f32 %v492, %v507
  %v509 = vadd.f32 %v508, 0.112945676
  %v510 = vmul.f32 %v492, %v509
  %v511 = vadd.f32 %v510, 0.4994258
  %v512 = vmul.f32 %v492, %v511
  %v513 = vadd.f32 %v512, 1.0
  %v514 = vrcp.pop %v513
  %v515 = vmul.f32 %v513, %v514
  %v516 = vsub.f32 1.0, %v515
  %v517 = vmul.f32 %v514, %v516
  %v518 = vadd.f32 %v514, %v517
  %vm519 = vweird.f32 %v513
  %vm520 = vweird.f32 %v514
  %vm521 = vmor %vm519, %vm520
  %v522 = vsel %vm521, %v514, %v518
  %v523 = vand.u32 2147483647, %v513
  %vm524 = vcmp.eq.f32.partialorder %v523, 8.507059e+37
  %v525 = vand.u32 %v513, 2147483648
  %v526 = vor.u32 1.1754944e-38, %v525
  %v527 = vsel %vm524, %v526, %v522
  %v528 = vmul.f32 %v503, %v527
  %v529 = vmin.f32 %v528, 1.0
  %v530 = vmax.f32 %v529, -1.0
  %v531 = vmul.f32 %v289, %v289
  %v532 = vmin.f32 16.0, %v531
  %v533 = vmul.f32 %v532, 2.1237322e-06
  %v534 = vadd.f32 %v533, 0.00028619796
  %v535 = vmul.f32 %v532, %v534
  %v536 = vadd.f32 %v535, 0.0036580483
  %v537 = vmul.f32 %v532, %v536
  %v538 = vadd.f32 %v537, 0.05243302
  %v539 = vmul.f32 %v532, %v538
  %v540 = vadd.f32 %v539, 0.18741608
  %v541 = vmul.f32 %v532, %v540
  %v542 = vadd.f32 %v541, 1.1283791
  %v543 = vmul.f32 %v289, %v542
  %v544 = vmul.f32 %v532, 3.8918573e-05
  %v545 = vadd.f32 %v544, 0.001143296
  %v546 = vmul.f32 %v532, %v545
  %v547 = vadd.f32 %v546, 0.014752088
  %v548 = vmul.f32 %v532, %v547
  %v549 = vadd.f32 %v548, 0.112945676
  %v550 = vmul.f32 %v532, %v549
  %v551 = vadd.f32 %v550, 0.4994258
  %v552 = vmul.f32 %v532, %v551
  %v553 = vadd.f32 %v552, 1.0
  %v554 = vrcp.pop %v553
  %v555 = vmul.f32 %v553, %v554
  %v556 = vsub.f32 1.0, %v555
  %v557 = vmul.f32 %v554, %v556
  %v558 = vadd.f32 %v554, %v557
  %vm559 = vweird.f32 %v553
  %vm560 = vweird.f32 %v554
  %vm561 = vmor %vm559, %vm560
  %v562 = vsel %vm561, %v554, %v558
  %v563 = vand.u32 2147483647, %v553
  %vm564 = vcmp.eq.f32.partialorder %v563, 8.507059e+37
  %v565 = vand.u32 %v553, 2147483648
  %v566 = vor.u32 1.1754944e-38, %v565
  %v567 = vsel %vm564, %v566, %v562
  %v568 = vmul.f32 %v543, %v567
  %v569 = vmin.f32 %v568, 1.0
  %v570 = vmax.f32 %v569, -1.0
  %v571 = vmul.f32 %v290, %v290
  %v572 = vmin.f32 16.0, %v571
  %v573 = vmul.f32 %v572, 2.1237322e-06
  %v574 = vadd.f32 %v573, 0.00028619796
  %v575 = vmul.f32 %v572, %v574
  %v576 = vadd.f32 %v575, 0.0036580483
  %v577 = vmul.f32 %v572, %v576
  %v578 = vadd.f32 %v577, 0.05243302
  %v579 = vmul.f32 %v572, %v578
  %v580 = vadd.f32 %v579, 0.18741608
  %v581 = vmul.f32 %v572, %v580
  %v582 = vadd.f32 %v581, 1.1283791
  %v583 = vmul.f32 %v290, %v582
  %v584 = vmul.f32 %v572, 3.8918573e-05
  %v585 = vadd.f32 %v584, 0.001143296
  %v586 = vmul.f32 %v572, %v585
  %v587 = vadd.f32 %v586, 0.014752088
  %v588 = vmul.f32 %v572, %v587
  %v589 = vadd.f32 %v588, 0.112945676
  %v590 = vmul.f32 %v572, %v589
  %v591 = vadd.f32 %v590, 0.4994258
  %v592 = vmul.f32 %v572, %v591
  %v593 = vadd.f32 %v592, 1.0
  %v594 = vrcp.pop %v593
  %v595 = vmul.f32 %v593, %v594
  %v596 = vsub.f32 1.0, %v595
  %v597 = vmul.f32 %v594, %v596
  %v598 = vadd.f32 %v594, %v597
  %vm599 = vweird.f32 %v593
  %vm600 = vweird.f32 %v594
  %vm601 = vmor %vm599, %vm600
  %v602 = vsel %vm601, %v594, %v598
  %v603 = vand.u32 2147483647, %v593
  %vm604 = vcmp.eq.f32.partialorder %v603, 8.507059e+37
  %v605 = vand.u32 %v593, 2147483648
  %v606 = vor.u32 1.1754944e-38, %v605
  %v607 = vsel %vm604, %v606, %v602
  %v608 = vmul.f32 %v583, %v607
  %v609 = vmin.f32 %v608, 1.0
  %v610 = vmax.f32 %v609, -1.0
  %v611 = vadd.f32 %v330, 1.0
  %v612 = vadd.f32 %v370, 1.0
  %v613 = vadd.f32 %v410, 1.0
  %v614 = vadd.f32 %v450, 1.0
  %v615 = vadd.f32 %v490, 1.0
  %v616 = vadd.f32 %v530, 1.0
  %v617 = vadd.f32 %v570, 1.0
  %v618 = vadd.f32 %v610, 1.0
  %v619 = vmul.f32 %v275, %v611
  %v620 = vmul.f32 %v276, %v612
  %v621 = vmul.f32 %v277, %v613
  %v622 = vmul.f32 %v278, %v614
  %v623 = vmul.f32 %v279, %v615
  %v624 = vmul.f32 %v280, %v616
  %v625 = vmul.f32 %v281, %v617
  %v626 = vmul.f32 %v282, %v618
  %v627 = vpack.c.bf16 %v621, %v619
  %v628 = vpack.c.bf16 %v622, %v620
  %v629 = vpack.c.bf16 %v625, %v623
  %v630 = vpack.c.bf16 %v626, %v624
  %v631 = vld [vmem:[%s5] sm:$0xf]
  %v632 = vld [vmem:[%s5 + $0x4] sm:$0xf]
  %v633 = vld [vmem:[%s5 + $0x8] sm:$0xf]
  %v634 = vld [vmem:[%s5 + $0xc] sm:$0xf]
  %v635 = vld [vmem:[%s5 + $0x10] sm:$0xf]
  %v636 = vld [vmem:[%s5 + $0x14] sm:$0xf]
  %v637 = vld [vmem:[%s5 + $0x18] sm:$0xf]
  %v638 = vld [vmem:[%s5 + $0x1c] sm:$0xf]
  %v639 = vld [vmem:[%s5 + $0x20] sm:$0xf]
  %v640 = vld [vmem:[%s5 + $0x24] sm:$0xf]
  %v641 = vld [vmem:[%s5 + $0x28] sm:$0xf]
  %v642 = vld [vmem:[%s5 + $0x2c] sm:$0xf]
  %v643 = vld [vmem:[%s5 + $0x30] sm:$0xf]
  %v644 = vld [vmem:[%s5 + $0x34] sm:$0xf]
  %v645 = vld [vmem:[%s5 + $0x38] sm:$0xf]
  %v646 = vld [vmem:[%s5 + $0x3c] sm:$0xf]
  %v647 = vld [vmem:[%s5 + $0x40] sm:$0xf]
  %v648 = vld [vmem:[%s5 + $0x44] sm:$0xf]
  %v649 = vld [vmem:[%s5 + $0x48] sm:$0xf]
  %v650 = vld [vmem:[%s5 + $0x4c] sm:$0xf]
  %v651 = vld [vmem:[%s5 + $0x50] sm:$0xf]
  %v652 = vld [vmem:[%s5 + $0x54] sm:$0xf]
  %v653 = vld [vmem:[%s5 + $0x58] sm:$0xf]
  %v654 = vld [vmem:[%s5 + $0x5c] sm:$0xf]
  %v655 = vld [vmem:[%s5 + $0x60] sm:$0xf]
  %v656 = vld [vmem:[%s5 + $0x64] sm:$0xf]
  %v657 = vld [vmem:[%s5 + $0x68] sm:$0xf]
  %v658 = vld [vmem:[%s5 + $0x6c] sm:$0xf]
  %v659 = vld [vmem:[%s5 + $0x70] sm:$0xf]
  %v660 = vld [vmem:[%s5 + $0x74] sm:$0xf]
  %v661 = vld [vmem:[%s5 + $0x78] sm:$0xf]
  %v662 = vld [vmem:[%s5 + $0x7c] sm:$0xf]
  %v663 = vld [vmem:[%s6] sm:$0x1]
  %v665 = vperm.slane %v663, 0
  %v699 = vunpack.c.l.b16 %v631
  %v700 = vunpack.c.l.b16 %v632
  %v701 = vunpack.c.l.b16 %v633
  %v702 = vunpack.c.l.b16 %v634
  %v703 = vunpack.c.l.b16 %v635
  %v704 = vunpack.c.l.b16 %v636
  %v705 = vunpack.c.l.b16 %v637
  %v706 = vunpack.c.l.b16 %v638
  %v707 = vunpack.c.l.b16 %v639
  %v708 = vunpack.c.l.b16 %v640
  %v709 = vunpack.c.l.b16 %v641
  %v710 = vunpack.c.l.b16 %v642
  %v711 = vunpack.c.l.b16 %v643
  %v712 = vunpack.c.l.b16 %v644
  %v713 = vunpack.c.l.b16 %v645
  %v714 = vunpack.c.l.b16 %v646
  %v715 = vunpack.c.l.b16 %v647
  %v716 = vunpack.c.l.b16 %v648
  %v717 = vunpack.c.l.b16 %v649
  %v718 = vunpack.c.l.b16 %v650
  %v719 = vunpack.c.l.b16 %v651
  %v720 = vunpack.c.l.b16 %v652
  %v721 = vunpack.c.l.b16 %v653
  %v722 = vunpack.c.l.b16 %v654
  %v723 = vunpack.c.l.b16 %v655
  %v724 = vunpack.c.l.b16 %v656
  %v725 = vunpack.c.l.b16 %v657
  %v726 = vunpack.c.l.b16 %v658
  %v727 = vunpack.c.l.b16 %v659
  %v728 = vunpack.c.l.b16 %v660
  %v729 = vunpack.c.l.b16 %v661
  %v730 = vunpack.c.l.b16 %v662
  %v731 = vpack.c.b16 %v700, %v699
  %v732 = vpack.c.b16 %v702, %v701
  %v733 = vpack.c.b16 %v704, %v703
  %v734 = vpack.c.b16 %v706, %v705
  %v735 = vpack.c.b16 %v708, %v707
  %v736 = vpack.c.b16 %v710, %v709
  %v737 = vpack.c.b16 %v712, %v711
  %v738 = vpack.c.b16 %v714, %v713
  %v739 = vpack.c.b16 %v716, %v715
  %v740 = vpack.c.b16 %v718, %v717
  %v741 = vpack.c.b16 %v720, %v719
  %v742 = vpack.c.b16 %v722, %v721
  %v743 = vpack.c.b16 %v724, %v723
  %v744 = vpack.c.b16 %v726, %v725
  %v745 = vpack.c.b16 %v728, %v727
  %v746 = vpack.c.b16 %v730, %v729
  %763 = vmatpush.bf16.msra.mxu0 %v738
  %764 = vmatpush.bf16.msra.mxu0 %v737
  %765 = vmatpush.bf16.msra.mxu0 %v736
  %766 = vmatpush.bf16.msra.mxu0 %v735
  %767 = vmatpush.bf16.msra.mxu0 %v734
  %768 = vmatpush.bf16.msra.mxu0 %v733
  %769 = vmatpush.bf16.msra.mxu0 %v732
  %770 = vmatpush.bf16.msra.mxu0 %v731
  %771 = vmatmul.bf16.gmra.mxu0 %v627
  %v772 = vpop.f32.mrf.mxu0
  %v773 = vadd.f32 %v665, %v772
  %v774 = vpop.f32.mrf.mxu0
  %v775 = vadd.f32 %v665, %v774
  %776 = vmatmul.bf16.gmra.mxu0 %v629
  %v777 = vpop.f32.mrf.mxu0
  %v778 = vadd.f32 %v665, %v777
  %v779 = vpop.f32.mrf.mxu0
  %v780 = vadd.f32 %v665, %v779
  %781 = vdwg.mxu0
  %782 = vmatpush.bf16.msra.mxu0 %v746
  %783 = vmatpush.bf16.msra.mxu0 %v745
  %784 = vmatpush.bf16.msra.mxu0 %v744
  %785 = vmatpush.bf16.msra.mxu0 %v743
  %786 = vmatpush.bf16.msra.mxu0 %v742
  %787 = vmatpush.bf16.msra.mxu0 %v741
  %788 = vmatpush.bf16.msra.mxu0 %v740
  %789 = vmatpush.bf16.msra.mxu0 %v739
  %790 = vmatmul.bf16.gmra.mxu0 %v628
  %v791 = vpop.f32.mrf.mxu0
  %v792 = vadd.f32 %v773, %v791
  %v793 = vpop.f32.mrf.mxu0
  %v794 = vadd.f32 %v775, %v793
  %795 = vmatmul.bf16.gmra.mxu0 %v630
  %v796 = vpop.f32.mrf.mxu0
  %v797 = vadd.f32 %v778, %v796
  %v798 = vpop.f32.mrf.mxu0
  %v799 = vadd.f32 %v780, %v798
  %800 = vdwg.mxu0
  %v801 = vadd.f32 %v26, %v792
  %v802 = vadd.f32 %v27, %v794
  %v803 = vadd.f32 %v28, %v797
  %v804 = vadd.f32 %v29, %v799
  %805 = vst [vmem:[%s7] sm:$0xff] %v801
  %806 = vst [vmem:[%s7 + $0x8] sm:$0xff] %v802
  %807 = vst [vmem:[%s7 + $0x10] sm:$0xff] %v803
  %808 = vst [vmem:[%s7 + $0x18] sm:$0xff] %v804
  // Predicated region
  $region30: #{pallas_forward.6} parent=0 // pred_check
    _
  $region31: #{pallas_forward.6} parent=0 // pred_check_branch
    %810 = sbr.rel (0) target = $region33
  $region32: #{pallas_forward.6} parent=0 // pred_region
    _
  $region33: #{pallas_forward.6} parent=0 // pred_fallthru
    _
  // Predicated region
  $region34: #{pallas_forward.6} parent=0 // pred_check
    _
  $region35: #{pallas_forward.6} parent=0 // pred_check_branch
    %812 = sbr.rel (0) target = $region37
  $region36: #{pallas_forward.6} parent=0 // pred_region
    _
  $region37: #{pallas_forward.6} parent=0 // pred_fallthru
    _

// kernel: pallas_forward.9
$region0: #{pallas_forward.9}
  #allocation0 [shape = 'u32[]', space=smem, size = 0x4, offset = 0x4, fixed_abs, tag = 'smem constant byte address 0x4 - core index']
  #allocation1 [shape = 'u32[72,128]{1,0:T(1,128)}', space=vmem, size = 0x9000, scoped, tag = 'internal scratch']
  %s0 = inlined_call_operand.vmem [shape: f32[32,128], index: 0, kind: input, shape index: {}]
  %s1 = inlined_call_operand.vmem [shape: f32[1,128], index: 1, kind: input, shape index: {}]
  %s2 = inlined_call_operand.vmem [shape: f32[1,128], index: 2, kind: input, shape index: {}]
  %s3 = inlined_call_operand.hbm [shape: bf16[128,128], index: 3, kind: input, shape index: {}]
  %s4 = inlined_call_operand.vmem [shape: f32[1,128], index: 4, kind: input, shape index: {}]
  %s5 = inlined_call_operand.hbm [shape: f32[32,128], index: 5, kind: output, shape index: {}]
  %s6 = sld [smem:[#allocation0]]
  $region34: #{pallas_forward.9} parent=0
    _
  %s8 = ssub.s32 1, %s6
  %s9 = scalar_select 0, %s8, %s6
  $region1: #{pallas_forward.9} parent=0
    #allocation2 [shape = 'u8[32768]{0}', space=vmem, size = 0x8000, scoped, tag = 'input window, operand 3, single buffered']
    #allocation3 [shape = 's32[1]{0}', space=sflag, size = 0x4, scoped, tag = 'scoped memory for pallas_forward.9']
    #allocation4 [shape = 's32[1]{0}', space=sflag, size = 0x4, scoped, tag = 'scoped memory for pallas_forward.9']
    #allocation5 [shape = 'u8[16384]{0}', space=vmem, size = 0x4000, scoped, tag = 'output window, operand 0, single buffered']
    %10 = vsyncpa [#allocation3], 0
    %11 = vsyncpa [#allocation4], 0
    // Predicated region
    $region2: #{pallas_forward.9} parent=1 // pred_check
      _
    $region3: #{pallas_forward.9} parent=1 // pred_check_branch
      %13 = sbr.rel (0) target = $region5
    $region4: #{pallas_forward.9} parent=1 // pred_region
      _
    $region5: #{pallas_forward.9} parent=1 // pred_fallthru
      _
    // Predicated region
    $region6: #{pallas_forward.9} parent=1 // pred_check
      _
    $region7: #{pallas_forward.9} parent=1 // pred_check_branch
      %15 = sbr.rel (0) target = $region9
    $region8: #{pallas_forward.9} parent=1 // pred_region
      _
    $region9: #{pallas_forward.9} parent=1 // pred_fallthru
      _
    // Predicated region
    $region10: #{pallas_forward.9} parent=1 // pred_check
      _
    $region11: #{pallas_forward.9} parent=1 // pred_check_branch
      %17 = sbr.rel (0) target = $region13
    $region12: #{pallas_forward.9} parent=1 // pred_region
      _
    $region13: #{pallas_forward.9} parent=1 // pred_fallthru
      _
    // Predicated region
    $region14: #{pallas_forward.9} parent=1 // pred_check
      _
    $region15: #{pallas_forward.9} parent=1 // pred_check_branch
      %19 = sbr.rel (0) target = $region17
    $region16: #{pallas_forward.9} parent=1 // pred_region
      %21 = vsyncadd [#allocation3], 0
      %s22 = sshll.u32 %s3, 4
      %s23 = int_to_ptr.hbm [resolvable:$true] %s22
      %s24 = sshll.u32 [#allocation2], 4
      %s25 = int_to_ptr.vmem [resolvable:$true] %s24
      %30 = dma.hbm_to_vmem [thread:$0]  %s23, 1024, %s25, [#allocation3], 64, 64, 4
    $region17: #{pallas_forward.9} parent=1 // pred_fallthru
      _
    // Predicated region
    $region18: #{pallas_forward.9} parent=1 // pred_check
      _
    $region19: #{pallas_forward.9} parent=1 // pred_check_branch
      %32 = sbr.rel (0) target = $region21
    $region20: #{pallas_forward.9} parent=1 // pred_region
      _
    $region21: #{pallas_forward.9} parent=1 // pred_fallthru
      _
    // Predicated region
    $region22: #{pallas_forward.9} parent=1 // pred_check
      _
    $region23: #{pallas_forward.9} parent=1 // pred_check_branch
      %34 = sbr.rel (0) target = $region25
    $region24: #{pallas_forward.9} parent=1 // pred_region
      %36 = dma.done [#allocation3], 1024
    $region25: #{pallas_forward.9} parent=1 // pred_fallthru
      _
    %v37 = vld [vmem:[%s0] sm:$0xff]
    %v38 = vld [vmem:[%s0 + $0x8] sm:$0xff]
    %v39 = vld [vmem:[%s0 + $0x10] sm:$0xff]
    %v40 = vld [vmem:[%s0 + $0x18] sm:$0xff]
    %v41 = vld [vmem:[%s1] sm:$0x1]
    %v42 = vld [vmem:[%s2] sm:$0x1]
    %43 = vadd.xlane.f32.xlu0 %v37
    %v44 = vpop.xlane.xlu0 %43
    %45 = vadd.xlane.f32.xlu0 %v38
    %v46 = vpop.xlane.xlu0 %45
    %47 = vadd.xlane.f32.xlu0 %v39
    %v48 = vpop.xlane.xlu0 %47
    %49 = vadd.xlane.f32.xlu0 %v40
    %v50 = vpop.xlane.xlu0 %49
    %v51 = vrcp.pop 128.0
    %v52 = vmul.f32 128.0, %v51
    %v53 = vsub.f32 1.0, %v52
    %v54 = vmul.f32 %v51, %v53
    %v55 = vadd.f32 %v51, %v54
    %vm56 = vweird.f32 %v51
    %v57 = vsel %vm56, %v51, %v55
    %v58 = vmul.f32 %v44, %v57
    %v59 = vmul.f32 %v46, %v57
    %v60 = vmul.f32 %v48, %v57
    %v61 = vmul.f32 %v50, %v57
    %v62 = vsub.f32 %v37, %v58
    %v63 = vsub.f32 %v38, %v59
    %v64 = vsub.f32 %v39, %v60
    %v65 = vsub.f32 %v40, %v61
    %v66 = vmul.f32 %v62, %v62
    %v67 = vmul.f32 %v63, %v63
    %v68 = vmul.f32 %v64, %v64
    %v69 = vmul.f32 %v65, %v65
    %70 = vadd.xlane.f32.xlu0 %v66
    %v71 = vpop.xlane.xlu0 %70
    %72 = vadd.xlane.f32.xlu0 %v67
    %v73 = vpop.xlane.xlu0 %72
    %74 = vadd.xlane.f32.xlu0 %v68
    %v75 = vpop.xlane.xlu0 %74
    %76 = vadd.xlane.f32.xlu0 %v69
    %v77 = vpop.xlane.xlu0 %76
    %v78 = vmul.f32 %v71, %v57
    %v79 = vmul.f32 %v73, %v57
    %v80 = vmul.f32 %v75, %v57
    %v81 = vmul.f32 %v77, %v57
    %v82 = vadd.f32 %v78, 1e-12
    %v83 = vadd.f32 %v79, 1e-12
    %v84 = vadd.f32 %v80, 1e-12
    %v85 = vadd.f32 %v81, 1e-12
    %v86 = vrsqrt.pop %v82
    %v87 = vmul.f32 %v86, %v82
    %v88 = vmul.f32 %v87, %v86
    %v89 = vmul.f32 0.5, %v88
    %v90 = vsub.f32 1.5, %v89
    %v91 = vmul.f32 %v86, %v90
    %vm92 = vweird.f32 %v82
    %vm93 = vweird.f32 %v86
    %vm94 = vmor %vm92, %vm93
    %v95 = vsel %vm94, %v86, %v91
    %v96 = vrsqrt.pop %v83
    %v97 = vmul.f32 %v96, %v83
    %v98 = vmul.f32 %v97, %v96
    %v99 = vmul.f32 0.5, %v98
    %v100 = vsub.f32 1.5, %v99
    %v101 = vmul.f32 %v96, %v100
    %vm102 = vweird.f32 %v83
    %vm103 = vweird.f32 %v96
    %vm104 = vmor %vm102, %vm103
    %v105 = vsel %vm104, %v96, %v101
    %v106 = vrsqrt.pop %v84
    %v107 = vmul.f32 %v106, %v84
    %v108 = vmul.f32 %v107, %v106
    %v109 = vmul.f32 0.5, %v108
    %v110 = vsub.f32 1.5, %v109
    %v111 = vmul.f32 %v106, %v110
    %vm112 = vweird.f32 %v84
    %vm113 = vweird.f32 %v106
    %vm114 = vmor %vm112, %vm113
    %v115 = vsel %vm114, %v106, %v111
    %v116 = vrsqrt.pop %v85
    %v117 = vmul.f32 %v116, %v85
    %v118 = vmul.f32 %v117, %v116
    %v119 = vmul.f32 0.5, %v118
    %v120 = vsub.f32 1.5, %v119
    %v121 = vmul.f32 %v116, %v120
    %vm122 = vweird.f32 %v85
    %vm123 = vweird.f32 %v116
    %vm124 = vmor %vm122, %vm123
    %v125 = vsel %vm124, %v116, %v121
    %v126 = vmul.f32 %v62, %v95
    %v127 = vmul.f32 %v63, %v105
    %v128 = vmul.f32 %v64, %v115
    %v129 = vmul.f32 %v65, %v125
    %v131 = vperm.slane %v41, 0
    %v133 = vmul.f32 %v126, %v131
    %v134 = vmul.f32 %v127, %v131
    %v135 = vmul.f32 %v128, %v131
    %v136 = vmul.f32 %v129, %v131
    %v138 = vperm.slane %v42, 0
    %v140 = vadd.f32 %v133, %v138
    %v141 = vadd.f32 %v134, %v138
    %v142 = vadd.f32 %v135, %v138
    %v143 = vadd.f32 %v136, %v138
    %v144 = vpack.c.bf16 %v141, %v140
    %v145 = vpack.c.bf16 %v143, %v142
    %v146 = vld [vmem:[#allocation2] sm:$0xf]
    %v147 = vld [vmem:[#allocation2 + $0x4] sm:$0xf]
    %v148 = vld [vmem:[#allocation2 + $0x8] sm:$0xf]
    %v149 = vld [vmem:[#allocation2 + $0xc] sm:$0xf]
    %v150 = vld [vmem:[#allocation2 + $0x10] sm:$0xf]
    %v151 = vld [vmem:[#allocation2 + $0x14] sm:$0xf]
    %v152 = vld [vmem:[#allocation2 + $0x18] sm:$0xf]
    %v153 = vld [vmem:[#allocation2 + $0x1c] sm:$0xf]
    %v154 = vld [vmem:[#allocation2 + $0x20] sm:$0xf]
    %v155 = vld [vmem:[#allocation2 + $0x24] sm:$0xf]
    %v156 = vld [vmem:[#allocation2 + $0x28] sm:$0xf]
    %v157 = vld [vmem:[#allocation2 + $0x2c] sm:$0xf]
    %v158 = vld [vmem:[#allocation2 + $0x30] sm:$0xf]
    %v159 = vld [vmem:[#allocation2 + $0x34] sm:$0xf]
    %v160 = vld [vmem:[#allocation2 + $0x38] sm:$0xf]
    %v161 = vld [vmem:[#allocation2 + $0x3c] sm:$0xf]
    %v162 = vld [vmem:[%s4] sm:$0x1]
    %v164 = vperm.slane %v162, 0
    %v182 = vunpack.c.l.b16 %v146
    %v183 = vunpack.c.l.b16 %v147
    %v184 = vunpack.c.l.b16 %v148
    %v185 = vunpack.c.l.b16 %v149
    %v186 = vunpack.c.l.b16 %v150
    %v187 = vunpack.c.l.b16 %v151
    %v188 = vunpack.c.l.b16 %v152
    %v189 = vunpack.c.l.b16 %v153
    %v190 = vunpack.c.l.b16 %v154
    %v191 = vunpack.c.l.b16 %v155
    %v192 = vunpack.c.l.b16 %v156
    %v193 = vunpack.c.l.b16 %v157
    %v194 = vunpack.c.l.b16 %v158
    %v195 = vunpack.c.l.b16 %v159
    %v196 = vunpack.c.l.b16 %v160
    %v197 = vunpack.c.l.b16 %v161
    %v198 = vpack.c.b16 %v183, %v182
    %v199 = vpack.c.b16 %v185, %v184
    %v200 = vpack.c.b16 %v187, %v186
    %v201 = vpack.c.b16 %v189, %v188
    %v202 = vpack.c.b16 %v191, %v190
    %v203 = vpack.c.b16 %v193, %v192
    %v204 = vpack.c.b16 %v195, %v194
    %v205 = vpack.c.b16 %v197, %v196
    %214 = vmatpush.bf16.msra.mxu0 %v205
    %215 = vmatpush.bf16.msra.mxu0 %v204
    %216 = vmatpush.bf16.msra.mxu0 %v203
    %217 = vmatpush.bf16.msra.mxu0 %v202
    %218 = vmatpush.bf16.msra.mxu0 %v201
    %219 = vmatpush.bf16.msra.mxu0 %v200
    %220 = vmatpush.bf16.msra.mxu0 %v199
    %221 = vmatpush.bf16.msra.mxu0 %v198
    %222 = vmatmul.bf16.gmra.mxu0 %v144
    %v223 = vpop.f32.mrf.mxu0
    %v224 = vadd.f32 %v164, %v223
    %v225 = vpop.f32.mrf.mxu0
    %v226 = vadd.f32 %v164, %v225
    %227 = vmatmul.bf16.gmra.mxu0 %v145
    %v228 = vpop.f32.mrf.mxu0
    %v229 = vadd.f32 %v164, %v228
    %v230 = vpop.f32.mrf.mxu0
    %v231 = vadd.f32 %v164, %v230
    %232 = vdwg.mxu0
    %233 = vst [vmem:[#allocation5] sm:$0xff] %v224
    %234 = vst [vmem:[#allocation5 + $0x8] sm:$0xff] %v226
    %235 = vst [vmem:[#allocation5 + $0x10] sm:$0xff] %v229
    %236 = vst [vmem:[#allocation5 + $0x18] sm:$0xff] %v231
    // Predicated region
    $region26: #{pallas_forward.9} parent=1 // pred_check
      _
    $region27: #{pallas_forward.9} parent=1 // pred_check_branch
      %238 = sbr.rel (0) target = $region29
    $region28: #{pallas_forward.9} parent=1 // pred_region
      %240 = vsyncadd [#allocation4], 0
      %s241 = sshll.u32 [#allocation5], 4
      %s242 = int_to_ptr.vmem [resolvable:$true] %s241
      %s243 = sshll.u32 %s5, 4
      %s244 = int_to_ptr.hbm [resolvable:$true] %s243
      %249 = dma.vmem_to_hbm [thread:$0]  %s242, 512, %s244, [#allocation4], 128, 128, 8
    $region29: #{pallas_forward.9} parent=1 // pred_fallthru
      _
    // Predicated region
    $region30: #{pallas_forward.9} parent=1 // pred_check
      _
    $region31: #{pallas_forward.9} parent=1 // pred_check_branch
      %251 = sbr.rel (0) target = $region33
    $region32: #{pallas_forward.9} parent=1 // pred_region
      %253 = dma.done [#allocation4], 512
    $region33: #{pallas_forward.9} parent=1 // pred_fallthru
      _
    %254 = vsyncpa [#allocation3], 1
    %255 = vsyncpa [#allocation4], 1

// kernel: pallas_forward.8
$region0: #{pallas_forward.8}
  #allocation0 [shape = 'u32[]', space=smem, size = 0x4, offset = 0x4, fixed_abs, tag = 'smem constant byte address 0x4 - core index']
  #allocation1 [shape = 'u32[72,128]{1,0:T(1,128)}', space=vmem, size = 0x9000, scoped, tag = 'internal scratch']
  %s0 = inlined_call_operand.vmem [shape: f32[32,128], index: 0, kind: input, shape index: {}]
  %s1 = inlined_call_operand.vmem [shape: f32[1,128], index: 1, kind: input, shape index: {}]
  %s2 = inlined_call_operand.vmem [shape: f32[1,128], index: 2, kind: input, shape index: {}]
  %s3 = inlined_call_operand.vmem [shape: bf16[128,256], index: 3, kind: input, shape index: {}]
  %s4 = inlined_call_operand.vmem [shape: f32[1,256], index: 4, kind: input, shape index: {}]
  %s5 = inlined_call_operand.hbm [shape: bf16[256,128], index: 5, kind: input, shape index: {}]
  %s6 = inlined_call_operand.vmem [shape: f32[1,128], index: 6, kind: input, shape index: {}]
  %s7 = inlined_call_operand.vmem [shape: f32[32,128], index: 7, kind: output, shape index: {}]
  %s8 = sld [smem:[#allocation0]]
  $region42: #{pallas_forward.8} parent=0
    _
  %s10 = ssub.s32 1, %s8
  %s11 = scalar_select 0, %s10, %s8
  $region1: #{pallas_forward.8} parent=0
    #allocation2 [shape = 'u8[65536]{0}', space=vmem, size = 0x10000, scoped, tag = 'input window, operand 5, single buffered']
    #allocation3 [shape = 's32[1]{0}', space=sflag, size = 0x4, scoped, tag = 'scoped memory for pallas_forward.8']
    %12 = vsyncpa [#allocation3], 0
    // Predicated region
    $region2: #{pallas_forward.8} parent=1 // pred_check
      _
    $region3: #{pallas_forward.8} parent=1 // pred_check_branch
      %14 = sbr.rel (0) target = $region5
    $region4: #{pallas_forward.8} parent=1 // pred_region
      _
    $region5: #{pallas_forward.8} parent=1 // pred_fallthru
      _
    // Predicated region
    $region6: #{pallas_forward.8} parent=1 // pred_check
      _
    $region7: #{pallas_forward.8} parent=1 // pred_check_branch
      %16 = sbr.rel (0) target = $region9
    $region8: #{pallas_forward.8} parent=1 // pred_region
      _
    $region9: #{pallas_forward.8} parent=1 // pred_fallthru
      _
    // Predicated region
    $region10: #{pallas_forward.8} parent=1 // pred_check
      _
    $region11: #{pallas_forward.8} parent=1 // pred_check_branch
      %18 = sbr.rel (0) target = $region13
    $region12: #{pallas_forward.8} parent=1 // pred_region
      _
    $region13: #{pallas_forward.8} parent=1 // pred_fallthru
      _
    // Predicated region
    $region14: #{pallas_forward.8} parent=1 // pred_check
      _
    $region15: #{pallas_forward.8} parent=1 // pred_check_branch
      %20 = sbr.rel (0) target = $region17
    $region16: #{pallas_forward.8} parent=1 // pred_region
      _
    $region17: #{pallas_forward.8} parent=1 // pred_fallthru
      _
    // Predicated region
    $region18: #{pallas_forward.8} parent=1 // pred_check
      _
    $region19: #{pallas_forward.8} parent=1 // pred_check_branch
      %22 = sbr.rel (0) target = $region21
    $region20: #{pallas_forward.8} parent=1 // pred_region
      _
    $region21: #{pallas_forward.8} parent=1 // pred_fallthru
      _
    // Predicated region
    $region22: #{pallas_forward.8} parent=1 // pred_check
      _
    $region23: #{pallas_forward.8} parent=1 // pred_check_branch
      %24 = sbr.rel (0) target = $region25
    $region24: #{pallas_forward.8} parent=1 // pred_region
      %26 = vsyncadd [#allocation3], 0
      %s27 = sshll.u32 %s5, 4
      %s28 = int_to_ptr.hbm [resolvable:$true] %s27
      %s29 = sshll.u32 [#allocation2], 4
      %s30 = int_to_ptr.vmem [resolvable:$true] %s29
      %35 = dma.hbm_to_vmem [thread:$0]  %s28, 2048, %s30, [#allocation3], 64, 64, 4
    $region25: #{pallas_forward.8} parent=1 // pred_fallthru
      _
    // Predicated region
    $region26: #{pallas_forward.8} parent=1 // pred_check
      _
    $region27: #{pallas_forward.8} parent=1 // pred_check_branch
      %37 = sbr.rel (0) target = $region29
    $region28: #{pallas_forward.8} parent=1 // pred_region
      _
    $region29: #{pallas_forward.8} parent=1 // pred_fallthru
      _
    // Predicated region
    $region30: #{pallas_forward.8} parent=1 // pred_check
      _
    $region31: #{pallas_forward.8} parent=1 // pred_check_branch
      %39 = sbr.rel (0) target = $region33
    $region32: #{pallas_forward.8} parent=1 // pred_region
      %41 = dma.done [#allocation3], 2048
    $region33: #{pallas_forward.8} parent=1 // pred_fallthru
      _
    %v42 = vld [vmem:[%s0] sm:$0xff]
    %v43 = vld [vmem:[%s0 + $0x8] sm:$0xff]
    %v44 = vld [vmem:[%s0 + $0x10] sm:$0xff]
    %v45 = vld [vmem:[%s0 + $0x18] sm:$0xff]
    %v46 = vld [vmem:[%s1] sm:$0x1]
    %v47 = vld [vmem:[%s2] sm:$0x1]
    %48 = vadd.xlane.f32.xlu0 %v42
    %v49 = vpop.xlane.xlu0 %48
    %50 = vadd.xlane.f32.xlu0 %v43
    %v51 = vpop.xlane.xlu0 %50
    %52 = vadd.xlane.f32.xlu0 %v44
    %v53 = vpop.xlane.xlu0 %52
    %54 = vadd.xlane.f32.xlu0 %v45
    %v55 = vpop.xlane.xlu0 %54
    %v56 = vrcp.pop 128.0
    %v57 = vmul.f32 128.0, %v56
    %v58 = vsub.f32 1.0, %v57
    %v59 = vmul.f32 %v56, %v58
    %v60 = vadd.f32 %v56, %v59
    %vm61 = vweird.f32 %v56
    %v62 = vsel %vm61, %v56, %v60
    %v63 = vmul.f32 %v49, %v62
    %v64 = vmul.f32 %v51, %v62
    %v65 = vmul.f32 %v53, %v62
    %v66 = vmul.f32 %v55, %v62
    %v67 = vsub.f32 %v42, %v63
    %v68 = vsub.f32 %v43, %v64
    %v69 = vsub.f32 %v44, %v65
    %v70 = vsub.f32 %v45, %v66
    %v71 = vmul.f32 %v67, %v67
    %v72 = vmul.f32 %v68, %v68
    %v73 = vmul.f32 %v69, %v69
    %v74 = vmul.f32 %v70, %v70
    %75 = vadd.xlane.f32.xlu0 %v71
    %v76 = vpop.xlane.xlu0 %75
    %77 = vadd.xlane.f32.xlu0 %v72
    %v78 = vpop.xlane.xlu0 %77
    %79 = vadd.xlane.f32.xlu0 %v73
    %v80 = vpop.xlane.xlu0 %79
    %81 = vadd.xlane.f32.xlu0 %v74
    %v82 = vpop.xlane.xlu0 %81
    %v83 = vmul.f32 %v76, %v62
    %v84 = vmul.f32 %v78, %v62
    %v85 = vmul.f32 %v80, %v62
    %v86 = vmul.f32 %v82, %v62
    %v87 = vadd.f32 %v83, 1e-12
    %v88 = vadd.f32 %v84, 1e-12
    %v89 = vadd.f32 %v85, 1e-12
    %v90 = vadd.f32 %v86, 1e-12
    %v91 = vrsqrt.pop %v87
    %v92 = vmul.f32 %v91, %v87
    %v93 = vmul.f32 %v92, %v91
    %v94 = vmul.f32 0.5, %v93
    %v95 = vsub.f32 1.5, %v94
    %v96 = vmul.f32 %v91, %v95
    %vm97 = vweird.f32 %v87
    %vm98 = vweird.f32 %v91
    %vm99 = vmor %vm97, %vm98
    %v100 = vsel %vm99, %v91, %v96
    %v101 = vrsqrt.pop %v88
    %v102 = vmul.f32 %v101, %v88
    %v103 = vmul.f32 %v102, %v101
    %v104 = vmul.f32 0.5, %v103
    %v105 = vsub.f32 1.5, %v104
    %v106 = vmul.f32 %v101, %v105
    %vm107 = vweird.f32 %v88
    %vm108 = vweird.f32 %v101
    %vm109 = vmor %vm107, %vm108
    %v110 = vsel %vm109, %v101, %v106
    %v111 = vrsqrt.pop %v89
    %v112 = vmul.f32 %v111, %v89
    %v113 = vmul.f32 %v112, %v111
    %v114 = vmul.f32 0.5, %v113
    %v115 = vsub.f32 1.5, %v114
    %v116 = vmul.f32 %v111, %v115
    %vm117 = vweird.f32 %v89
    %vm118 = vweird.f32 %v111
    %vm119 = vmor %vm117, %vm118
    %v120 = vsel %vm119, %v111, %v116
    %v121 = vrsqrt.pop %v90
    %v122 = vmul.f32 %v121, %v90
    %v123 = vmul.f32 %v122, %v121
    %v124 = vmul.f32 0.5, %v123
    %v125 = vsub.f32 1.5, %v124
    %v126 = vmul.f32 %v121, %v125
    %vm127 = vweird.f32 %v90
    %vm128 = vweird.f32 %v121
    %vm129 = vmor %vm127, %vm128
    %v130 = vsel %vm129, %v121, %v126
    %v131 = vmul.f32 %v67, %v100
    %v132 = vmul.f32 %v68, %v110
    %v133 = vmul.f32 %v69, %v120
    %v134 = vmul.f32 %v70, %v130
    %v136 = vperm.slane %v46, 0
    %v138 = vmul.f32 %v131, %v136
    %v139 = vmul.f32 %v132, %v136
    %v140 = vmul.f32 %v133, %v136
    %v141 = vmul.f32 %v134, %v136
    %v143 = vperm.slane %v47, 0
    %v145 = vadd.f32 %v138, %v143
    %v146 = vadd.f32 %v139, %v143
    %v147 = vadd.f32 %v140, %v143
    %v148 = vadd.f32 %v141, %v143
    %v149 = vpack.c.bf16 %v146, %v145
    %v150 = vpack.c.bf16 %v148, %v147
    %v151 = vld [vmem:[%s3] sm:$0xff]
    %v152 = vld [vmem:[%s3 + $0x8] sm:$0xff]
    %v153 = vld [vmem:[%s3 + $0x10] sm:$0xff]
    %v154 = vld [vmem:[%s3 + $0x18] sm:$0xff]
    %v155 = vld [vmem:[%s3 + $0x20] sm:$0xff]
    %v156 = vld [vmem:[%s3 + $0x28] sm:$0xff]
    %v157 = vld [vmem:[%s3 + $0x30] sm:$0xff]
    %v158 = vld [vmem:[%s3 + $0x38] sm:$0xff]
    %v159 = vld [vmem:[%s3 + $0x40] sm:$0xff]
    %v160 = vld [vmem:[%s3 + $0x48] sm:$0xff]
    %v161 = vld [vmem:[%s3 + $0x50] sm:$0xff]
    %v162 = vld [vmem:[%s3 + $0x58] sm:$0xff]
    %v163 = vld [vmem:[%s3 + $0x60] sm:$0xff]
    %v164 = vld [vmem:[%s3 + $0x68] sm:$0xff]
    %v165 = vld [vmem:[%s3 + $0x70] sm:$0xff]
    %v166 = vld [vmem:[%s3 + $0x78] sm:$0xff]
    %v167 = vld [vmem:[%s4] sm:$0x3]
    %v169 = vperm.slane %v167, 0
    %v170 = vperm.slane %v167, 1
    %v189 = vunpack.c.l.b16 %v151
    %v190 = vunpack.c.h.b16 %v151
    %v191 = vunpack.c.l.b16 %v152
    %v192 = vunpack.c.h.b16 %v152
    %v193 = vunpack.c.l.b16 %v153
    %v194 = vunpack.c.h.b16 %v153
    %v195 = vunpack.c.l.b16 %v154
    %v196 = vunpack.c.h.b16 %v154
    %v197 = vunpack.c.l.b16 %v155
    %v198 = vunpack.c.h.b16 %v155
    %v199 = vunpack.c.l.b16 %v156
    %v200 = vunpack.c.h.b16 %v156
    %v201 = vunpack.c.l.b16 %v157
    %v202 = vunpack.c.h.b16 %v157
    %v203 = vunpack.c.l.b16 %v158
    %v204 = vunpack.c.h.b16 %v158
    %v205 = vunpack.c.l.b16 %v159
    %v206 = vunpack.c.h.b16 %v159
    %v207 = vunpack.c.l.b16 %v160
    %v208 = vunpack.c.h.b16 %v160
    %v209 = vunpack.c.l.b16 %v161
    %v210 = vunpack.c.h.b16 %v161
    %v211 = vunpack.c.l.b16 %v162
    %v212 = vunpack.c.h.b16 %v162
    %v213 = vunpack.c.l.b16 %v163
    %v214 = vunpack.c.h.b16 %v163
    %v215 = vunpack.c.l.b16 %v164
    %v216 = vunpack.c.h.b16 %v164
    %v217 = vunpack.c.l.b16 %v165
    %v218 = vunpack.c.h.b16 %v165
    %v219 = vunpack.c.l.b16 %v166
    %v220 = vunpack.c.h.b16 %v166
    %v221 = vpack.c.b16 %v191, %v189
    %v222 = vpack.c.b16 %v192, %v190
    %v223 = vpack.c.b16 %v195, %v193
    %v224 = vpack.c.b16 %v196, %v194
    %v225 = vpack.c.b16 %v199, %v197
    %v226 = vpack.c.b16 %v200, %v198
    %v227 = vpack.c.b16 %v203, %v201
    %v228 = vpack.c.b16 %v204, %v202
    %v229 = vpack.c.b16 %v207, %v205
    %v230 = vpack.c.b16 %v208, %v206
    %v231 = vpack.c.b16 %v211, %v209
    %v232 = vpack.c.b16 %v212, %v210
    %v233 = vpack.c.b16 %v215, %v213
    %v234 = vpack.c.b16 %v216, %v214
    %v235 = vpack.c.b16 %v219, %v217
    %v236 = vpack.c.b16 %v220, %v218
    %253 = vmatpush.bf16.msra.mxu0 %v235
    %254 = vmatpush.bf16.msra.mxu0 %v233
    %255 = vmatpush.bf16.msra.mxu0 %v231
    %256 = vmatpush.bf16.msra.mxu0 %v229
    %257 = vmatpush.bf16.msra.mxu0 %v227
    %258 = vmatpush.bf16.msra.mxu0 %v225
    %259 = vmatpush.bf16.msra.mxu0 %v223
    %260 = vmatpush.bf16.msra.mxu0 %v221
    %261 = vmatmul.bf16.gmra.mxu0 %v149
    %v262 = vpop.f32.mrf.mxu0
    %v263 = vadd.f32 %v169, %v262
    %v264 = vpop.f32.mrf.mxu0
    %v265 = vadd.f32 %v169, %v264
    %266 = vmatmul.bf16.gmra.mxu0 %v150
    %v267 = vpop.f32.mrf.mxu0
    %v268 = vadd.f32 %v169, %v267
    %v269 = vpop.f32.mrf.mxu0
    %v270 = vadd.f32 %v169, %v269
    %271 = vdwg.mxu0
    %272 = vmatpush.bf16.msra.mxu0 %v236
    %273 = vmatpush.bf16.msra.mxu0 %v234
    %274 = vmatpush.bf16.msra.mxu0 %v232
    %275 = vmatpush.bf16.msra.mxu0 %v230
    %276 = vmatpush.bf16.msra.mxu0 %v228
    %277 = vmatpush.bf16.msra.mxu0 %v226
    %278 = vmatpush.bf16.msra.mxu0 %v224
    %279 = vmatpush.bf16.msra.mxu0 %v222
    %280 = vmatmul.bf16.gmra.mxu0 %v149
    %v281 = vpop.f32.mrf.mxu0
    %v282 = vadd.f32 %v170, %v281
    %v283 = vpop.f32.mrf.mxu0
    %v284 = vadd.f32 %v170, %v283
    %285 = vmatmul.bf16.gmra.mxu0 %v150
    %v286 = vpop.f32.mrf.mxu0
    %v287 = vadd.f32 %v170, %v286
    %v288 = vpop.f32.mrf.mxu0
    %v289 = vadd.f32 %v170, %v288
    %290 = vdwg.mxu0
    %v291 = vmul.f32 %v263, 0.5
    %v292 = vmul.f32 %v282, 0.5
    %v293 = vmul.f32 %v265, 0.5
    %v294 = vmul.f32 %v284, 0.5
    %v295 = vmul.f32 %v268, 0.5
    %v296 = vmul.f32 %v287, 0.5
    %v297 = vmul.f32 %v270, 0.5
    %v298 = vmul.f32 %v289, 0.5
    %v299 = vmul.f32 %v263, 0.70710677
    %v300 = vmul.f32 %v282, 0.70710677
    %v301 = vmul.f32 %v265, 0.70710677
    %v302 = vmul.f32 %v284, 0.70710677
    %v303 = vmul.f32 %v268, 0.70710677
    %v304 = vmul.f32 %v287, 0.70710677
    %v305 = vmul.f32 %v270, 0.70710677
    %v306 = vmul.f32 %v289, 0.70710677
    %v307 = vmul.f32 %v299, %v299
    %v308 = vmin.f32 16.0, %v307
    %v309 = vmul.f32 %v308, 2.1237322e-06
    %v310 = vadd.f32 %v309, 0.00028619796
    %v311 = vmul.f32 %v308, %v310
    %v312 = vadd.f32 %v311, 0.0036580483
    %v313 = vmul.f32 %v308, %v312
    %v314 = vadd.f32 %v313, 0.05243302
    %v315 = vmul.f32 %v308, %v314
    %v316 = vadd.f32 %v315, 0.18741608
    %v317 = vmul.f32 %v308, %v316
    %v318 = vadd.f32 %v317, 1.1283791
    %v319 = vmul.f32 %v299, %v318
    %v320 = vmul.f32 %v308, 3.8918573e-05
    %v321 = vadd.f32 %v320, 0.001143296
    %v322 = vmul.f32 %v308, %v321
    %v323 = vadd.f32 %v322, 0.014752088
    %v324 = vmul.f32 %v308, %v323
    %v325 = vadd.f32 %v324, 0.112945676
    %v326 = vmul.f32 %v308, %v325
    %v327 = vadd.f32 %v326, 0.4994258
    %v328 = vmul.f32 %v308, %v327
    %v329 = vadd.f32 %v328, 1.0
    %v330 = vrcp.pop %v329
    %v331 = vmul.f32 %v329, %v330
    %v332 = vsub.f32 1.0, %v331
    %v333 = vmul.f32 %v330, %v332
    %v334 = vadd.f32 %v330, %v333
    %vm335 = vweird.f32 %v329
    %vm336 = vweird.f32 %v330
    %vm337 = vmor %vm335, %vm336
    %v338 = vsel %vm337, %v330, %v334
    %v339 = vand.u32 2147483647, %v329
    %vm340 = vcmp.eq.f32.partialorder %v339, 8.507059e+37
    %v341 = vand.u32 %v329, 2147483648
    %v342 = vor.u32 1.1754944e-38, %v341
    %v343 = vsel %vm340, %v342, %v338
    %v344 = vmul.f32 %v319, %v343
    %v345 = vmin.f32 %v344, 1.0
    %v346 = vmax.f32 %v345, -1.0
    %v347 = vmul.f32 %v300, %v300
    %v348 = vmin.f32 16.0, %v347
    %v349 = vmul.f32 %v348, 2.1237322e-06
    %v350 = vadd.f32 %v349, 0.00028619796
    %v351 = vmul.f32 %v348, %v350
    %v352 = vadd.f32 %v351, 0.0036580483
    %v353 = vmul.f32 %v348, %v352
    %v354 = vadd.f32 %v353, 0.05243302
    %v355 = vmul.f32 %v348, %v354
    %v356 = vadd.f32 %v355, 0.18741608
    %v357 = vmul.f32 %v348, %v356
    %v358 = vadd.f32 %v357, 1.1283791
    %v359 = vmul.f32 %v300, %v358
    %v360 = vmul.f32 %v348, 3.8918573e-05
    %v361 = vadd.f32 %v360, 0.001143296
    %v362 = vmul.f32 %v348, %v361
    %v363 = vadd.f32 %v362, 0.014752088
    %v364 = vmul.f32 %v348, %v363
    %v365 = vadd.f32 %v364, 0.112945676
    %v366 = vmul.f32 %v348, %v365
    %v367 = vadd.f32 %v366, 0.4994258
    %v368 = vmul.f32 %v348, %v367
    %v369 = vadd.f32 %v368, 1.0
    %v370 = vrcp.pop %v369
    %v371 = vmul.f32 %v369, %v370
    %v372 = vsub.f32 1.0, %v371
    %v373 = vmul.f32 %v370, %v372
    %v374 = vadd.f32 %v370, %v373
    %vm375 = vweird.f32 %v369
    %vm376 = vweird.f32 %v370
    %vm377 = vmor %vm375, %vm376
    %v378 = vsel %vm377, %v370, %v374
    %v379 = vand.u32 2147483647, %v369
    %vm380 = vcmp.eq.f32.partialorder %v379, 8.507059e+37
    %v381 = vand.u32 %v369, 2147483648
    %v382 = vor.u32 1.1754944e-38, %v381
    %v383 = vsel %vm380, %v382, %v378
    %v384 = vmul.f32 %v359, %v383
    %v385 = vmin.f32 %v384, 1.0
    %v386 = vmax.f32 %v385, -1.0
    %v387 = vmul.f32 %v301, %v301
    %v388 = vmin.f32 16.0, %v387
    %v389 = vmul.f32 %v388, 2.1237322e-06
    %v390 = vadd.f32 %v389, 0.00028619796
    %v391 = vmul.f32 %v388, %v390
    %v392 = vadd.f32 %v391, 0.0036580483
    %v393 = vmul.f32 %v388, %v392
    %v394 = vadd.f32 %v393, 0.05243302
    %v395 = vmul.f32 %v388, %v394
    %v396 = vadd.f32 %v395, 0.18741608
    %v397 = vmul.f32 %v388, %v396
    %v398 = vadd.f32 %v397, 1.1283791
    %v399 = vmul.f32 %v301, %v398
    %v400 = vmul.f32 %v388, 3.8918573e-05
    %v401 = vadd.f32 %v400, 0.001143296
    %v402 = vmul.f32 %v388, %v401
    %v403 = vadd.f32 %v402, 0.014752088
    %v404 = vmul.f32 %v388, %v403
    %v405 = vadd.f32 %v404, 0.112945676
    %v406 = vmul.f32 %v388, %v405
    %v407 = vadd.f32 %v406, 0.4994258
    %v408 = vmul.f32 %v388, %v407
    %v409 = vadd.f32 %v408, 1.0
    %v410 = vrcp.pop %v409
    %v411 = vmul.f32 %v409, %v410
    %v412 = vsub.f32 1.0, %v411
    %v413 = vmul.f32 %v410, %v412
    %v414 = vadd.f32 %v410, %v413
    %vm415 = vweird.f32 %v409
    %vm416 = vweird.f32 %v410
    %vm417 = vmor %vm415, %vm416
    %v418 = vsel %vm417, %v410, %v414
    %v419 = vand.u32 2147483647, %v409
    %vm420 = vcmp.eq.f32.partialorder %v419, 8.507059e+37
    %v421 = vand.u32 %v409, 2147483648
    %v422 = vor.u32 1.1754944e-38, %v421
    %v423 = vsel %vm420, %v422, %v418
    %v424 = vmul.f32 %v399, %v423
    %v425 = vmin.f32 %v424, 1.0
    %v426 = vmax.f32 %v425, -1.0
    %v427 = vmul.f32 %v302, %v302
    %v428 = vmin.f32 16.0, %v427
    %v429 = vmul.f32 %v428, 2.1237322e-06
    %v430 = vadd.f32 %v429, 0.00028619796
    %v431 = vmul.f32 %v428, %v430
    %v432 = vadd.f32 %v431, 0.0036580483
    %v433 = vmul.f32 %v428, %v432
    %v434 = vadd.f32 %v433, 0.05243302
    %v435 = vmul.f32 %v428, %v434
    %v436 = vadd.f32 %v435, 0.18741608
    %v437 = vmul.f32 %v428, %v436
    %v438 = vadd.f32 %v437, 1.1283791
    %v439 = vmul.f32 %v302, %v438
    %v440 = vmul.f32 %v428, 3.8918573e-05
    %v441 = vadd.f32 %v440, 0.001143296
    %v442 = vmul.f32 %v428, %v441
    %v443 = vadd.f32 %v442, 0.014752088
    %v444 = vmul.f32 %v428, %v443
    %v445 = vadd.f32 %v444, 0.112945676
    %v446 = vmul.f32 %v428, %v445
    %v447 = vadd.f32 %v446, 0.4994258
    %v448 = vmul.f32 %v428, %v447
    %v449 = vadd.f32 %v448, 1.0
    %v450 = vrcp.pop %v449
    %v451 = vmul.f32 %v449, %v450
    %v452 = vsub.f32 1.0, %v451
    %v453 = vmul.f32 %v450, %v452
    %v454 = vadd.f32 %v450, %v453
    %vm455 = vweird.f32 %v449
    %vm456 = vweird.f32 %v450
    %vm457 = vmor %vm455, %vm456
    %v458 = vsel %vm457, %v450, %v454
    %v459 = vand.u32 2147483647, %v449
    %vm460 = vcmp.eq.f32.partialorder %v459, 8.507059e+37
    %v461 = vand.u32 %v449, 2147483648
    %v462 = vor.u32 1.1754944e-38, %v461
    %v463 = vsel %vm460, %v462, %v458
    %v464 = vmul.f32 %v439, %v463
    %v465 = vmin.f32 %v464, 1.0
    %v466 = vmax.f32 %v465, -1.0
    %v467 = vmul.f32 %v303, %v303
    %v468 = vmin.f32 16.0, %v467
    %v469 = vmul.f32 %v468, 2.1237322e-06
    %v470 = vadd.f32 %v469, 0.00028619796
    %v471 = vmul.f32 %v468, %v470
    %v472 = vadd.f32 %v471, 0.0036580483
    %v473 = vmul.f32 %v468, %v472
    %v474 = vadd.f32 %v473, 0.05243302
    %v475 = vmul.f32 %v468, %v474
    %v476 = vadd.f32 %v475, 0.18741608
    %v477 = vmul.f32 %v468, %v476
    %v478 = vadd.f32 %v477, 1.1283791
    %v479 = vmul.f32 %v303, %v478
    %v480 = vmul.f32 %v468, 3.8918573e-05
    %v481 = vadd.f32 %v480, 0.001143296
    %v482 = vmul.f32 %v468, %v481
    %v483 = vadd.f32 %v482, 0.014752088
    %v484 = vmul.f32 %v468, %v483
    %v485 = vadd.f32 %v484, 0.112945676
    %v486 = vmul.f32 %v468, %v485
    %v487 = vadd.f32 %v486, 0.4994258
    %v488 = vmul.f32 %v468, %v487
    %v489 = vadd.f32 %v488, 1.0
    %v490 = vrcp.pop %v489
    %v491 = vmul.f32 %v489, %v490
    %v492 = vsub.f32 1.0, %v491
    %v493 = vmul.f32 %v490, %v492
    %v494 = vadd.f32 %v490, %v493
    %vm495 = vweird.f32 %v489
    %vm496 = vweird.f32 %v490
    %vm497 = vmor %vm495, %vm496
    %v498 = vsel %vm497, %v490, %v494
    %v499 = vand.u32 2147483647, %v489
    %vm500 = vcmp.eq.f32.partialorder %v499, 8.507059e+37
    %v501 = vand.u32 %v489, 2147483648
    %v502 = vor.u32 1.1754944e-38, %v501
    %v503 = vsel %vm500, %v502, %v498
    %v504 = vmul.f32 %v479, %v503
    %v505 = vmin.f32 %v504, 1.0
    %v506 = vmax.f32 %v505, -1.0
    %v507 = vmul.f32 %v304, %v304
    %v508 = vmin.f32 16.0, %v507
    %v509 = vmul.f32 %v508, 2.1237322e-06
    %v510 = vadd.f32 %v509, 0.00028619796
    %v511 = vmul.f32 %v508, %v510
    %v512 = vadd.f32 %v511, 0.0036580483
    %v513 = vmul.f32 %v508, %v512
    %v514 = vadd.f32 %v513, 0.05243302
    %v515 = vmul.f32 %v508, %v514
    %v516 = vadd.f32 %v515, 0.18741608
    %v517 = vmul.f32 %v508, %v516
    %v518 = vadd.f32 %v517, 1.1283791
    %v519 = vmul.f32 %v304, %v518
    %v520 = vmul.f32 %v508, 3.8918573e-05
    %v521 = vadd.f32 %v520, 0.001143296
    %v522 = vmul.f32 %v508, %v521
    %v523 = vadd.f32 %v522, 0.014752088
    %v524 = vmul.f32 %v508, %v523
    %v525 = vadd.f32 %v524, 0.112945676
    %v526 = vmul.f32 %v508, %v525
    %v527 = vadd.f32 %v526, 0.4994258
    %v528 = vmul.f32 %v508, %v527
    %v529 = vadd.f32 %v528, 1.0
    %v530 = vrcp.pop %v529
    %v531 = vmul.f32 %v529, %v530
    %v532 = vsub.f32 1.0, %v531
    %v533 = vmul.f32 %v530, %v532
    %v534 = vadd.f32 %v530, %v533
    %vm535 = vweird.f32 %v529
    %vm536 = vweird.f32 %v530
    %vm537 = vmor %vm535, %vm536
    %v538 = vsel %vm537, %v530, %v534
    %v539 = vand.u32 2147483647, %v529
    %vm540 = vcmp.eq.f32.partialorder %v539, 8.507059e+37
    %v541 = vand.u32 %v529, 2147483648
    %v542 = vor.u32 1.1754944e-38, %v541
    %v543 = vsel %vm540, %v542, %v538
    %v544 = vmul.f32 %v519, %v543
    %v545 = vmin.f32 %v544, 1.0
    %v546 = vmax.f32 %v545, -1.0
    %v547 = vmul.f32 %v305, %v305
    %v548 = vmin.f32 16.0, %v547
    %v549 = vmul.f32 %v548, 2.1237322e-06
    %v550 = vadd.f32 %v549, 0.00028619796
    %v551 = vmul.f32 %v548, %v550
    %v552 = vadd.f32 %v551, 0.0036580483
    %v553 = vmul.f32 %v548, %v552
    %v554 = vadd.f32 %v553, 0.05243302
    %v555 = vmul.f32 %v548, %v554
    %v556 = vadd.f32 %v555, 0.18741608
    %v557 = vmul.f32 %v548, %v556
    %v558 = vadd.f32 %v557, 1.1283791
    %v559 = vmul.f32 %v305, %v558
    %v560 = vmul.f32 %v548, 3.8918573e-05
    %v561 = vadd.f32 %v560, 0.001143296
    %v562 = vmul.f32 %v548, %v561
    %v563 = vadd.f32 %v562, 0.014752088
    %v564 = vmul.f32 %v548, %v563
    %v565 = vadd.f32 %v564, 0.112945676
    %v566 = vmul.f32 %v548, %v565
    %v567 = vadd.f32 %v566, 0.4994258
    %v568 = vmul.f32 %v548, %v567
    %v569 = vadd.f32 %v568, 1.0
    %v570 = vrcp.pop %v569
    %v571 = vmul.f32 %v569, %v570
    %v572 = vsub.f32 1.0, %v571
    %v573 = vmul.f32 %v570, %v572
    %v574 = vadd.f32 %v570, %v573
    %vm575 = vweird.f32 %v569
    %vm576 = vweird.f32 %v570
    %vm577 = vmor %vm575, %vm576
    %v578 = vsel %vm577, %v570, %v574
    %v579 = vand.u32 2147483647, %v569
    %vm580 = vcmp.eq.f32.partialorder %v579, 8.507059e+37
    %v581 = vand.u32 %v569, 2147483648
    %v582 = vor.u32 1.1754944e-38, %v581
    %v583 = vsel %vm580, %v582, %v578
    %v584 = vmul.f32 %v559, %v583
    %v585 = vmin.f32 %v584, 1.0
    %v586 = vmax.f32 %v585, -1.0
    %v587 = vmul.f32 %v306, %v306
    %v588 = vmin.f32 16.0, %v587
    %v589 = vmul.f32 %v588, 2.1237322e-06
    %v590 = vadd.f32 %v589, 0.00028619796
    %v591 = vmul.f32 %v588, %v590
    %v592 = vadd.f32 %v591, 0.0036580483
    %v593 = vmul.f32 %v588, %v592
    %v594 = vadd.f32 %v593, 0.05243302
    %v595 = vmul.f32 %v588, %v594
    %v596 = vadd.f32 %v595, 0.18741608
    %v597 = vmul.f32 %v588, %v596
    %v598 = vadd.f32 %v597, 1.1283791
    %v599 = vmul.f32 %v306, %v598
    %v600 = vmul.f32 %v588, 3.8918573e-05
    %v601 = vadd.f32 %v600, 0.001143296
    %v602 = vmul.f32 %v588, %v601
    %v603 = vadd.f32 %v602, 0.014752088
    %v604 = vmul.f32 %v588, %v603
    %v605 = vadd.f32 %v604, 0.112945676
    %v606 = vmul.f32 %v588, %v605
    %v607 = vadd.f32 %v606, 0.4994258
    %v608 = vmul.f32 %v588, %v607
    %v609 = vadd.f32 %v608, 1.0
    %v610 = vrcp.pop %v609
    %v611 = vmul.f32 %v609, %v610
    %v612 = vsub.f32 1.0, %v611
    %v613 = vmul.f32 %v610, %v612
    %v614 = vadd.f32 %v610, %v613
    %vm615 = vweird.f32 %v609
    %vm616 = vweird.f32 %v610
    %vm617 = vmor %vm615, %vm616
    %v618 = vsel %vm617, %v610, %v614
    %v619 = vand.u32 2147483647, %v609
    %vm620 = vcmp.eq.f32.partialorder %v619, 8.507059e+37
    %v621 = vand.u32 %v609, 2147483648
    %v622 = vor.u32 1.1754944e-38, %v621
    %v623 = vsel %vm620, %v622, %v618
    %v624 = vmul.f32 %v599, %v623
    %v625 = vmin.f32 %v624, 1.0
    %v626 = vmax.f32 %v625, -1.0
    %v627 = vadd.f32 %v346, 1.0
    %v628 = vadd.f32 %v386, 1.0
    %v629 = vadd.f32 %v426, 1.0
    %v630 = vadd.f32 %v466, 1.0
    %v631 = vadd.f32 %v506, 1.0
    %v632 = vadd.f32 %v546, 1.0
    %v633 = vadd.f32 %v586, 1.0
    %v634 = vadd.f32 %v626, 1.0
    %v635 = vmul.f32 %v291, %v627
    %v636 = vmul.f32 %v292, %v628
    %v637 = vmul.f32 %v293, %v629
    %v638 = vmul.f32 %v294, %v630
    %v639 = vmul.f32 %v295, %v631
    %v640 = vmul.f32 %v296, %v632
    %v641 = vmul.f32 %v297, %v633
    %v642 = vmul.f32 %v298, %v634
    %v643 = vpack.c.bf16 %v637, %v635
    %v644 = vpack.c.bf16 %v638, %v636
    %v645 = vpack.c.bf16 %v641, %v639
    %v646 = vpack.c.bf16 %v642, %v640
    %v647 = vld [vmem:[#allocation2] sm:$0xf]
    %v648 = vld [vmem:[#allocation2 + $0x4] sm:$0xf]
    %v649 = vld [vmem:[#allocation2 + $0x8] sm:$0xf]
    %v650 = vld [vmem:[#allocation2 + $0xc] sm:$0xf]
    %v651 = vld [vmem:[#allocation2 + $0x10] sm:$0xf]
    %v652 = vld [vmem:[#allocation2 + $0x14] sm:$0xf]
    %v653 = vld [vmem:[#allocation2 + $0x18] sm:$0xf]
    %v654 = vld [vmem:[#allocation2 + $0x1c] sm:$0xf]
    %v655 = vld [vmem:[#allocation2 + $0x20] sm:$0xf]
    %v656 = vld [vmem:[#allocation2 + $0x24] sm:$0xf]
    %v657 = vld [vmem:[#allocation2 + $0x28] sm:$0xf]
    %v658 = vld [vmem:[#allocation2 + $0x2c] sm:$0xf]
    %v659 = vld [vmem:[#allocation2 + $0x30] sm:$0xf]
    %v660 = vld [vmem:[#allocation2 + $0x34] sm:$0xf]
    %v661 = vld [vmem:[#allocation2 + $0x38] sm:$0xf]
    %v662 = vld [vmem:[#allocation2 + $0x3c] sm:$0xf]
    %v663 = vld [vmem:[#allocation2 + $0x40] sm:$0xf]
    %v664 = vld [vmem:[#allocation2 + $0x44] sm:$0xf]
    %v665 = vld [vmem:[#allocation2 + $0x48] sm:$0xf]
    %v666 = vld [vmem:[#allocation2 + $0x4c] sm:$0xf]
    %v667 = vld [vmem:[#allocation2 + $0x50] sm:$0xf]
    %v668 = vld [vmem:[#allocation2 + $0x54] sm:$0xf]
    %v669 = vld [vmem:[#allocation2 + $0x58] sm:$0xf]
    %v670 = vld [vmem:[#allocation2 + $0x5c] sm:$0xf]
    %v671 = vld [vmem:[#allocation2 + $0x60] sm:$0xf]
    %v672 = vld [vmem:[#allocation2 + $0x64] sm:$0xf]
    %v673 = vld [vmem:[#allocation2 + $0x68] sm:$0xf]
    %v674 = vld [vmem:[#allocation2 + $0x6c] sm:$0xf]
    %v675 = vld [vmem:[#allocation2 + $0x70] sm:$0xf]
    %v676 = vld [vmem:[#allocation2 + $0x74] sm:$0xf]
    %v677 = vld [vmem:[#allocation2 + $0x78] sm:$0xf]
    %v678 = vld [vmem:[#allocation2 + $0x7c] sm:$0xf]
    %v679 = vld [vmem:[%s6] sm:$0x1]
    %v681 = vperm.slane %v679, 0
    %v715 = vunpack.c.l.b16 %v647
    %v716 = vunpack.c.l.b16 %v648
    %v717 = vunpack.c.l.b16 %v649
    %v718 = vunpack.c.l.b16 %v650
    %v719 = vunpack.c.l.b16 %v651
    %v720 = vunpack.c.l.b16 %v652
    %v721 = vunpack.c.l.b16 %v653
    %v722 = vunpack.c.l.b16 %v654
    %v723 = vunpack.c.l.b16 %v655
    %v724 = vunpack.c.l.b16 %v656
    %v725 = vunpack.c.l.b16 %v657
    %v726 = vunpack.c.l.b16 %v658
    %v727 = vunpack.c.l.b16 %v659
    %v728 = vunpack.c.l.b16 %v660
    %v729 = vunpack.c.l.b16 %v661
    %v730 = vunpack.c.l.b16 %v662
    %v731 = vunpack.c.l.b16 %v663
    %v732 = vunpack.c.l.b16 %v664
    %v733 = vunpack.c.l.b16 %v665
    %v734 = vunpack.c.l.b16 %v666
    %v735 = vunpack.c.l.b16 %v667
    %v736 = vunpack.c.l.b16 %v668
    %v737 = vunpack.c.l.b16 %v669
    %v738 = vunpack.c.l.b16 %v670
    %v739 = vunpack.c.l.b16 %v671
    %v740 = vunpack.c.l.b16 %v672
    %v741 = vunpack.c.l.b16 %v673
    %v742 = vunpack.c.l.b16 %v674
    %v743 = vunpack.c.l.b16 %v675
    %v744 = vunpack.c.l.b16 %v676
    %v745 = vunpack.c.l.b16 %v677
    %v746 = vunpack.c.l.b16 %v678
    %v747 = vpack.c.b16 %v716, %v715
    %v748 = vpack.c.b16 %v718, %v717
    %v749 = vpack.c.b16 %v720, %v719
    %v750 = vpack.c.b16 %v722, %v721
    %v751 = vpack.c.b16 %v724, %v723
    %v752 = vpack.c.b16 %v726, %v725
    %v753 = vpack.c.b16 %v728, %v727
    %v754 = vpack.c.b16 %v730, %v729
    %v755 = vpack.c.b16 %v732, %v731
    %v756 = vpack.c.b16 %v734, %v733
    %v757 = vpack.c.b16 %v736, %v735
    %v758 = vpack.c.b16 %v738, %v737
    %v759 = vpack.c.b16 %v740, %v739
    %v760 = vpack.c.b16 %v742, %v741
    %v761 = vpack.c.b16 %v744, %v743
    %v762 = vpack.c.b16 %v746, %v745
    %779 = vmatpush.bf16.msra.mxu0 %v754
    %780 = vmatpush.bf16.msra.mxu0 %v753
    %781 = vmatpush.bf16.msra.mxu0 %v752
    %782 = vmatpush.bf16.msra.mxu0 %v751
    %783 = vmatpush.bf16.msra.mxu0 %v750
    %784 = vmatpush.bf16.msra.mxu0 %v749
    %785 = vmatpush.bf16.msra.mxu0 %v748
    %786 = vmatpush.bf16.msra.mxu0 %v747
    %787 = vmatmul.bf16.gmra.mxu0 %v643
    %v788 = vpop.f32.mrf.mxu0
    %v789 = vadd.f32 %v681, %v788
    %v790 = vpop.f32.mrf.mxu0
    %v791 = vadd.f32 %v681, %v790
    %792 = vmatmul.bf16.gmra.mxu0 %v645
    %v793 = vpop.f32.mrf.mxu0
    %v794 = vadd.f32 %v681, %v793
    %v795 = vpop.f32.mrf.mxu0
    %v796 = vadd.f32 %v681, %v795
    %797 = vdwg.mxu0
    %798 = vmatpush.bf16.msra.mxu0 %v762
    %799 = vmatpush.bf16.msra.mxu0 %v761
    %800 = vmatpush.bf16.msra.mxu0 %v760
    %801 = vmatpush.bf16.msra.mxu0 %v759
    %802 = vmatpush.bf16.msra.mxu0 %v758
    %803 = vmatpush.bf16.msra.mxu0 %v757
    %804 = vmatpush.bf16.msra.mxu0 %v756
    %805 = vmatpush.bf16.msra.mxu0 %v755
    %806 = vmatmul.bf16.gmra.mxu0 %v644
    %v807 = vpop.f32.mrf.mxu0
    %v808 = vadd.f32 %v789, %v807
    %v809 = vpop.f32.mrf.mxu0
    %v810 = vadd.f32 %v791, %v809
    %811 = vmatmul.bf16.gmra.mxu0 %v646
    %v812 = vpop.f32.mrf.mxu0
    %v813 = vadd.f32 %v794, %v812
    %v814 = vpop.f32.mrf.mxu0
    %v815 = vadd.f32 %v796, %v814
    %816 = vdwg.mxu0
    %v817 = vadd.f32 %v42, %v808
    %v818 = vadd.f32 %v43, %v810
    %v819 = vadd.f32 %v44, %v813
    %v820 = vadd.f32 %v45, %v815
    %821 = vst [vmem:[%s7] sm:$0xff] %v817
    %822 = vst [vmem:[%s7 + $0x8] sm:$0xff] %v818
    %823 = vst [vmem:[%s7 + $0x10] sm:$0xff] %v819
    %824 = vst [vmem:[%s7 + $0x18] sm:$0xff] %v820
    // Predicated region
    $region34: #{pallas_forward.8} parent=1 // pred_check
      _
    $region35: #{pallas_forward.8} parent=1 // pred_check_branch
      %826 = sbr.rel (0) target = $region37
    $region36: #{pallas_forward.8} parent=1 // pred_region
      _
    $region37: #{pallas_forward.8} parent=1 // pred_fallthru
      _
    // Predicated region
    $region38: #{pallas_forward.8} parent=1 // pred_check
      _
    $region39: #{pallas_forward.8} parent=1 // pred_check_branch
      %828 = sbr.rel (0) target = $region41
    $region40: #{pallas_forward.8} parent=1 // pred_region
      _
    $region41: #{pallas_forward.8} parent=1 // pred_fallthru
      _
    %829 = vsyncpa [#allocation3], 1

// kernel: pallas_forward.5
$region0: #{pallas_forward.5}
  #allocation0 [shape = 'u32[]', space=smem, size = 0x4, offset = 0x4, fixed_abs, tag = 'smem constant byte address 0x4 - core index']
  #allocation1 [shape = 'u32[72,128]{1,0:T(1,128)}', space=vmem, size = 0x9000, scoped, tag = 'internal scratch']
  %s0 = inlined_call_operand.vmem [shape: f32[2,16,128], index: 0, kind: input, shape index: {}]
  %s1 = inlined_call_operand.vmem [shape: f32[1,128], index: 1, kind: input, shape index: {}]
  %s2 = inlined_call_operand.vmem [shape: f32[1,128], index: 2, kind: input, shape index: {}]
  %s3 = inlined_call_operand.hbm [shape: bf16[128,128], index: 3, kind: input, shape index: {}]
  %s4 = inlined_call_operand.hbm [shape: bf16[128,128], index: 4, kind: input, shape index: {}]
  %s5 = inlined_call_operand.hbm [shape: bf16[128,128], index: 5, kind: input, shape index: {}]
  %s6 = inlined_call_operand.hbm [shape: bf16[128,128], index: 6, kind: input, shape index: {}]
  %s7 = inlined_call_operand.vmem [shape: f32[2,16,128], index: 7, kind: output, shape index: {}]
  %s8 = sld [smem:[#allocation0]]
  $region77: #{pallas_forward.5} parent=0
    _
  %s10 = ssub.s32 1, %s8
  %s11 = scalar_select 0, %s10, %s8
  $region1: #{pallas_forward.5} parent=0
    #allocation2 [shape = 'u8[32768]{0}', space=vmem, size = 0x8000, scoped, tag = 'input window, operand 3, single buffered']
    #allocation3 [shape = 's32[2]{0}', space=sflag, size = 0x8, scoped, tag = 'scoped memory for pallas_forward.5']
    #allocation4 [shape = 'u8[32768]{0}', space=vmem, size = 0x8000, scoped, tag = 'input window, operand 4, single buffered']
    #allocation5 [shape = 's32[1]{0}', space=sflag, size = 0x4, scoped, tag = 'scoped memory for pallas_forward.5']
    #allocation6 [shape = 'u8[32768]{0}', space=vmem, size = 0x8000, scoped, tag = 'input window, operand 5, single buffered']
    #allocation7 [shape = 'u8[32768]{0}', space=vmem, size = 0x8000, scoped, tag = 'input window, operand 6, single buffered']
    #allocation8 [shape = 's32[1]{0}', space=sflag, size = 0x4, scoped, tag = 'scoped memory for pallas_forward.5']
    %12 = vsyncpa [#allocation3], 0
    %13 = vsyncpa [#allocation5], 0
    %14 = vsyncpa [#allocation8], 0
    loop: start=0, step=1, limit=4
    $region2: #{pallas_forward.5} parent=1 // loop_pre_header
      _
    $region3: #{pallas_forward.5} parent=1 // loop_header
      %s16 = sphi 0, %s20
      %p17 = scmp.ge.s32.totalorder %s16, 4
      %s26 = sphi 0, %s28
      %s29 = sphi 0, %s26
      %s30 = sphi 0, %s29
      %s46 = sphi 0, %s30
      %s50 = sphi 0, %s50
      %s52 = sphi 0, %s50
      %s53 = sphi 0, %s52
      %s67 = sphi 0, %s53
      %s71 = sphi 0, %s71
      %s73 = sphi 0, %s71
      %s74 = sphi 0, %s73
      %s88 = sphi 0, %s74
      %s92 = sphi 0, %s92
      %s94 = sphi 0, %s92
      %s95 = sphi 0, %s94
      %s109 = sphi 0, %s95
      %s113 = sphi 0, %s113
      %s115 = sphi 0, %s113
      %s116 = sphi 0, %s115
      %s130 = sphi 0, %s116
      %s134 = sphi 0, %s134
      %s136 = sphi 0, %s134
      %s137 = sphi 0, %s136
      %s151 = sphi 0, %s137
      %s155 = sphi 0, %s155
      %s157 = sphi 0, %s155
      %s158 = sphi 0, %s157
      %s172 = sphi 0, %s158
      %s178 = sphi 0, %s180
      %s181 = sphi 0, %s178
      %s182 = sphi 0, %s181
      %s198 = sphi 0, %s182
    $region4: #{pallas_forward.5} parent=1 // loop_header_branch
      %19 = sbr.rel (%p17) target = $region8
    $region5: #{pallas_forward.5} parent=1 // loop_body
      %s21 = ssub.s32 %s16, 1
      %s22 = ssub.s32 %s16, 2
      %s23 = sadd.s32 %s16, 1
      %s24 = ssub.s32 %s16, %s23
      %p25 = scmp.eq.s32.totalorder %s24, 0
      %s27 = sadd.s32 %s26, 1
      %s28 = scalar_select %p25, %s26, %s27
      %p31 = pneg %p25
      %p32 = scmp.eq.s32.totalorder %s16, 1
      %p33 = por %p31, %p32
      %p34 = scmp.ne.s32.totalorder %s26, %s29
      %p35 = scmp.eq.s32.totalorder %s16, 0
      %p36 = por %p34, %p35
      %p37 = scmp.ne.s32.totalorder %s26, %s29
      %p38 = scmp.eq.s32.totalorder %s21, 1
      %p39 = por %p37, %p38
      %p40 = scmp.ne.s32.totalorder %s29, %s30
      %p41 = scmp.eq.s32.totalorder %s21, 0
      %p42 = por %p40, %p41
      %p43 = scmp.ne.s32.totalorder %s29, %s30
      %p44 = scmp.eq.s32.totalorder %s22, 1
      %p45 = por %p43, %p44
      %p47 = scmp.ne.s32.totalorder %s30, %s46
      %p48 = scmp.eq.s32.totalorder %s22, 0
      %p49 = por %p47, %p48
      %s51 = sadd.s32 %s50, 1
      %p54 = scmp.eq.s32.totalorder %s16, 1
      %p55 = scmp.ne.s32.totalorder %s50, %s52
      %p56 = scmp.eq.s32.totalorder %s16, 0
      %p57 = por %p55, %p56
      %p58 = scmp.ne.s32.totalorder %s50, %s52
      %p59 = scmp.eq.s32.totalorder %s21, 1
      %p60 = por %p58, %p59
      %p61 = scmp.ne.s32.totalorder %s52, %s53
      %p62 = scmp.eq.s32.totalorder %s21, 0
      %p63 = por %p61, %p62
      %p64 = scmp.ne.s32.totalorder %s52, %s53
      %p65 = scmp.eq.s32.totalorder %s22, 1
      %p66 = por %p64, %p65
      %p68 = scmp.ne.s32.totalorder %s53, %s67
      %p69 = scmp.eq.s32.totalorder %s22, 0
      %p70 = por %p68, %p69
      %s72 = sadd.s32 %s71, 1
      %p75 = scmp.eq.s32.totalorder %s16, 1
      %p76 = scmp.ne.s32.totalorder %s71, %s73
      %p77 = scmp.eq.s32.totalorder %s16, 0
      %p78 = por %p76, %p77
      %p79 = scmp.ne.s32.totalorder %s71, %s73
      %p80 = scmp.eq.s32.totalorder %s21, 1
      %p81 = por %p79, %p80
      %p82 = scmp.ne.s32.totalorder %s73, %s74
      %p83 = scmp.eq.s32.totalorder %s21, 0
      %p84 = por %p82, %p83
      %p85 = scmp.ne.s32.totalorder %s73, %s74
      %p86 = scmp.eq.s32.totalorder %s22, 1
      %p87 = por %p85, %p86
      %p89 = scmp.ne.s32.totalorder %s74, %s88
      %p90 = scmp.eq.s32.totalorder %s22, 0
      %p91 = por %p89, %p90
      %s93 = sadd.s32 %s92, 1
      %p96 = scmp.eq.s32.totalorder %s16, 1
      %p97 = scmp.ne.s32.totalorder %s92, %s94
      %p98 = scmp.eq.s32.totalorder %s16, 0
      %p99 = por %p97, %p98
      %p100 = scmp.ne.s32.totalorder %s92, %s94
      %p101 = scmp.eq.s32.totalorder %s21, 1
      %p102 = por %p100, %p101
      %p103 = scmp.ne.s32.totalorder %s94, %s95
      %p104 = scmp.eq.s32.totalorder %s21, 0
      %p105 = por %p103, %p104
      %p106 = scmp.ne.s32.totalorder %s94, %s95
      %p107 = scmp.eq.s32.totalorder %s22, 1
      %p108 = por %p106, %p107
      %p110 = scmp.ne.s32.totalorder %s95, %s109
      %p111 = scmp.eq.s32.totalorder %s22, 0
      %p112 = por %p110, %p111
      %s114 = sadd.s32 %s113, 1
      %p117 = scmp.eq.s32.totalorder %s16, 1
      %p118 = scmp.ne.s32.totalorder %s113, %s115
      %p119 = scmp.eq.s32.totalorder %s16, 0
      %p120 = por %p118, %p119
      %p121 = scmp.ne.s32.totalorder %s113, %s115
      %p122 = scmp.eq.s32.totalorder %s21, 1
      %p123 = por %p121, %p122
      %p124 = scmp.ne.s32.totalorder %s115, %s116
      %p125 = scmp.eq.s32.totalorder %s21, 0
      %p126 = por %p124, %p125
      %p127 = scmp.ne.s32.totalorder %s115, %s116
      %p128 = scmp.eq.s32.totalorder %s22, 1
      %p129 = por %p127, %p128
      %p131 = scmp.ne.s32.totalorder %s116, %s130
      %p132 = scmp.eq.s32.totalorder %s22, 0
      %p133 = por %p131, %p132
      %s135 = sadd.s32 %s134, 1
      %p138 = scmp.eq.s32.totalorder %s16, 1
      %p139 = scmp.ne.s32.totalorder %s134, %s136
      %p140 = scmp.eq.s32.totalorder %s16, 0
      %p141 = por %p139, %p140
      %p142 = scmp.ne.s32.totalorder %s134, %s136
      %p143 = scmp.eq.s32.totalorder %s21, 1
      %p144 = por %p142, %p143
      %p145 = scmp.ne.s32.totalorder %s136, %s137
      %p146 = scmp.eq.s32.totalorder %s21, 0
      %p147 = por %p145, %p146
      %p148 = scmp.ne.s32.totalorder %s136, %s137
      %p149 = scmp.eq.s32.totalorder %s22, 1
      %p150 = por %p148, %p149
      %p152 = scmp.ne.s32.totalorder %s137, %s151
      %p153 = scmp.eq.s32.totalorder %s22, 0
      %p154 = por %p152, %p153
      %s156 = sadd.s32 %s155, 1
      %p159 = scmp.eq.s32.totalorder %s16, 1
      %p160 = scmp.ne.s32.totalorder %s155, %s157
      %p161 = scmp.eq.s32.totalorder %s16, 0
      %p162 = por %p160, %p161
      %p163 = scmp.ne.s32.totalorder %s155, %s157
      %p164 = scmp.eq.s32.totalorder %s21, 1
      %p165 = por %p163, %p164
      %p166 = scmp.ne.s32.totalorder %s157, %s158
      %p167 = scmp.eq.s32.totalorder %s21, 0
      %p168 = por %p166, %p167
      %p169 = scmp.ne.s32.totalorder %s157, %s158
      %p170 = scmp.eq.s32.totalorder %s22, 1
      %p171 = por %p169, %p170
      %p173 = scmp.ne.s32.totalorder %s158, %s172
      %p174 = scmp.eq.s32.totalorder %s22, 0
      %p175 = por %p173, %p174
      %s176 = ssub.s32 %s16, %s23
      %p177 = scmp.eq.s32.totalorder %s176, 0
      %s179 = sadd.s32 %s178, 1
      %s180 = scalar_select %p177, %s178, %s179
      %p183 = pneg %p177
      %p184 = scmp.eq.s32.totalorder %s16, 1
      %p185 = por %p183, %p184
      %p186 = scmp.ne.s32.totalorder %s178, %s181
      %p187 = scmp.eq.s32.totalorder %s16, 0
      %p188 = por %p186, %p187
      %p189 = scmp.ne.s32.totalorder %s178, %s181
      %p190 = scmp.eq.s32.totalorder %s21, 1
      %p191 = por %p189, %p190
      %p192 = scmp.ne.s32.totalorder %s181, %s182
      %p193 = scmp.eq.s32.totalorder %s21, 0
      %p194 = por %p192, %p193
      %p195 = scmp.ne.s32.totalorder %s181, %s182
      %p196 = scmp.eq.s32.totalorder %s22, 1
      %p197 = por %p195, %p196
      %p199 = scmp.ne.s32.totalorder %s182, %s198
      %p200 = scmp.eq.s32.totalorder %s22, 0
      %p201 = por %p199, %p200
      %p202 = scmp.le.s32.totalorder 1, %s16
      %p203 = scmp.lt.s32.totalorder %s16, 3
      %p204 = pnand %p202, %p203
      %p205 = pneg %p204
      // Predicated region
      $region9: #{pallas_forward.5} parent=5 // pred_check
        _
      $region10: #{pallas_forward.5} parent=5 // pred_check_branch
        %207 = sbr.rel (%p204) target = $region12
      $region11: #{pallas_forward.5} parent=5 // pred_region
        %s208 = ssub.s32 %s16, 1
        // Predicated region
        $region13: #{pallas_forward.5} parent=11 // pred_check
          %p209 = pneg %p63
        $region14: #{pallas_forward.5} parent=11 // pred_check_branch
          %211 = sbr.rel (%p209) target = $region16
        $region15: #{pallas_forward.5} parent=11 // pred_region
          _
        $region16: #{pallas_forward.5} parent=11 // pred_fallthru
          _
        // Predicated region
        $region17: #{pallas_forward.5} parent=11 // pred_check
          %p212 = pneg %p84
        $region18: #{pallas_forward.5} parent=11 // pred_check_branch
          %214 = sbr.rel (%p212) target = $region20
        $region19: #{pallas_forward.5} parent=11 // pred_region
          _
        $region20: #{pallas_forward.5} parent=11 // pred_fallthru
          _
        // Predicated region
        $region21: #{pallas_forward.5} parent=11 // pred_check
          %p215 = pneg %p105
        $region22: #{pallas_forward.5} parent=11 // pred_check_branch
          %217 = sbr.rel (%p215) target = $region24
        $region23: #{pallas_forward.5} parent=11 // pred_region
          %219 = vsyncadd [#allocation3], 0
          %s220 = sshll.u32 %s3, 4
          %s221 = int_to_ptr.hbm [resolvable:$true] %s220
          %s222 = sshll.u32 [#allocation2], 4
          %s223 = int_to_ptr.vmem [resolvable:$true] %s222
          %228 = dma.hbm_to_vmem [thread:$0]  %s221, 1024, %s223, [#allocation3], 64, 64, 4
        $region24: #{pallas_forward.5} parent=11 // pred_fallthru
          _
        // Predicated region
        $region25: #{pallas_forward.5} parent=11 // pred_check
          %p229 = pneg %p126
        $region26: #{pallas_forward.5} parent=11 // pred_check_branch
          %231 = sbr.rel (%p229) target = $region28
        $region27: #{pallas_forward.5} parent=11 // pred_region
          %233 = vsyncadd [#allocation5], 0
          %s234 = sshll.u32 %s4, 4
          %s235 = int_to_ptr.hbm [resolvable:$true] %s234
          %s236 = sshll.u32 [#allocation4], 4
          %s237 = int_to_ptr.vmem [resolvable:$true] %s236
          %242 = dma.hbm_to_vmem [thread:$0]  %s235, 1024, %s237, [#allocation5], 64, 64, 4
        $region28: #{pallas_forward.5} parent=11 // pred_fallthru
          _
        // Predicated region
        $region29: #{pallas_forward.5} parent=11 // pred_check
          %p243 = pneg %p147
        $region30: #{pallas_forward.5} parent=11 // pred_check_branch
          %245 = sbr.rel (%p243) target = $region32
        $region31: #{pallas_forward.5} parent=11 // pred_region
          %247 = vsyncadd [#allocation5], 0
          %s248 = sshll.u32 %s5, 4
          %s249 = int_to_ptr.hbm [resolvable:$true] %s248
          %s250 = sshll.u32 [#allocation6], 4
          %s251 = int_to_ptr.vmem [resolvable:$true] %s250
          %256 = dma.hbm_to_vmem [thread:$0]  %s249, 1024, %s251, [#allocation5], 64, 64, 4
        $region32: #{pallas_forward.5} parent=11 // pred_fallthru
          _
        // Predicated region
        $region33: #{pallas_forward.5} parent=11 // pred_check
          %p257 = pneg %p168
        $region34: #{pallas_forward.5} parent=11 // pred_check_branch
          %259 = sbr.rel (%p257) target = $region36
        $region35: #{pallas_forward.5} parent=11 // pred_region
          %261 = vsyncadd [#allocation8], 0
          %s262 = sshll.u32 %s6, 4
          %s263 = int_to_ptr.hbm [resolvable:$true] %s262
          %s264 = sshll.u32 [#allocation7], 4
          %s265 = int_to_ptr.vmem [resolvable:$true] %s264
          %270 = dma.hbm_to_vmem [thread:$0]  %s263, 1024, %s265, [#allocation8], 64, 64, 4
        $region36: #{pallas_forward.5} parent=11 // pred_fallthru
          _
      $region12: #{pallas_forward.5} parent=5 // pred_fallthru
        _
      %p271 = scmp.lt.s32.totalorder %s16, 2
      // Predicated region
      $region37: #{pallas_forward.5} parent=5 // pred_check
        %p272 = pneg %p271
      $region38: #{pallas_forward.5} parent=5 // pred_check_branch
        %274 = sbr.rel (%p272) target = $region40
      $region39: #{pallas_forward.5} parent=5 // pred_region
        // Predicated region
        $region41: #{pallas_forward.5} parent=39 // pred_check
          %p275 = pneg %p36
        $region42: #{pallas_forward.5} parent=39 // pred_check_branch
          %277 = sbr.rel (%p275) target = $region44
        $region43: #{pallas_forward.5} parent=39 // pred_region
          %p278 = scmp.lt.s32.totalorder %s16, 1
          %s279 = scalar_select %p278, %s16, 1
          %s280 = smul.addr %s279, 2
          %s281 = smul.addr %s280, 8
          %s282 = scalar_lea.vmem %s0, %s281
        $region44: #{pallas_forward.5} parent=39 // pred_fallthru
          _
      $region40: #{pallas_forward.5} parent=5 // pred_fallthru
        _
      %p283 = scmp.le.s32.totalorder 1, %s16
      %p284 = scmp.lt.s32.totalorder %s16, 3
      %p285 = pnand %p283, %p284
      %p286 = pneg %p285
      // Predicated region
      $region45: #{pallas_forward.5} parent=5 // pred_check
        _
      $region46: #{pallas_forward.5} parent=5 // pred_check_branch
        %288 = sbr.rel (%p285) target = $region48
      $region47: #{pallas_forward.5} parent=5 // pred_region
        %s289 = ssub.s32 %s16, 1
        // Predicated region
        $region49: #{pallas_forward.5} parent=47 // pred_check
          %p290 = pneg %p105
        $region50: #{pallas_forward.5} parent=47 // pred_check_branch
          %292 = sbr.rel (%p290) target = $region52
        $region51: #{pallas_forward.5} parent=47 // pred_region
          %294 = dma.done [#allocation3], 1024
        $region52: #{pallas_forward.5} parent=47 // pred_fallthru
          _
        // Predicated region
        $region53: #{pallas_forward.5} parent=47 // pred_check
          %p295 = pneg %p126
        $region54: #{pallas_forward.5} parent=47 // pred_check_branch
          %297 = sbr.rel (%p295) target = $region56
        $region55: #{pallas_forward.5} parent=47 // pred_region
          %299 = dma.done [#allocation5], 1024
        $region56: #{pallas_forward.5} parent=47 // pred_fallthru
          _
        // Predicated region
        $region57: #{pallas_forward.5} parent=47 // pred_check
          %p300 = pneg %p147
        $region58: #{pallas_forward.5} parent=47 // pred_check_branch
          %302 = sbr.rel (%p300) target = $region60
        $region59: #{pallas_forward.5} parent=47 // pred_region
          %304 = dma.done [#allocation5], 1024
        $region60: #{pallas_forward.5} parent=47 // pred_fallthru
          _
        // Predicated region
        $region61: #{pallas_forward.5} parent=47 // pred_check
          %p305 = pneg %p168
        $region62: #{pallas_forward.5} parent=47 // pred_check_branch
          %307 = sbr.rel (%p305) target = $region64
        $region63: #{pallas_forward.5} parent=47 // pred_region
          %309 = dma.done [#allocation8], 1024
        $region64: #{pallas_forward.5} parent=47 // pred_fallthru
          _
        %p310 = scmp.lt.s32.totalorder %s21, 1
        %s311 = scalar_select %p310, %s21, 1
        %s312 = smul.addr %s311, 2
        %s313 = smul.addr %s312, 8
        %s314 = scalar_lea.vmem %s0, %s313
        %p315 = pneg %p42
        %p316 = pneg %p39
        %p317 = pneg %p63
        %p318 = pneg %p60
        %p319 = pneg %p84
        %p320 = pneg %p81
        %p321 = pneg %p105
        %p322 = pneg %p102
        %p323 = pneg %p126
        %p324 = pneg %p123
        %p325 = pneg %p147
        %p326 = pneg %p144
        %p327 = pneg %p168
        %p328 = pneg %p165
        %p329 = pneg %p194
        %p330 = pneg %p191
        %p331 = scmp.lt.s32.totalorder %s21, 1
        %s332 = scalar_select %p331, %s21, 1
        %s333 = smul.addr %s332, 2
        %s334 = smul.addr %s333, 8
        %s335 = scalar_lea.vmem %s7, %s334
        %p336 = scmp.lt.s32.totalorder %s21, 1
        %s337 = scalar_select %p336, %s21, 1
        %s338 = smul.addr %s337, 2
        %s339 = smul.addr %s338, 8
        %s340 = scalar_lea.vmem %s0, %s339
        %p341 = scmp.lt.s32.totalorder %s21, 1
        %s342 = scalar_select %p341, %s21, 1
        %s343 = smul.addr %s342, 2
        %s344 = smul.addr %s343, 8
        %s345 = scalar_lea.vmem %s7, %s344
        %v347 = vld [vmem:[%s340] sm:$0xff]
        %v348 = vld [vmem:[%s340 + $0x8] sm:$0xff]
        %v349 = vld [vmem:[%s1] sm:$0x1]
        %v350 = vld [vmem:[%s2] sm:$0x1]
        %351 = vadd.xlane.f32.xlu0 %v347
        %v352 = vpop.xlane.xlu0 %351
        %353 = vadd.xlane.f32.xlu0 %v348
        %v354 = vpop.xlane.xlu0 %353
        %v355 = vrcp.pop 128.0
        %v356 = vmul.f32 128.0, %v355
        %v357 = vsub.f32 1.0, %v356
        %v358 = vmul.f32 %v355, %v357
        %v359 = vadd.f32 %v355, %v358
        %vm360 = vweird.f32 %v355
        %v361 = vsel %vm360, %v355, %v359
        %v362 = vmul.f32 %v352, %v361
        %v363 = vmul.f32 %v354, %v361
        %v364 = vsub.f32 %v347, %v362
        %v365 = vsub.f32 %v348, %v363
        %v366 = vmul.f32 %v364, %v364
        %v367 = vmul.f32 %v365, %v365
        %368 = vadd.xlane.f32.xlu0 %v366
        %v369 = vpop.xlane.xlu0 %368
        %370 = vadd.xlane.f32.xlu0 %v367
        %v371 = vpop.xlane.xlu0 %370
        %v372 = vmul.f32 %v369, %v361
        %v373 = vmul.f32 %v371, %v361
        %v374 = vadd.f32 %v372, 1e-12
        %v375 = vadd.f32 %v373, 1e-12
        %v376 = vrsqrt.pop %v374
        %v377 = vmul.f32 %v376, %v374
        %v378 = vmul.f32 %v377, %v376
        %v379 = vmul.f32 0.5, %v378
        %v380 = vsub.f32 1.5, %v379
        %v381 = vmul.f32 %v376, %v380
        %vm382 = vweird.f32 %v374
        %vm383 = vweird.f32 %v376
        %vm384 = vmor %vm382, %vm383
        %v385 = vsel %vm384, %v376, %v381
        %v386 = vrsqrt.pop %v375
        %v387 = vmul.f32 %v386, %v375
        %v388 = vmul.f32 %v387, %v386
        %v389 = vmul.f32 0.5, %v388
        %v390 = vsub.f32 1.5, %v389
        %v391 = vmul.f32 %v386, %v390
        %vm392 = vweird.f32 %v375
        %vm393 = vweird.f32 %v386
        %vm394 = vmor %vm392, %vm393
        %v395 = vsel %vm394, %v386, %v391
        %v396 = vmul.f32 %v364, %v385
        %v397 = vmul.f32 %v365, %v395
        %v399 = vperm.slane %v349, 0
        %v401 = vmul.f32 %v396, %v399
        %v402 = vmul.f32 %v397, %v399
        %v404 = vperm.slane %v350, 0
        %v406 = vadd.f32 %v401, %v404
        %v407 = vadd.f32 %v402, %v404
        %v408 = vpack.c.bf16 %v407, %v406
        %v409 = vld [vmem:[#allocation2] sm:$0xf]
        %v410 = vld [vmem:[#allocation2 + $0x4] sm:$0xf]
        %v411 = vld [vmem:[#allocation2 + $0x8] sm:$0xf]
        %v412 = vld [vmem:[#allocation2 + $0xc] sm:$0xf]
        %v413 = vld [vmem:[#allocation2 + $0x10] sm:$0xf]
        %v414 = vld [vmem:[#allocation2 + $0x14] sm:$0xf]
        %v415 = vld [vmem:[#allocation2 + $0x18] sm:$0xf]
        %v416 = vld [vmem:[#allocation2 + $0x1c] sm:$0xf]
        %v417 = vld [vmem:[#allocation2 + $0x20] sm:$0xf]
        %v418 = vld [vmem:[#allocation2 + $0x24] sm:$0xf]
        %v419 = vld [vmem:[#allocation2 + $0x28] sm:$0xf]
        %v420 = vld [vmem:[#allocation2 + $0x2c] sm:$0xf]
        %v421 = vld [vmem:[#allocation2 + $0x30] sm:$0xf]
        %v422 = vld [vmem:[#allocation2 + $0x34] sm:$0xf]
        %v423 = vld [vmem:[#allocation2 + $0x38] sm:$0xf]
        %v424 = vld [vmem:[#allocation2 + $0x3c] sm:$0xf]
        %v441 = vunpack.c.l.b16 %v409
        %v442 = vunpack.c.l.b16 %v410
        %v443 = vunpack.c.l.b16 %v411
        %v444 = vunpack.c.l.b16 %v412
        %v445 = vunpack.c.l.b16 %v413
        %v446 = vunpack.c.l.b16 %v414
        %v447 = vunpack.c.l.b16 %v415
        %v448 = vunpack.c.l.b16 %v416
        %v449 = vunpack.c.l.b16 %v417
        %v450 = vunpack.c.l.b16 %v418
        %v451 = vunpack.c.l.b16 %v419
        %v452 = vunpack.c.l.b16 %v420
        %v453 = vunpack.c.l.b16 %v421
        %v454 = vunpack.c.l.b16 %v422
        %v455 = vunpack.c.l.b16 %v423
        %v456 = vunpack.c.l.b16 %v424
        %v457 = vpack.c.b16 %v442, %v441
        %v458 = vpack.c.b16 %v444, %v443
        %v459 = vpack.c.b16 %v446, %v445
        %v460 = vpack.c.b16 %v448, %v447
        %v461 = vpack.c.b16 %v450, %v449
        %v462 = vpack.c.b16 %v452, %v451
        %v463 = vpack.c.b16 %v454, %v453
        %v464 = vpack.c.b16 %v456, %v455
        %473 = vmatpush.bf16.msra.mxu0 %v464
        %474 = vmatpush.bf16.msra.mxu0 %v463
        %475 = vmatpush.bf16.msra.mxu0 %v462
        %476 = vmatpush.bf16.msra.mxu0 %v461
        %477 = vmatpush.bf16.msra.mxu0 %v460
        %478 = vmatpush.bf16.msra.mxu0 %v459
        %479 = vmatpush.bf16.msra.mxu0 %v458
        %480 = vmatpush.bf16.msra.mxu0 %v457
        %481 = vmatmul.bf16.gmra.mxu0 %v408
        %v482 = vpop.f32.mrf.mxu0
        %v483 = vadd.f32 0.0, %v482
        %v484 = vpop.f32.mrf.mxu0
        %v485 = vadd.f32 0.0, %v484
        %486 = vdwg.mxu0
        %v487 = vld [vmem:[#allocation4] sm:$0xf]
        %v488 = vld [vmem:[#allocation4 + $0x4] sm:$0xf]
        %v489 = vld [vmem:[#allocation4 + $0x8] sm:$0xf]
        %v490 = vld [vmem:[#allocation4 + $0xc] sm:$0xf]
        %v491 = vld [vmem:[#allocation4 + $0x10] sm:$0xf]
        %v492 = vld [vmem:[#allocation4 + $0x14] sm:$0xf]
        %v493 = vld [vmem:[#allocation4 + $0x18] sm:$0xf]
        %v494 = vld [vmem:[#allocation4 + $0x1c] sm:$0xf]
        %v495 = vld [vmem:[#allocation4 + $0x20] sm:$0xf]
        %v496 = vld [vmem:[#allocation4 + $0x24] sm:$0xf]
        %v497 = vld [vmem:[#allocation4 + $0x28] sm:$0xf]
        %v498 = vld [vmem:[#allocation4 + $0x2c] sm:$0xf]
        %v499 = vld [vmem:[#allocation4 + $0x30] sm:$0xf]
        %v500 = vld [vmem:[#allocation4 + $0x34] sm:$0xf]
        %v501 = vld [vmem:[#allocation4 + $0x38] sm:$0xf]
        %v502 = vld [vmem:[#allocation4 + $0x3c] sm:$0xf]
        %v519 = vunpack.c.l.b16 %v487
        %v520 = vunpack.c.l.b16 %v488
        %v521 = vunpack.c.l.b16 %v489
        %v522 = vunpack.c.l.b16 %v490
        %v523 = vunpack.c.l.b16 %v491
        %v524 = vunpack.c.l.b16 %v492
        %v525 = vunpack.c.l.b16 %v493
        %v526 = vunpack.c.l.b16 %v494
        %v527 = vunpack.c.l.b16 %v495
        %v528 = vunpack.c.l.b16 %v496
        %v529 = vunpack.c.l.b16 %v497
        %v530 = vunpack.c.l.b16 %v498
        %v531 = vunpack.c.l.b16 %v499
        %v532 = vunpack.c.l.b16 %v500
        %v533 = vunpack.c.l.b16 %v501
        %v534 = vunpack.c.l.b16 %v502
        %v535 = vpack.c.b16 %v520, %v519
        %v536 = vpack.c.b16 %v522, %v521
        %v537 = vpack.c.b16 %v524, %v523
        %v538 = vpack.c.b16 %v526, %v525
        %v539 = vpack.c.b16 %v528, %v527
        %v540 = vpack.c.b16 %v530, %v529
        %v541 = vpack.c.b16 %v532, %v531
        %v542 = vpack.c.b16 %v534, %v533
        %551 = vmatpush.bf16.msra.mxu0 %v542
        %552 = vmatpush.bf16.msra.mxu0 %v541
        %553 = vmatpush.bf16.msra.mxu0 %v540
        %554 = vmatpush.bf16.msra.mxu0 %v539
        %555 = vmatpush.bf16.msra.mxu0 %v538
        %556 = vmatpush.bf16.msra.mxu0 %v537
        %557 = vmatpush.bf16.msra.mxu0 %v536
        %558 = vmatpush.bf16.msra.mxu0 %v535
        %559 = vmatmul.bf16.gmra.mxu0 %v408
        %v560 = vpop.f32.mrf.mxu0
        %v561 = vadd.f32 0.0, %v560
        %v562 = vpop.f32.mrf.mxu0
        %v563 = vadd.f32 0.0, %v562
        %564 = vdwg.mxu0
        %v565 = vld [vmem:[#allocation6] sm:$0xf]
        %v566 = vld [vmem:[#allocation6 + $0x4] sm:$0xf]
        %v567 = vld [vmem:[#allocation6 + $0x8] sm:$0xf]
        %v568 = vld [vmem:[#allocation6 + $0xc] sm:$0xf]
        %v569 = vld [vmem:[#allocation6 + $0x10] sm:$0xf]
        %v570 = vld [vmem:[#allocation6 + $0x14] sm:$0xf]
        %v571 = vld [vmem:[#allocation6 + $0x18] sm:$0xf]
        %v572 = vld [vmem:[#allocation6 + $0x1c] sm:$0xf]
        %v573 = vld [vmem:[#allocation6 + $0x20] sm:$0xf]
        %v574 = vld [vmem:[#allocation6 + $0x24] sm:$0xf]
        %v575 = vld [vmem:[#allocation6 + $0x28] sm:$0xf]
        %v576 = vld [vmem:[#allocation6 + $0x2c] sm:$0xf]
        %v577 = vld [vmem:[#allocation6 + $0x30] sm:$0xf]
        %v578 = vld [vmem:[#allocation6 + $0x34] sm:$0xf]
        %v579 = vld [vmem:[#allocation6 + $0x38] sm:$0xf]
        %v580 = vld [vmem:[#allocation6 + $0x3c] sm:$0xf]
        %v597 = vunpack.c.l.b16 %v565
        %v598 = vunpack.c.l.b16 %v566
        %v599 = vunpack.c.l.b16 %v567
        %v600 = vunpack.c.l.b16 %v568
        %v601 = vunpack.c.l.b16 %v569
        %v602 = vunpack.c.l.b16 %v570
        %v603 = vunpack.c.l.b16 %v571
        %v604 = vunpack.c.l.b16 %v572
        %v605 = vunpack.c.l.b16 %v573
        %v606 = vunpack.c.l.b16 %v574
        %v607 = vunpack.c.l.b16 %v575
        %v608 = vunpack.c.l.b16 %v576
        %v609 = vunpack.c.l.b16 %v577
        %v610 = vunpack.c.l.b16 %v578
        %v611 = vunpack.c.l.b16 %v579
        %v612 = vunpack.c.l.b16 %v580
        %v613 = vpack.c.b16 %v598, %v597
        %v614 = vpack.c.b16 %v600, %v599
        %v615 = vpack.c.b16 %v602, %v601
        %v616 = vpack.c.b16 %v604, %v603
        %v617 = vpack.c.b16 %v606, %v605
        %v618 = vpack.c.b16 %v608, %v607
        %v619 = vpack.c.b16 %v610, %v609
        %v620 = vpack.c.b16 %v612, %v611
        %629 = vmatpush.bf16.msra.mxu0 %v620
        %630 = vmatpush.bf16.msra.mxu0 %v619
        %631 = vmatpush.bf16.msra.mxu0 %v618
        %632 = vmatpush.bf16.msra.mxu0 %v617
        %633 = vmatpush.bf16.msra.mxu0 %v616
        %634 = vmatpush.bf16.msra.mxu0 %v615
        %635 = vmatpush.bf16.msra.mxu0 %v614
        %636 = vmatpush.bf16.msra.mxu0 %v613
        %637 = vmatmul.bf16.gmra.mxu0 %v408
        %v638 = vpop.f32.mrf.mxu0
        %v639 = vadd.f32 0.0, %v638
        %v640 = vpop.f32.mrf.mxu0
        %v641 = vadd.f32 0.0, %v640
        %642 = vdwg.mxu0
        %v643 = vlaneseq
        %v644 = vshrl.u32 %v643, 7
        %v645 = vadd.s32 %v644, 8
        %v646 = vlaneseq
        %v647 = vand.u32 %v646, 127
        %vm648 = vcmp.le.s32.totalorder %v647, %v644
        %vm649 = vcmp.le.s32.totalorder %v647, %v645
        %v650 = vld [vmem:[#allocation7] sm:$0xf]
        %v651 = vld [vmem:[#allocation7 + $0x4] sm:$0xf]
        %v652 = vld [vmem:[#allocation7 + $0x8] sm:$0xf]
        %v653 = vld [vmem:[#allocation7 + $0xc] sm:$0xf]
        %v654 = vld [vmem:[#allocation7 + $0x10] sm:$0xf]
        %v655 = vld [vmem:[#allocation7 + $0x14] sm:$0xf]
        %v656 = vld [vmem:[#allocation7 + $0x18] sm:$0xf]
        %v657 = vld [vmem:[#allocation7 + $0x1c] sm:$0xf]
        %v658 = vld [vmem:[#allocation7 + $0x20] sm:$0xf]
        %v659 = vld [vmem:[#allocation7 + $0x24] sm:$0xf]
        %v660 = vld [vmem:[#allocation7 + $0x28] sm:$0xf]
        %v661 = vld [vmem:[#allocation7 + $0x2c] sm:$0xf]
        %v662 = vld [vmem:[#allocation7 + $0x30] sm:$0xf]
        %v663 = vld [vmem:[#allocation7 + $0x34] sm:$0xf]
        %v664 = vld [vmem:[#allocation7 + $0x38] sm:$0xf]
        %v665 = vld [vmem:[#allocation7 + $0x3c] sm:$0xf]
        %v666 = vpack.c.bf16 %v485, %v483
        %v667 = vpack.c.bf16 %v563, %v561
        %v668 = vpack.c.bf16 %v641, %v639
        %vm669 = vcmask 261120
        %v671 = vsel %vm669, %v666, 0
        %v674 = vsel %vm669, %v667, 0
        %676 = vmatpush.bf16.xpose.msra.mxu0 0
        %677 = vmatpush.bf16.xpose.msra.mxu0 0
        %678 = vmatpush.bf16.xpose.msra.mxu0 0
        %679 = vmatpush.bf16.xpose.msra.mxu0 0
        %680 = vmatpush.bf16.xpose.msra.mxu0 0
        %681 = vmatpush.bf16.xpose.msra.mxu0 0
        %682 = vmatpush.bf16.xpose.msra.mxu0 0
        %683 = vmatpush.bf16.xpose.msra.mxu0 %v674
        %684 = vmatmul.bf16.gmra.mxu0 %v671
        %v685 = vpop.f32.mrf.mxu0
        %v686 = vadd.f32 0.0, %v685
        %v687 = vpop.f32.mrf.mxu0
        %v688 = vadd.f32 0.0, %v687
        %689 = vdwg.mxu0
        %v690 = vmul.f32 %v686, 0.17677669
        %v691 = vmul.f32 %v688, 0.17677669
        %v692 = vsel %vm648, %v690, -inf
        %v693 = vsel %vm649, %v691, -inf
        %vm694 = vcmask 130048
        %v695 = vsel %vm694, %v692, -inf
        %696 = vmax.xlane.f32.xlu0 %v695
        %v697 = vpop.xlane.xlu0 %696
        %v698 = vsel %vm694, %v693, -inf
        %699 = vmax.xlane.f32.xlu0 %v698
        %v700 = vpop.xlane.xlu0 %699
        %v701 = vsub.f32 %v692, %v697
        %v702 = vsub.f32 %v693, %v700
        %v703 = vmul.f32 %v701, 1.442695
        %v704 = vpow.pop %v703
        %v705 = vmul.f32 %v702, 1.442695
        %v706 = vpow.pop %v705
        %v707 = vsel %vm694, %v704, 0.0
        %708 = vadd.xlane.f32.xlu0 %v707
        %v709 = vpop.xlane.xlu0 %708
        %v710 = vsel %vm694, %v706, 0.0
        %711 = vadd.xlane.f32.xlu0 %v710
        %v712 = vpop.xlane.xlu0 %711
        %v713 = vrcp.pop %v709
        %v714 = vrcp.pop %v712
        %v715 = vmul.f32 %v704, %v713
        %v716 = vmul.f32 %v706, %v714
        %v717 = vpack.c.bf16 %v716, %v715
        %v719 = vsel %vm694, %v717, 0
        %721 = vmatpush.bf16.msra.mxu0 0
        %722 = vmatpush.bf16.msra.mxu0 0
        %723 = vmatpush.bf16.msra.mxu0 0
        %724 = vmatpush.bf16.msra.mxu0 0
        %725 = vmatpush.bf16.msra.mxu0 0
        %726 = vmatpush.bf16.msra.mxu0 0
        %727 = vmatpush.bf16.msra.mxu0 0
        %728 = vmatpush.bf16.msra.mxu0 %v668
        %729 = vmatmul.bf16.gmra.mxu0 %v719
        %v730 = vpop.f32.mrf.mxu0
        %v731 = vadd.f32 0.0, %v730
        %v732 = vpop.f32.mrf.mxu0
        %v733 = vadd.f32 0.0, %v732
        %734 = vdwg.mxu0
        %v735 = vpack.c.bf16 %v733, %v731
        %737 = vrot.lane.b32.xlu0 %v666, 96
        %v738 = vpop.permute.xlu0 %737
        %740 = vrot.lane.b32.xlu0 %v667, 96
        %v741 = vpop.permute.xlu0 %740
        %v743 = vsel %vm669, %v738, 0
        %v746 = vsel %vm669, %v741, 0
        %748 = vmatpush.bf16.xpose.msra.mxu0 0
        %749 = vmatpush.bf16.xpose.msra.mxu0 0
        %750 = vmatpush.bf16.xpose.msra.mxu0 0
        %751 = vmatpush.bf16.xpose.msra.mxu0 0
        %752 = vmatpush.bf16.xpose.msra.mxu0 0
        %753 = vmatpush.bf16.xpose.msra.mxu0 0
        %754 = vmatpush.bf16.xpose.msra.mxu0 0
        %755 = vmatpush.bf16.xpose.msra.mxu0 %v746
        %756 = vmatmul.bf16.gmra.mxu0 %v743
        %v757 = vpop.f32.mrf.mxu0
        %v758 = vadd.f32 0.0, %v757
        %v759 = vpop.f32.mrf.mxu0
        %v760 = vadd.f32 0.0, %v759
        %761 = vdwg.mxu0
        %v762 = vmul.f32 %v758, 0.17677669
        %v763 = vmul.f32 %v760, 0.17677669
        %v764 = vsel %vm648, %v762, -inf
        %v765 = vsel %vm649, %v763, -inf
        %v766 = vsel %vm694, %v764, -inf
        %767 = vmax.xlane.f32.xlu0 %v766
        %v768 = vpop.xlane.xlu0 %767
        %v769 = vsel %vm694, %v765, -inf
        %770 = vmax.xlane.f32.xlu0 %v769
        %v771 = vpop.xlane.xlu0 %770
        %v772 = vsub.f32 %v764, %v768
        %v773 = vsub.f32 %v765, %v771
        %v774 = vmul.f32 %v772, 1.442695
        %v775 = vpow.pop %v774
        %v776 = vmul.f32 %v773, 1.442695
        %v777 = vpow.pop %v776
        %v778 = vsel %vm694, %v775, 0.0
        %779 = vadd.xlane.f32.xlu0 %v778
        %v780 = vpop.xlane.xlu0 %779
        %v781 = vsel %vm694, %v777, 0.0
        %782 = vadd.xlane.f32.xlu0 %v781
        %v783 = vpop.xlane.xlu0 %782
        %v784 = vrcp.pop %v780
        %v785 = vrcp.pop %v783
        %v786 = vmul.f32 %v775, %v784
        %v787 = vmul.f32 %v777, %v785
        %v788 = vpack.c.bf16 %v787, %v786
        %790 = vrot.lane.b32.xlu0 %v668, 96
        %v791 = vpop.permute.xlu0 %790
        %v794 = vsel %vm694, %v788, 0
        %796 = vmatpush.bf16.msra.mxu0 0
        %797 = vmatpush.bf16.msra.mxu0 0
        %798 = vmatpush.bf16.msra.mxu0 0
        %799 = vmatpush.bf16.msra.mxu0 0
        %800 = vmatpush.bf16.msra.mxu0 0
        %801 = vmatpush.bf16.msra.mxu0 0
        %802 = vmatpush.bf16.msra.mxu0 0
        %803 = vmatpush.bf16.msra.mxu0 %v791
        %804 = vmatmul.bf16.gmra.mxu0 %v794
        %v805 = vpop.f32.mrf.mxu0
        %v806 = vadd.f32 0.0, %v805
        %v807 = vpop.f32.mrf.mxu0
        %v808 = vadd.f32 0.0, %v807
        %809 = vdwg.mxu0
        %v810 = vpack.c.bf16 %v808, %v806
        %v815 = vunpack.c.l.b16 %v654
        %v816 = vunpack.c.l.b16 %v655
        %v817 = vunpack.c.l.b16 %v656
        %v818 = vunpack.c.l.b16 %v657
        %v819 = vpack.c.b16 %v816, %v815
        %v820 = vpack.c.b16 %v818, %v817
        %v824 = vsel %vm669, %v810, 0
        %826 = vmatpush.bf16.msra.mxu0 0
        %827 = vmatpush.bf16.msra.mxu0 0
        %828 = vmatpush.bf16.msra.mxu0 0
        %829 = vmatpush.bf16.msra.mxu0 0
        %830 = vmatpush.bf16.msra.mxu0 0
        %831 = vmatpush.bf16.msra.mxu0 0
        %832 = vmatpush.bf16.msra.mxu0 %v820
        %833 = vmatpush.bf16.msra.mxu0 %v819
        %834 = vmatmul.bf16.gmra.mxu0 %v824
        %v835 = vpop.f32.mrf.mxu0
        %v836 = vadd.f32 0.0, %v835
        %v837 = vpop.f32.mrf.mxu0
        %v838 = vadd.f32 0.0, %v837
        %839 = vdwg.mxu0
        %v844 = vunpack.c.l.b16 %v650
        %v845 = vunpack.c.l.b16 %v651
        %v846 = vunpack.c.l.b16 %v652
        %v847 = vunpack.c.l.b16 %v653
        %v848 = vpack.c.b16 %v845, %v844
        %v849 = vpack.c.b16 %v847, %v846
        %v853 = vsel %vm669, %v735, 0
        %855 = vmatpush.bf16.msra.mxu0 0
        %856 = vmatpush.bf16.msra.mxu0 0
        %857 = vmatpush.bf16.msra.mxu0 0
        %858 = vmatpush.bf16.msra.mxu0 0
        %859 = vmatpush.bf16.msra.mxu0 0
        %860 = vmatpush.bf16.msra.mxu0 0
        %861 = vmatpush.bf16.msra.mxu0 %v849
        %862 = vmatpush.bf16.msra.mxu0 %v848
        %863 = vmatmul.bf16.gmra.mxu0 %v853
        %v864 = vpop.f32.mrf.mxu0
        %v865 = vadd.f32 %v836, %v864
        %v866 = vpop.f32.mrf.mxu0
        %v867 = vadd.f32 %v838, %v866
        %868 = vdwg.mxu0
        %869 = vrot.lane.b32.xlu0 %v666, 64
        %v870 = vpop.permute.xlu0 %869
        %871 = vrot.lane.b32.xlu0 %v667, 64
        %v872 = vpop.permute.xlu0 %871
        %v874 = vsel %vm669, %v870, 0
        %v877 = vsel %vm669, %v872, 0
        %879 = vmatpush.bf16.xpose.msra.mxu0 0
        %880 = vmatpush.bf16.xpose.msra.mxu0 0
        %881 = vmatpush.bf16.xpose.msra.mxu0 0
        %882 = vmatpush.bf16.xpose.msra.mxu0 0
        %883 = vmatpush.bf16.xpose.msra.mxu0 0
        %884 = vmatpush.bf16.xpose.msra.mxu0 0
        %885 = vmatpush.bf16.xpose.msra.mxu0 0
        %886 = vmatpush.bf16.xpose.msra.mxu0 %v877
        %887 = vmatmul.bf16.gmra.mxu0 %v874
        %v888 = vpop.f32.mrf.mxu0
        %v889 = vadd.f32 0.0, %v888
        %v890 = vpop.f32.mrf.mxu0
        %v891 = vadd.f32 0.0, %v890
        %892 = vdwg.mxu0
        %v893 = vmul.f32 %v889, 0.17677669
        %v894 = vmul.f32 %v891, 0.17677669
        %v895 = vsel %vm648, %v893, -inf
        %v896 = vsel %vm649, %v894, -inf
        %v897 = vsel %vm694, %v895, -inf
        %898 = vmax.xlane.f32.xlu0 %v897
        %v899 = vpop.xlane.xlu0 %898
        %v900 = vsel %vm694, %v896, -inf
        %901 = vmax.xlane.f32.xlu0 %v900
        %v902 = vpop.xlane.xlu0 %901
        %v903 = vsub.f32 %v895, %v899
        %v904 = vsub.f32 %v896, %v902
        %v905 = vmul.f32 %v903, 1.442695
        %v906 = vpow.pop %v905
        %v907 = vmul.f32 %v904, 1.442695
        %v908 = vpow.pop %v907
        %v909 = vsel %vm694, %v906, 0.0
        %910 = vadd.xlane.f32.xlu0 %v909
        %v911 = vpop.xlane.xlu0 %910
        %v912 = vsel %vm694, %v908, 0.0
        %913 = vadd.xlane.f32.xlu0 %v912
        %v914 = vpop.xlane.xlu0 %913
        %v915 = vrcp.pop %v911
        %v916 = vrcp.pop %v914
        %v917 = vmul.f32 %v906, %v915
        %v918 = vmul.f32 %v908, %v916
        %v919 = vpack.c.bf16 %v918, %v917
        %920 = vrot.lane.b32.xlu0 %v668, 64
        %v921 = vpop.permute.xlu0 %920
        %v924 = vsel %vm694, %v919, 0
        %926 = vmatpush.bf16.msra.mxu0 0
        %927 = vmatpush.bf16.msra.mxu0 0
        %928 = vmatpush.bf16.msra.mxu0 0
        %929 = vmatpush.bf16.msra.mxu0 0
        %930 = vmatpush.bf16.msra.mxu0 0
        %931 = vmatpush.bf16.msra.mxu0 0
        %932 = vmatpush.bf16.msra.mxu0 0
        %933 = vmatpush.bf16.msra.mxu0 %v921
        %934 = vmatmul.bf16.gmra.mxu0 %v924
        %v935 = vpop.f32.mrf.mxu0
        %v936 = vadd.f32 0.0, %v935
        %v937 = vpop.f32.mrf.mxu0
        %v938 = vadd.f32 0.0, %v937
        %939 = vdwg.mxu0
        %v940 = vpack.c.bf16 %v938, %v936
        %v945 = vunpack.c.l.b16 %v658
        %v946 = vunpack.c.l.b16 %v659
        %v947 = vunpack.c.l.b16 %v660
        %v948 = vunpack.c.l.b16 %v661
        %v949 = vpack.c.b16 %v946, %v945
        %v950 = vpack.c.b16 %v948, %v947
        %v954 = vsel %vm669, %v940, 0
        %956 = vmatpush.bf16.msra.mxu0 0
        %957 = vmatpush.bf16.msra.mxu0 0
        %958 = vmatpush.bf16.msra.mxu0 0
        %959 = vmatpush.bf16.msra.mxu0 0
        %960 = vmatpush.bf16.msra.mxu0 0
        %961 = vmatpush.bf16.msra.mxu0 0
        %962 = vmatpush.bf16.msra.mxu0 %v950
        %963 = vmatpush.bf16.msra.mxu0 %v949
        %964 = vmatmul.bf16.gmra.mxu0 %v954
        %v965 = vpop.f32.mrf.mxu0
        %v966 = vadd.f32 0.0, %v965
        %v967 = vpop.f32.mrf.mxu0
        %v968 = vadd.f32 0.0, %v967
        %969 = vdwg.mxu0
        %v970 = vadd.f32 %v865, %v966
        %v971 = vadd.f32 %v867, %v968
        %972 = vrot.lane.b32.xlu0 %v666, 32
        %v973 = vpop.permute.xlu0 %972
        %974 = vrot.lane.b32.xlu0 %v667, 32
        %v975 = vpop.permute.xlu0 %974
        %v977 = vsel %vm669, %v973, 0
        %v980 = vsel %vm669, %v975, 0
        %982 = vmatpush.bf16.xpose.msra.mxu0 0
        %983 = vmatpush.bf16.xpose.msra.mxu0 0
        %984 = vmatpush.bf16.xpose.msra.mxu0 0
        %985 = vmatpush.bf16.xpose.msra.mxu0 0
        %986 = vmatpush.bf16.xpose.msra.mxu0 0
        %987 = vmatpush.bf16.xpose.msra.mxu0 0
        %988 = vmatpush.bf16.xpose.msra.mxu0 0
        %989 = vmatpush.bf16.xpose.msra.mxu0 %v980
        %990 = vmatmul.bf16.gmra.mxu0 %v977
        %v991 = vpop.f32.mrf.mxu0
        %v992 = vadd.f32 0.0, %v991
        %v993 = vpop.f32.mrf.mxu0
        %v994 = vadd.f32 0.0, %v993
        %995 = vdwg.mxu0
        %v996 = vmul.f32 %v992, 0.17677669
        %v997 = vmul.f32 %v994, 0.17677669
        %v998 = vsel %vm648, %v996, -inf
        %v999 = vsel %vm649, %v997, -inf
        %v1000 = vsel %vm694, %v998, -inf
        %1001 = vmax.xlane.f32.xlu0 %v1000
        %v1002 = vpop.xlane.xlu0 %1001
        %v1003 = vsel %vm694, %v999, -inf
        %1004 = vmax.xlane.f32.xlu0 %v1003
        %v1005 = vpop.xlane.xlu0 %1004
        %v1006 = vsub.f32 %v998, %v1002
        %v1007 = vsub.f32 %v999, %v1005
        %v1008 = vmul.f32 %v1006, 1.442695
        %v1009 = vpow.pop %v1008
        %v1010 = vmul.f32 %v1007, 1.442695
        %v1011 = vpow.pop %v1010
        %v1012 = vsel %vm694, %v1009, 0.0
        %1013 = vadd.xlane.f32.xlu0 %v1012
        %v1014 = vpop.xlane.xlu0 %1013
        %v1015 = vsel %vm694, %v1011, 0.0
        %1016 = vadd.xlane.f32.xlu0 %v1015
        %v1017 = vpop.xlane.xlu0 %1016
        %v1018 = vrcp.pop %v1014
        %v1019 = vrcp.pop %v1017
        %v1020 = vmul.f32 %v1009, %v1018
        %v1021 = vmul.f32 %v1011, %v1019
        %v1022 = vpack.c.bf16 %v1021, %v1020
        %1023 = vrot.lane.b32.xlu0 %v668, 32
        %v1024 = vpop.permute.xlu0 %1023
        %v1027 = vsel %vm694, %v1022, 0
        %1029 = vmatpush.bf16.msra.mxu0 0
        %1030 = vmatpush.bf16.msra.mxu0 0
        %1031 = vmatpush.bf16.msra.mxu0 0
        %1032 = vmatpush.bf16.msra.mxu0 0
        %1033 = vmatpush.bf16.msra.mxu0 0
        %1034 = vmatpush.bf16.msra.mxu0 0
        %1035 = vmatpush.bf16.msra.mxu0 0
        %1036 = vmatpush.bf16.msra.mxu0 %v1024
        %1037 = vmatmul.bf16.gmra.mxu0 %v1027
        %v1038 = vpop.f32.mrf.mxu0
        %v1039 = vadd.f32 0.0, %v1038
        %v1040 = vpop.f32.mrf.mxu0
        %v1041 = vadd.f32 0.0, %v1040
        %1042 = vdwg.mxu0
        %v1043 = vpack.c.bf16 %v1041, %v1039
        %v1048 = vunpack.c.l.b16 %v662
        %v1049 = vunpack.c.l.b16 %v663
        %v1050 = vunpack.c.l.b16 %v664
        %v1051 = vunpack.c.l.b16 %v665
        %v1052 = vpack.c.b16 %v1049, %v1048
        %v1053 = vpack.c.b16 %v1051, %v1050
        %v1057 = vsel %vm669, %v1043, 0
        %1059 = vmatpush.bf16.msra.mxu0 0
        %1060 = vmatpush.bf16.msra.mxu0 0
        %1061 = vmatpush.bf16.msra.mxu0 0
        %1062 = vmatpush.bf16.msra.mxu0 0
        %1063 = vmatpush.bf16.msra.mxu0 0
        %1064 = vmatpush.bf16.msra.mxu0 0
        %1065 = vmatpush.bf16.msra.mxu0 %v1053
        %1066 = vmatpush.bf16.msra.mxu0 %v1052
        %1067 = vmatmul.bf16.gmra.mxu0 %v1057
        %v1068 = vpop.f32.mrf.mxu0
        %v1069 = vadd.f32 0.0, %v1068
        %v1070 = vpop.f32.mrf.mxu0
        %v1071 = vadd.f32 0.0, %v1070
        %1072 = vdwg.mxu0
        %v1073 = vadd.f32 %v970, %v1069
        %v1074 = vadd.f32 %v971, %v1071
        %v1075 = vadd.f32 %v347, %v1073
        %v1076 = vadd.f32 %v348, %v1074
        %1077 = vst [vmem:[%s345] sm:$0xff] %v1075
        %1078 = vst [vmem:[%s345 + $0x8] sm:$0xff] %v1076
        %p1079 = scmp.lt.s32.totalorder %s21, 1
        %s1080 = scalar_select %p1079, %s21, 1
        %s1081 = smul.addr %s1080, 2
        %s1082 = smul.addr %s1081, 8
        %s1083 = scalar_lea.vmem %s7, %s1082
        // Predicated region
        $region65: #{pallas_forward.5} parent=47 // pred_check
          %p1084 = pneg %p191
        $region66: #{pallas_forward.5} parent=47 // pred_check_branch
          %1086 = sbr.rel (%p1084) target = $region68
        $region67: #{pallas_forward.5} parent=47 // pred_region
          _
        $region68: #{pallas_forward.5} parent=47 // pred_fallthru
          _
      $region48: #{pallas_forward.5} parent=5 // pred_fallthru
        _
      %p1087 = scmp.le.s32.totalorder 2, %s16
      // Predicated region
      $region69: #{pallas_forward.5} parent=5 // pred_check
        %p1088 = pneg %p1087
      $region70: #{pallas_forward.5} parent=5 // pred_check_branch
        %1090 = sbr.rel (%p1088) target = $region72
      $region71: #{pallas_forward.5} parent=5 // pred_region
        %s1091 = ssub.s32 %s16, 2
        // Predicated region
        $region73: #{pallas_forward.5} parent=71 // pred_check
          %p1092 = pneg %p197
        $region74: #{pallas_forward.5} parent=71 // pred_check_branch
          %1094 = sbr.rel (%p1092) target = $region76
        $region75: #{pallas_forward.5} parent=71 // pred_region
          %p1095 = scmp.lt.s32.totalorder %s22, 1
          %s1096 = scalar_select %p1095, %s22, 1
          %s1097 = smul.addr %s1096, 2
          %s1098 = smul.addr %s1097, 8
          %s1099 = scalar_lea.vmem %s7, %s1098
        $region76: #{pallas_forward.5} parent=71 // pred_fallthru
          _
      $region72: #{pallas_forward.5} parent=5 // pred_fallthru
        _
    $region6: #{pallas_forward.5} parent=1 // loop_footer
      %s20 = sadd.s32 1, %s16
    $region7: #{pallas_forward.5} parent=1 // loop_footer_branch
      %15 = sbr.rel target = $region3
    $region8: #{pallas_forward.5} parent=1 // loop_exit
      _
    %1100 = vsyncpa [#allocation3], 1
    %s1101 = scalar_lea.sflag [#allocation3], 1
    %1102 = vsyncpa %s1101, 1
    %1103 = vsyncpa [#allocation5], 1
    %1104 = vsyncpa [#allocation8], 1

</llo_original>
